<compile_context>
chip_gen: v5e
topology: v5e:2x2
jax: 0.10.0
libtpu: 0.0.40
codegen_flags: <defaults>
</compile_context>

<pallas_src>
import jax
import jax.numpy as jnp
import numpy as np
from jax.experimental import pallas as pl
from jax.experimental.pallas import tpu as pltpu

LN_EPS = 1e-5


def _pick_block_b(batch, max_bt=4):
    """Largest Bt <= max_bt dividing `batch` while keeping >= 2 grid steps."""
    if batch <= 1:
        return 1
    for bt in range(min(max_bt, batch // 2), 0, -1):
        if batch % bt == 0:
            return bt
    return 1


# ----------------------------------------------------------------------------
# Fused kernel: in-VMEM layout change + QKV proj + MHA + out proj + LayerNorm.
#   x_ref:    (Bt, C, S)  f32   NCHW-native block (C on sublanes, S on lanes)
#   wqkv_ref: (C, 3C)     bf16  pre-transposed in_proj weight
#   bqkv_ref: (1, 3C)     f32
#   wo_ref:   (C, C)      bf16  pre-transposed out_proj weight
#   bo_ref:   (1, C)      f32
#   g_ref/b_ref: (1, C)   f32   LayerNorm affine params
#   out_ref:  (Bt, C, S)  f32   pre-transposed (lane-dense) output block
# ----------------------------------------------------------------------------
def make_batchformer_kernel(dim, num_heads, block_b, seq):
    head_dim = dim // num_heads
    scale = 1.0 / float(np.sqrt(head_dim))

    def kernel(x_ref, wqkv_ref, bqkv_ref, wo_ref, bo_ref, g_ref, b_ref, out_ref):
        # ---- in-VMEM layout change: (Bt, C, S) -> (Bt*S, C) ----
        xs = [jnp.transpose(x_ref[i], (1, 0)) for i in range(block_b)]
        x = xs[0] if block_b == 1 else jnp.concatenate(xs, axis=0)

        # ---- fused QKV projection: bf16 operands, f32 accumulation ----
        qkv = jnp.dot(x.astype(jnp.bfloat16), wqkv_ref[...],
                      preferred_element_type=jnp.float32) + bqkv_ref[...]

        for i in range(block_b):
            r = i * seq
            qb = qkv[r:r + seq, 0:dim]
            kb = qkv[r:r + seq, dim:2 * dim].astype(jnp.bfloat16)
            vb = qkv[r:r + seq, 2 * dim:3 * dim].astype(jnp.bfloat16)

            # Out-projection accumulator (per-head accumulation, no concat).
            y = jnp.zeros((seq, dim), jnp.float32)
            for h in range(num_heads):
                lo = h * head_dim
                qh = (qb[:, lo:lo + head_dim] * scale).astype(jnp.bfloat16)
                kh = kb[:, lo:lo + head_dim]
                vh = vb[:, lo:lo + head_dim]

                # Scores: contract the head dim of both operands (no kh.T).
                s = jax.lax.dot_general(
                    qh, kh, (((1,), (1,)), ((), ())),
                    preferred_element_type=jnp.float32)            # (S, S) f32

                # Softmax with deferred normalization (f32 statistics).
                m = jnp.max(s, axis=-1, keepdims=True)
                p = jnp.exp(s - m)
                l = jnp.sum(p, axis=-1, keepdims=True)
                oh = jnp.dot(p.astype(jnp.bfloat16), vh,
                             preferred_element_type=jnp.float32)    # (S, hd)
                oh = oh * pl.reciprocal(l, approx=True)

                # Accumulate this head directly into the out-projection.
                y = y + jnp.dot(oh.astype(jnp.bfloat16),
                                wo_ref[lo:lo + head_dim, :],
                                preferred_element_type=jnp.float32)
            y = y + bo_ref[...]

            # ---- LayerNorm over channels (f32, eps=1e-5, affine) ----
            mean = jnp.mean(y, axis=-1, keepdims=True)
            d = y - mean
            var = jnp.mean(d * d, axis=-1, keepdims=True)
            yn = d * jax.lax.rsqrt(var + LN_EPS)
            yn = yn * g_ref[...] + b_ref[...]

            # ---- store pre-transposed (C, S): wrapper needs no HBM transpose ----
            out_ref[i] = jnp.transpose(yn, (1, 0)).astype(out_ref.dtype)

    return kernel


def batchformer_forward(x_nchw, params, num_heads=4, block_b=None):
    """Matches BatchFormer.forward(x) for NCHW input x."""
    B, C, H, W = x_nchw.shape
    S = H * W
    assert C % num_heads == 0, "embed dim must be divisible by num_heads"
    assert C % 128 == 0 and S % 8 == 0, \
        "lane-dense kernel expects C % 128 == 0 and H*W % 8 == 0"
    # TODO(synk): for S >~ 2K, tile the query axis with online softmax
    # (flash-style) so the per-head (S, S) scores never exceed v7x's 64 MiB VMEM.

    Bt = _pick_block_b(B) if block_b is None else block_b
    assert B % Bt == 0

    x_bcs = x_nchw.reshape(B, C, S)          # free view: NCHW -> (B, C, S)

    kernel = make_batchformer_kernel(C, num_heads, Bt, S)
    out_bcs = pl.pallas_call(
        kernel,
        out_shape=jax.ShapeDtypeStruct((B, C, S), jnp.float32),
        grid=(B // Bt,),
        in_specs=[
            pl.BlockSpec((Bt, C, S), lambda i: (i, 0, 0)),
            pl.BlockSpec((C, 3 * C), lambda i: (0, 0)),
            pl.BlockSpec((1, 3 * C), lambda i: (0, 0)),
            pl.BlockSpec((C, C), lambda i: (0, 0)),
            pl.BlockSpec((1, C), lambda i: (0, 0)),
            pl.BlockSpec((1, C), lambda i: (0, 0)),
            pl.BlockSpec((1, C), lambda i: (0, 0)),
        ],
        out_specs=pl.BlockSpec((Bt, C, S), lambda i: (i, 0, 0)),
        compiler_params=pltpu.CompilerParams(
            dimension_semantics=("parallel",),        # shard batch across TCs
            vmem_limit_bytes=32 * 1024 * 1024,        # >= v5e's 16 MiB default
        ),
    )(x_bcs,
      params["wqkv"].astype(jnp.bfloat16),
      params["bqkv"].reshape(1, 3 * C),
      params["wo"].astype(jnp.bfloat16),
      params["bo"].reshape(1, C),
      params["ln_g"].reshape(1, C),
      params["ln_b"].reshape(1, C))

    return out_bcs.reshape(B, C, H, W)       # free view: (B, C, S) -> NCHW


# ----------------------------------------------------------------------------
# Pure-JAX reference (same math, HIGHEST precision) for the correctness check.
# ----------------------------------------------------------------------------
def batchformer_reference(x_nchw, params, num_heads=4):
    B, C, H, W = x_nchw.shape
    S = H * W
    hd = C // num_heads
    hi = jax.lax.Precision.HIGHEST

    x = jnp.transpose(x_nchw.reshape(B, C, S), (0, 2, 1))           # (B, S, C)
    qkv = jnp.einsum("bsc,cd->bsd", x, params["wqkv"], precision=hi) + params["bqkv"]
    q, k, v = jnp.split(qkv, 3, axis=-1)
    q = q.reshape(B, S, num_heads, hd).transpose(0, 2, 1, 3)
    k = k.reshape(B, S, num_heads, hd).transpose(0, 2, 1, 3)
    v = v.reshape(B, S, num_heads, hd).transpose(0, 2, 1, 3)
    s = jnp.einsum("bhqd,bhkd->bhqk", q, k, precision=hi) / jnp.sqrt(hd)
    p = jax.nn.softmax(s, axis=-1)
    o = jnp.einsum("bhqk,bhkd->bhqd", p, v, precision=hi)
    o = o.transpose(0, 2, 1, 3).reshape(B, S, C)
    y = jnp.einsum("bsc,cd->bsd", o, params["wo"], precision=hi) + params["bo"]
    mean = y.mean(-1, keepdims=True)
    var = ((y - mean) ** 2).mean(-1, keepdims=True)
    y = (y - mean) / jnp.sqrt(var + LN_EPS)
    y = y * params["ln_g"] + params["ln_b"]
    return jnp.transpose(y, (0, 2, 1)).reshape(B, C, H, W)


# ----------------------------------------------------------------------------
# Deterministic parameter construction (weights stored pre-transposed: (in, out)).
# ----------------------------------------------------------------------------
def init_params(key, dim):
    ks = jax.random.split(key, 6)
    s = 1.0 / jnp.sqrt(dim).astype(jnp.float32)
    return {
        "wqkv": jax.random.normal(ks[0], (dim, 3 * dim), jnp.float32) * s,
        "bqkv": 0.01 * jax.random.normal(ks[1], (3 * dim,), jnp.float32),
        "wo":   jax.random.normal(ks[2], (dim, dim), jnp.float32) * s,
        "bo":   0.01 * jax.random.normal(ks[3], (dim,), jnp.float32),
        "ln_g": 1.0 + 0.01 * jax.random.normal(ks[4], (dim,), jnp.float32),
        "ln_b": 0.01 * jax.random.normal(ks[5], (dim,), jnp.float32),
    }


if __name__ == "__main__":
    key = jax.random.PRNGKey(0)
    kx, kp = jax.random.split(key)

    # Small, lane-friendly shapes: dim (=C) = 128 on the lane axis,
    # S = H*W = 256 is a multiple of the 8-sublane tile, B=2 -> grid of 2
    # parallel steps (keeps both v7x TensorCores busy).
    B, C, H, W = 2, 128, 16, 16
    NUM_HEADS = 4

    x = jax.random.normal(kx, (B, C, H, W), jnp.float32)
    params = init_params(kp, C)

    out = jax.jit(batchformer_forward)(x, params)
    jax.block_until_ready(out)

    assert out.shape == (B, C, H, W)
    assert bool(jnp.all(jnp.isfinite(out)))

    # Tolerance widened vs. the f32 HIGHEST-precision reference because matmul
    # operands are bf16 on the MXU (softmax/LayerNorm statistics stay f32).
    ref = batchformer_reference(x, params, NUM_HEADS)
    np.testing.assert_allclose(np.asarray(out), np.asarray(ref),
                               atol=5e-2, rtol=5e-2)

    print("KERNEL_OK")
</pallas_src>

<mosaic_0001>
module attributes {stable_mosaic.version = 11 : i64} {
  func.func @kernel(%arg0: i32, %arg1: memref<1x128x256xf32, #tpu.memory_space<vmem>>, %arg2: memref<128x384xbf16, #tpu.memory_space<vmem>>, %arg3: memref<1x384xf32, #tpu.memory_space<vmem>>, %arg4: memref<128x128xbf16, #tpu.memory_space<vmem>>, %arg5: memref<1x128xf32, #tpu.memory_space<vmem>>, %arg6: memref<1x128xf32, #tpu.memory_space<vmem>>, %arg7: memref<1x128xf32, #tpu.memory_space<vmem>>, %arg8: memref<1x128x256xf32, #tpu.memory_space<vmem>>) attributes {dimension_semantics = [#tpu.dimension_semantics<parallel>], iteration_bounds = array<i64: 2>, scalar_prefetch = 0 : i64, scratch_operands = 0 : i64, tpu.core_type = #tpu.core_type<tc>, window_params = [{transform_indices = @transform_0, window_bounds = array<i64: 1, 128, 256>}, {pipeline_mode = #tpu.pipeline_mode<synchronous>, transform_indices = @transform_1, window_bounds = array<i64: 128, 384>}, {pipeline_mode = #tpu.pipeline_mode<synchronous>, transform_indices = @transform_2, window_bounds = array<i64: 1, 384>}, {pipeline_mode = #tpu.pipeline_mode<synchronous>, transform_indices = @transform_3, window_bounds = array<i64: 128, 128>}, {pipeline_mode = #tpu.pipeline_mode<synchronous>, transform_indices = @transform_4, window_bounds = array<i64: 1, 128>}, {pipeline_mode = #tpu.pipeline_mode<synchronous>, transform_indices = @transform_5, window_bounds = array<i64: 1, 128>}, {pipeline_mode = #tpu.pipeline_mode<synchronous>, transform_indices = @transform_6, window_bounds = array<i64: 1, 128>}, {transform_indices = @transform_7, window_bounds = array<i64: 1, 128, 256>}]} {
    %c0 = arith.constant 0 : index
    %c0_0 = arith.constant 0 : index
    %c0_1 = arith.constant 0 : index
    %0 = vector.load %arg1[%c0, %c0_0, %c0_1] : memref<1x128x256xf32, #tpu.memory_space<vmem>>, vector<1x128x256xf32>
    %1 = vector.shape_cast %0 : vector<1x128x256xf32> to vector<128x256xf32>
    %2 = tpu.transpose %1, [1, 0] : vector<128x256xf32> -> vector<256x128xf32>
    %3 = arith.truncf %2 : vector<256x128xf32> to vector<256x128xbf16>
    %c0_2 = arith.constant 0 : index
    %c0_3 = arith.constant 0 : index
    %4 = vector.load %arg2[%c0_2, %c0_3] : memref<128x384xbf16, #tpu.memory_space<vmem>>, vector<128x384xbf16>
    %cst = arith.constant dense<0.000000e+00> : vector<256x384xf32>
    %5 = tpu.matmul %3, %4, %cst {dimension_numbers = #tpu.dot_dimension_numbers<[1], [0], [0], [1], [0, 0, 1, 1], [], []>} : vector<256x128xbf16>, vector<128x384xbf16>, vector<256x384xf32> -> vector<256x384xf32>
    %c0_4 = arith.constant 0 : index
    %c0_5 = arith.constant 0 : index
    %6 = vector.load %arg3[%c0_4, %c0_5] : memref<1x384xf32, #tpu.memory_space<vmem>>, vector<1x384xf32>
    %7 = vector.broadcast %6 : vector<1x384xf32> to vector<256x384xf32>
    %8 = arith.addf %5, %7 : vector<256x384xf32>
    %9 = vector.extract_strided_slice %8 {offsets = [0, 0], sizes = [256, 128], strides = [1, 1]} : vector<256x384xf32> to vector<256x128xf32>
    %10 = vector.extract_strided_slice %8 {offsets = [0, 128], sizes = [256, 128], strides = [1, 1]} : vector<256x384xf32> to vector<256x128xf32>
    %11 = arith.truncf %10 : vector<256x128xf32> to vector<256x128xbf16>
    %12 = vector.extract_strided_slice %8 {offsets = [0, 256], sizes = [256, 128], strides = [1, 1]} : vector<256x384xf32> to vector<256x128xf32>
    %13 = arith.truncf %12 : vector<256x128xf32> to vector<256x128xbf16>
    %cst_6 = arith.constant 0.000000e+00 : f32
    %14 = vector.broadcast %cst_6 : f32 to vector<256x128xf32>
    %15 = vector.extract_strided_slice %9 {offsets = [0, 0], sizes = [256, 32], strides = [1, 1]} : vector<256x128xf32> to vector<256x32xf32>
    %cst_7 = arith.constant 0.176776692 : f32
    %16 = vector.broadcast %cst_7 : f32 to vector<256x32xf32>
    %17 = arith.mulf %15, %16 : vector<256x32xf32>
    %18 = arith.truncf %17 : vector<256x32xf32> to vector<256x32xbf16>
    %19 = vector.extract_strided_slice %11 {offsets = [0, 0], sizes = [256, 32], strides = [1, 1]} : vector<256x128xbf16> to vector<256x32xbf16>
    %20 = vector.extract_strided_slice %13 {offsets = [0, 0], sizes = [256, 32], strides = [1, 1]} : vector<256x128xbf16> to vector<256x32xbf16>
    %cst_8 = arith.constant dense<0.000000e+00> : vector<256x256xf32>
    %21 = tpu.matmul %18, %19, %cst_8 {dimension_numbers = #tpu.dot_dimension_numbers<[1], [1], [0], [0], [0, 0, 1, 0], [], []>} : vector<256x32xbf16>, vector<256x32xbf16>, vector<256x256xf32> -> vector<256x256xf32>
    %cst_9 = arith.constant dense<0xFF800000> : vector<256xf32>
    %22 = vector.multi_reduction <maximumf>, %21, %cst_9 [1] : vector<256x256xf32> to vector<256xf32>
    %23 = vector.shape_cast %22 : vector<256xf32> to vector<256x1xf32>
    %24 = vector.broadcast %23 : vector<256x1xf32> to vector<256x256xf32>
    %25 = arith.subf %21, %24 : vector<256x256xf32>
    %26 = math.exp %25 : vector<256x256xf32>
    %cst_10 = arith.constant dense<0.000000e+00> : vector<256xf32>
    %27 = vector.multi_reduction <add>, %26, %cst_10 [1] : vector<256x256xf32> to vector<256xf32>
    %28 = vector.shape_cast %27 : vector<256xf32> to vector<256x1xf32>
    %29 = arith.truncf %26 : vector<256x256xf32> to vector<256x256xbf16>
    %cst_11 = arith.constant dense<0.000000e+00> : vector<256x32xf32>
    %30 = tpu.matmul %29, %20, %cst_11 {dimension_numbers = #tpu.dot_dimension_numbers<[1], [0], [0], [1], [0, 0, 1, 1], [], []>} : vector<256x256xbf16>, vector<256x32xbf16>, vector<256x32xf32> -> vector<256x32xf32>
    %31 = tpu.reciprocal %28 {approx = true} : vector<256x1xf32> -> vector<256x1xf32>
    %32 = vector.broadcast %31 : vector<256x1xf32> to vector<256x32xf32>
    %33 = arith.mulf %30, %32 : vector<256x32xf32>
    %34 = arith.truncf %33 : vector<256x32xf32> to vector<256x32xbf16>
    %c0_12 = arith.constant 0 : index
    %c0_13 = arith.constant 0 : index
    %35 = vector.load %arg4[%c0_12, %c0_13] : memref<128x128xbf16, #tpu.memory_space<vmem>>, vector<32x128xbf16>
    %cst_14 = arith.constant dense<0.000000e+00> : vector<256x128xf32>
    %36 = tpu.matmul %34, %35, %cst_14 {dimension_numbers = #tpu.dot_dimension_numbers<[1], [0], [0], [1], [0, 0, 1, 1], [], []>} : vector<256x32xbf16>, vector<32x128xbf16>, vector<256x128xf32> -> vector<256x128xf32>
    %37 = arith.addf %14, %36 : vector<256x128xf32>
    %38 = vector.extract_strided_slice %9 {offsets = [0, 32], sizes = [256, 32], strides = [1, 1]} : vector<256x128xf32> to vector<256x32xf32>
    %cst_15 = arith.constant 0.176776692 : f32
    %39 = vector.broadcast %cst_15 : f32 to vector<256x32xf32>
    %40 = arith.mulf %38, %39 : vector<256x32xf32>
    %41 = arith.truncf %40 : vector<256x32xf32> to vector<256x32xbf16>
    %42 = vector.extract_strided_slice %11 {offsets = [0, 32], sizes = [256, 32], strides = [1, 1]} : vector<256x128xbf16> to vector<256x32xbf16>
    %43 = vector.extract_strided_slice %13 {offsets = [0, 32], sizes = [256, 32], strides = [1, 1]} : vector<256x128xbf16> to vector<256x32xbf16>
    %cst_16 = arith.constant dense<0.000000e+00> : vector<256x256xf32>
    %44 = tpu.matmul %41, %42, %cst_16 {dimension_numbers = #tpu.dot_dimension_numbers<[1], [1], [0], [0], [0, 0, 1, 0], [], []>} : vector<256x32xbf16>, vector<256x32xbf16>, vector<256x256xf32> -> vector<256x256xf32>
    %cst_17 = arith.constant dense<0xFF800000> : vector<256xf32>
    %45 = vector.multi_reduction <maximumf>, %44, %cst_17 [1] : vector<256x256xf32> to vector<256xf32>
    %46 = vector.shape_cast %45 : vector<256xf32> to vector<256x1xf32>
    %47 = vector.broadcast %46 : vector<256x1xf32> to vector<256x256xf32>
    %48 = arith.subf %44, %47 : vector<256x256xf32>
    %49 = math.exp %48 : vector<256x256xf32>
    %cst_18 = arith.constant dense<0.000000e+00> : vector<256xf32>
    %50 = vector.multi_reduction <add>, %49, %cst_18 [1] : vector<256x256xf32> to vector<256xf32>
    %51 = vector.shape_cast %50 : vector<256xf32> to vector<256x1xf32>
    %52 = arith.truncf %49 : vector<256x256xf32> to vector<256x256xbf16>
    %cst_19 = arith.constant dense<0.000000e+00> : vector<256x32xf32>
    %53 = tpu.matmul %52, %43, %cst_19 {dimension_numbers = #tpu.dot_dimension_numbers<[1], [0], [0], [1], [0, 0, 1, 1], [], []>} : vector<256x256xbf16>, vector<256x32xbf16>, vector<256x32xf32> -> vector<256x32xf32>
    %54 = tpu.reciprocal %51 {approx = true} : vector<256x1xf32> -> vector<256x1xf32>
    %55 = vector.broadcast %54 : vector<256x1xf32> to vector<256x32xf32>
    %56 = arith.mulf %53, %55 : vector<256x32xf32>
    %57 = arith.truncf %56 : vector<256x32xf32> to vector<256x32xbf16>
    %c32 = arith.constant 32 : index
    %c0_20 = arith.constant 0 : index
    %58 = vector.load %arg4[%c32, %c0_20] : memref<128x128xbf16, #tpu.memory_space<vmem>>, vector<32x128xbf16>
    %cst_21 = arith.constant dense<0.000000e+00> : vector<256x128xf32>
    %59 = tpu.matmul %57, %58, %cst_21 {dimension_numbers = #tpu.dot_dimension_numbers<[1], [0], [0], [1], [0, 0, 1, 1], [], []>} : vector<256x32xbf16>, vector<32x128xbf16>, vector<256x128xf32> -> vector<256x128xf32>
    %60 = arith.addf %37, %59 : vector<256x128xf32>
    %61 = vector.extract_strided_slice %9 {offsets = [0, 64], sizes = [256, 32], strides = [1, 1]} : vector<256x128xf32> to vector<256x32xf32>
    %cst_22 = arith.constant 0.176776692 : f32
    %62 = vector.broadcast %cst_22 : f32 to vector<256x32xf32>
    %63 = arith.mulf %61, %62 : vector<256x32xf32>
    %64 = arith.truncf %63 : vector<256x32xf32> to vector<256x32xbf16>
    %65 = vector.extract_strided_slice %11 {offsets = [0, 64], sizes = [256, 32], strides = [1, 1]} : vector<256x128xbf16> to vector<256x32xbf16>
    %66 = vector.extract_strided_slice %13 {offsets = [0, 64], sizes = [256, 32], strides = [1, 1]} : vector<256x128xbf16> to vector<256x32xbf16>
    %cst_23 = arith.constant dense<0.000000e+00> : vector<256x256xf32>
    %67 = tpu.matmul %64, %65, %cst_23 {dimension_numbers = #tpu.dot_dimension_numbers<[1], [1], [0], [0], [0, 0, 1, 0], [], []>} : vector<256x32xbf16>, vector<256x32xbf16>, vector<256x256xf32> -> vector<256x256xf32>
    %cst_24 = arith.constant dense<0xFF800000> : vector<256xf32>
    %68 = vector.multi_reduction <maximumf>, %67, %cst_24 [1] : vector<256x256xf32> to vector<256xf32>
    %69 = vector.shape_cast %68 : vector<256xf32> to vector<256x1xf32>
    %70 = vector.broadcast %69 : vector<256x1xf32> to vector<256x256xf32>
    %71 = arith.subf %67, %70 : vector<256x256xf32>
    %72 = math.exp %71 : vector<256x256xf32>
    %cst_25 = arith.constant dense<0.000000e+00> : vector<256xf32>
    %73 = vector.multi_reduction <add>, %72, %cst_25 [1] : vector<256x256xf32> to vector<256xf32>
    %74 = vector.shape_cast %73 : vector<256xf32> to vector<256x1xf32>
    %75 = arith.truncf %72 : vector<256x256xf32> to vector<256x256xbf16>
    %cst_26 = arith.constant dense<0.000000e+00> : vector<256x32xf32>
    %76 = tpu.matmul %75, %66, %cst_26 {dimension_numbers = #tpu.dot_dimension_numbers<[1], [0], [0], [1], [0, 0, 1, 1], [], []>} : vector<256x256xbf16>, vector<256x32xbf16>, vector<256x32xf32> -> vector<256x32xf32>
    %77 = tpu.reciprocal %74 {approx = true} : vector<256x1xf32> -> vector<256x1xf32>
    %78 = vector.broadcast %77 : vector<256x1xf32> to vector<256x32xf32>
    %79 = arith.mulf %76, %78 : vector<256x32xf32>
    %80 = arith.truncf %79 : vector<256x32xf32> to vector<256x32xbf16>
    %c64 = arith.constant 64 : index
    %c0_27 = arith.constant 0 : index
    %81 = vector.load %arg4[%c64, %c0_27] : memref<128x128xbf16, #tpu.memory_space<vmem>>, vector<32x128xbf16>
    %cst_28 = arith.constant dense<0.000000e+00> : vector<256x128xf32>
    %82 = tpu.matmul %80, %81, %cst_28 {dimension_numbers = #tpu.dot_dimension_numbers<[1], [0], [0], [1], [0, 0, 1, 1], [], []>} : vector<256x32xbf16>, vector<32x128xbf16>, vector<256x128xf32> -> vector<256x128xf32>
    %83 = arith.addf %60, %82 : vector<256x128xf32>
    %84 = vector.extract_strided_slice %9 {offsets = [0, 96], sizes = [256, 32], strides = [1, 1]} : vector<256x128xf32> to vector<256x32xf32>
    %cst_29 = arith.constant 0.176776692 : f32
    %85 = vector.broadcast %cst_29 : f32 to vector<256x32xf32>
    %86 = arith.mulf %84, %85 : vector<256x32xf32>
    %87 = arith.truncf %86 : vector<256x32xf32> to vector<256x32xbf16>
    %88 = vector.extract_strided_slice %11 {offsets = [0, 96], sizes = [256, 32], strides = [1, 1]} : vector<256x128xbf16> to vector<256x32xbf16>
    %89 = vector.extract_strided_slice %13 {offsets = [0, 96], sizes = [256, 32], strides = [1, 1]} : vector<256x128xbf16> to vector<256x32xbf16>
    %cst_30 = arith.constant dense<0.000000e+00> : vector<256x256xf32>
    %90 = tpu.matmul %87, %88, %cst_30 {dimension_numbers = #tpu.dot_dimension_numbers<[1], [1], [0], [0], [0, 0, 1, 0], [], []>} : vector<256x32xbf16>, vector<256x32xbf16>, vector<256x256xf32> -> vector<256x256xf32>
    %cst_31 = arith.constant dense<0xFF800000> : vector<256xf32>
    %91 = vector.multi_reduction <maximumf>, %90, %cst_31 [1] : vector<256x256xf32> to vector<256xf32>
    %92 = vector.shape_cast %91 : vector<256xf32> to vector<256x1xf32>
    %93 = vector.broadcast %92 : vector<256x1xf32> to vector<256x256xf32>
    %94 = arith.subf %90, %93 : vector<256x256xf32>
    %95 = math.exp %94 : vector<256x256xf32>
    %cst_32 = arith.constant dense<0.000000e+00> : vector<256xf32>
    %96 = vector.multi_reduction <add>, %95, %cst_32 [1] : vector<256x256xf32> to vector<256xf32>
    %97 = vector.shape_cast %96 : vector<256xf32> to vector<256x1xf32>
    %98 = arith.truncf %95 : vector<256x256xf32> to vector<256x256xbf16>
    %cst_33 = arith.constant dense<0.000000e+00> : vector<256x32xf32>
    %99 = tpu.matmul %98, %89, %cst_33 {dimension_numbers = #tpu.dot_dimension_numbers<[1], [0], [0], [1], [0, 0, 1, 1], [], []>} : vector<256x256xbf16>, vector<256x32xbf16>, vector<256x32xf32> -> vector<256x32xf32>
    %100 = tpu.reciprocal %97 {approx = true} : vector<256x1xf32> -> vector<256x1xf32>
    %101 = vector.broadcast %100 : vector<256x1xf32> to vector<256x32xf32>
    %102 = arith.mulf %99, %101 : vector<256x32xf32>
    %103 = arith.truncf %102 : vector<256x32xf32> to vector<256x32xbf16>
    %c96 = arith.constant 96 : index
    %c0_34 = arith.constant 0 : index
    %104 = vector.load %arg4[%c96, %c0_34] : memref<128x128xbf16, #tpu.memory_space<vmem>>, vector<32x128xbf16>
    %cst_35 = arith.constant dense<0.000000e+00> : vector<256x128xf32>
    %105 = tpu.matmul %103, %104, %cst_35 {dimension_numbers = #tpu.dot_dimension_numbers<[1], [0], [0], [1], [0, 0, 1, 1], [], []>} : vector<256x32xbf16>, vector<32x128xbf16>, vector<256x128xf32> -> vector<256x128xf32>
    %106 = arith.addf %83, %105 : vector<256x128xf32>
    %c0_36 = arith.constant 0 : index
    %c0_37 = arith.constant 0 : index
    %107 = vector.load %arg5[%c0_36, %c0_37] : memref<1x128xf32, #tpu.memory_space<vmem>>, vector<1x128xf32>
    %108 = vector.broadcast %107 : vector<1x128xf32> to vector<256x128xf32>
    %109 = arith.addf %106, %108 : vector<256x128xf32>
    %cst_38 = arith.constant dense<0.000000e+00> : vector<256xf32>
    %110 = vector.multi_reduction <add>, %109, %cst_38 [1] : vector<256x128xf32> to vector<256xf32>
    %111 = vector.shape_cast %110 : vector<256xf32> to vector<256x1xf32>
    %cst_39 = arith.constant 1.280000e+02 : f32
    %112 = vector.broadcast %cst_39 : f32 to vector<256x1xf32>
    %113 = arith.divf %111, %112 : vector<256x1xf32>
    %114 = vector.broadcast %113 : vector<256x1xf32> to vector<256x128xf32>
    %115 = arith.subf %109, %114 : vector<256x128xf32>
    %116 = arith.mulf %115, %115 : vector<256x128xf32>
    %cst_40 = arith.constant dense<0.000000e+00> : vector<256xf32>
    %117 = vector.multi_reduction <add>, %116, %cst_40 [1] : vector<256x128xf32> to vector<256xf32>
    %118 = vector.shape_cast %117 : vector<256xf32> to vector<256x1xf32>
    %cst_41 = arith.constant 1.280000e+02 : f32
    %119 = vector.broadcast %cst_41 : f32 to vector<256x1xf32>
    %120 = arith.divf %118, %119 : vector<256x1xf32>
    %cst_42 = arith.constant 9.99999974E-6 : f32
    %121 = vector.broadcast %cst_42 : f32 to vector<256x1xf32>
    %122 = arith.addf %120, %121 : vector<256x1xf32>
    %123 = math.rsqrt %122 : vector<256x1xf32>
    %124 = vector.broadcast %123 : vector<256x1xf32> to vector<256x128xf32>
    %125 = arith.mulf %115, %124 : vector<256x128xf32>
    %c0_43 = arith.constant 0 : index
    %c0_44 = arith.constant 0 : index
    %126 = vector.load %arg6[%c0_43, %c0_44] : memref<1x128xf32, #tpu.memory_space<vmem>>, vector<1x128xf32>
    %127 = vector.broadcast %126 : vector<1x128xf32> to vector<256x128xf32>
    %128 = arith.mulf %125, %127 : vector<256x128xf32>
    %c0_45 = arith.constant 0 : index
    %c0_46 = arith.constant 0 : index
    %129 = vector.load %arg7[%c0_45, %c0_46] : memref<1x128xf32, #tpu.memory_space<vmem>>, vector<1x128xf32>
    %130 = vector.broadcast %129 : vector<1x128xf32> to vector<256x128xf32>
    %131 = arith.addf %128, %130 : vector<256x128xf32>
    %132 = tpu.transpose %131, [1, 0] : vector<256x128xf32> -> vector<128x256xf32>
    %c0_47 = arith.constant 0 : index
    %c0_48 = arith.constant 0 : index
    %c0_49 = arith.constant 0 : index
    %133 = vector.load %arg8[%c0_47, %c0_48, %c0_49] : memref<1x128x256xf32, #tpu.memory_space<vmem>>, vector<1x128x256xf32>
    %134 = vector.shape_cast %133 : vector<1x128x256xf32> to vector<128x256xf32>
    %135 = vector.shape_cast %132 : vector<128x256xf32> to vector<1x128x256xf32>
    tpu.vector_store %arg8[%c0_47, %c0_48, %c0_49], %135 {strides = array<i32>} : memref<1x128x256xf32, #tpu.memory_space<vmem>>, vector<1x128x256xf32>,
    return
  }
  func.func @transform_0(%arg0: i32) -> (i32, i32, i32) {
    %c0_i32 = arith.constant 0 : i32
    %c0_i32_0 = arith.constant 0 : i32
    %c0_i32_1 = arith.constant 0 : i32
    return %arg0, %c0_i32, %c0_i32_0 : i32, i32, i32
  }
  func.func @transform_1(%arg0: i32) -> (i32, i32) {
    %c0_i32 = arith.constant 0 : i32
    %c0_i32_0 = arith.constant 0 : i32
    %c0_i32_1 = arith.constant 0 : i32
    return %c0_i32, %c0_i32_0 : i32, i32
  }
  func.func @transform_2(%arg0: i32) -> (i32, i32) {
    %c0_i32 = arith.constant 0 : i32
    %c0_i32_0 = arith.constant 0 : i32
    %c0_i32_1 = arith.constant 0 : i32
    return %c0_i32, %c0_i32_0 : i32, i32
  }
  func.func @transform_3(%arg0: i32) -> (i32, i32) {
    %c0_i32 = arith.constant 0 : i32
    %c0_i32_0 = arith.constant 0 : i32
    %c0_i32_1 = arith.constant 0 : i32
    return %c0_i32, %c0_i32_0 : i32, i32
  }
  func.func @transform_4(%arg0: i32) -> (i32, i32) {
    %c0_i32 = arith.constant 0 : i32
    %c0_i32_0 = arith.constant 0 : i32
    %c0_i32_1 = arith.constant 0 : i32
    return %c0_i32, %c0_i32_0 : i32, i32
  }
  func.func @transform_5(%arg0: i32) -> (i32, i32) {
    %c0_i32 = arith.constant 0 : i32
    %c0_i32_0 = arith.constant 0 : i32
    %c0_i32_1 = arith.constant 0 : i32
    return %c0_i32, %c0_i32_0 : i32, i32
  }
  func.func @transform_6(%arg0: i32) -> (i32, i32) {
    %c0_i32 = arith.constant 0 : i32
    %c0_i32_0 = arith.constant 0 : i32
    %c0_i32_1 = arith.constant 0 : i32
    return %c0_i32, %c0_i32_0 : i32, i32
  }
  func.func @transform_7(%arg0: i32) -> (i32, i32, i32) {
    %c0_i32 = arith.constant 0 : i32
    %c0_i32_0 = arith.constant 0 : i32
    %c0_i32_1 = arith.constant 0 : i32
    return %arg0, %c0_i32, %c0_i32_0 : i32, i32, i32
  }
}

</mosaic_0001>

<llo_original>
// kernel: batchformer_forward.1
$region0: #{batchformer_forward.1}
  #allocation0 [shape = 'u32[]', space=smem, size = 0x4, offset = 0x4, fixed_abs, tag = 'smem constant byte address 0x4 - core index']
  #allocation1 [shape = 'u32[72,128]{1,0:T(1,128)}', space=vmem, size = 0x9000, scoped, tag = 'internal scratch']
  %s0 = inlined_call_operand.vmem [shape: f32[2,128,256], index: 0, kind: input, shape index: {}]
  %s1 = inlined_call_operand.vmem [shape: bf16[128,384], index: 1, kind: input, shape index: {}]
  %s2 = inlined_call_operand.vmem [shape: f32[1,384], index: 2, kind: input, shape index: {}]
  %s3 = inlined_call_operand.vmem [shape: bf16[128,128], index: 3, kind: input, shape index: {}]
  %s4 = inlined_call_operand.vmem [shape: f32[1,128], index: 4, kind: input, shape index: {}]
  %s5 = inlined_call_operand.vmem [shape: f32[1,128], index: 5, kind: input, shape index: {}]
  %s6 = inlined_call_operand.vmem [shape: f32[1,128], index: 6, kind: input, shape index: {}]
  %s7 = inlined_call_operand.vmem [shape: f32[2,128,256], index: 7, kind: output, shape index: {}]
  %s8 = sld [smem:[#allocation0]]
  $region61: #{batchformer_forward.1} parent=0
    _
  %s10 = ssub.s32 1, %s8
  %s11 = scalar_select 0, %s10, %s8
  loop: start=0, step=1, limit=4
  $region2: #{batchformer_forward.1} parent=0 // loop_pre_header
    _
  $region3: #{batchformer_forward.1} parent=0 // loop_header
    %s13 = sphi 0, %s17
    %p14 = scmp.ge.s32.totalorder %s13, 4
    %s23 = sphi 0, %s25
    %s26 = sphi 0, %s23
    %s27 = sphi 0, %s26
    %s43 = sphi 0, %s27
    %s47 = sphi 0, %s47
    %s49 = sphi 0, %s47
    %s50 = sphi 0, %s49
    %s64 = sphi 0, %s50
    %s68 = sphi 0, %s68
    %s70 = sphi 0, %s68
    %s71 = sphi 0, %s70
    %s85 = sphi 0, %s71
    %s89 = sphi 0, %s89
    %s91 = sphi 0, %s89
    %s92 = sphi 0, %s91
    %s106 = sphi 0, %s92
    %s110 = sphi 0, %s110
    %s112 = sphi 0, %s110
    %s113 = sphi 0, %s112
    %s127 = sphi 0, %s113
    %s131 = sphi 0, %s131
    %s133 = sphi 0, %s131
    %s134 = sphi 0, %s133
    %s148 = sphi 0, %s134
    %s152 = sphi 0, %s152
    %s154 = sphi 0, %s152
    %s155 = sphi 0, %s154
    %s169 = sphi 0, %s155
    %s175 = sphi 0, %s177
    %s178 = sphi 0, %s175
    %s179 = sphi 0, %s178
    %s195 = sphi 0, %s179
  $region4: #{batchformer_forward.1} parent=0 // loop_header_branch
    %16 = sbr.rel (%p14) target = $region8
  $region5: #{batchformer_forward.1} parent=0 // loop_body
    %s18 = ssub.s32 %s13, 1
    %s19 = ssub.s32 %s13, 2
    %s20 = sadd.s32 %s13, 1
    %s21 = ssub.s32 %s13, %s20
    %p22 = scmp.eq.s32.totalorder %s21, 0
    %s24 = sadd.s32 %s23, 1
    %s25 = scalar_select %p22, %s23, %s24
    %p28 = pneg %p22
    %p29 = scmp.eq.s32.totalorder %s13, 1
    %p30 = por %p28, %p29
    %p31 = scmp.ne.s32.totalorder %s23, %s26
    %p32 = scmp.eq.s32.totalorder %s13, 0
    %p33 = por %p31, %p32
    %p34 = scmp.ne.s32.totalorder %s23, %s26
    %p35 = scmp.eq.s32.totalorder %s18, 1
    %p36 = por %p34, %p35
    %p37 = scmp.ne.s32.totalorder %s26, %s27
    %p38 = scmp.eq.s32.totalorder %s18, 0
    %p39 = por %p37, %p38
    %p40 = scmp.ne.s32.totalorder %s26, %s27
    %p41 = scmp.eq.s32.totalorder %s19, 1
    %p42 = por %p40, %p41
    %p44 = scmp.ne.s32.totalorder %s27, %s43
    %p45 = scmp.eq.s32.totalorder %s19, 0
    %p46 = por %p44, %p45
    %s48 = sadd.s32 %s47, 1
    %p51 = scmp.eq.s32.totalorder %s13, 1
    %p52 = scmp.ne.s32.totalorder %s47, %s49
    %p53 = scmp.eq.s32.totalorder %s13, 0
    %p54 = por %p52, %p53
    %p55 = scmp.ne.s32.totalorder %s47, %s49
    %p56 = scmp.eq.s32.totalorder %s18, 1
    %p57 = por %p55, %p56
    %p58 = scmp.ne.s32.totalorder %s49, %s50
    %p59 = scmp.eq.s32.totalorder %s18, 0
    %p60 = por %p58, %p59
    %p61 = scmp.ne.s32.totalorder %s49, %s50
    %p62 = scmp.eq.s32.totalorder %s19, 1
    %p63 = por %p61, %p62
    %p65 = scmp.ne.s32.totalorder %s50, %s64
    %p66 = scmp.eq.s32.totalorder %s19, 0
    %p67 = por %p65, %p66
    %s69 = sadd.s32 %s68, 1
    %p72 = scmp.eq.s32.totalorder %s13, 1
    %p73 = scmp.ne.s32.totalorder %s68, %s70
    %p74 = scmp.eq.s32.totalorder %s13, 0
    %p75 = por %p73, %p74
    %p76 = scmp.ne.s32.totalorder %s68, %s70
    %p77 = scmp.eq.s32.totalorder %s18, 1
    %p78 = por %p76, %p77
    %p79 = scmp.ne.s32.totalorder %s70, %s71
    %p80 = scmp.eq.s32.totalorder %s18, 0
    %p81 = por %p79, %p80
    %p82 = scmp.ne.s32.totalorder %s70, %s71
    %p83 = scmp.eq.s32.totalorder %s19, 1
    %p84 = por %p82, %p83
    %p86 = scmp.ne.s32.totalorder %s71, %s85
    %p87 = scmp.eq.s32.totalorder %s19, 0
    %p88 = por %p86, %p87
    %s90 = sadd.s32 %s89, 1
    %p93 = scmp.eq.s32.totalorder %s13, 1
    %p94 = scmp.ne.s32.totalorder %s89, %s91
    %p95 = scmp.eq.s32.totalorder %s13, 0
    %p96 = por %p94, %p95
    %p97 = scmp.ne.s32.totalorder %s89, %s91
    %p98 = scmp.eq.s32.totalorder %s18, 1
    %p99 = por %p97, %p98
    %p100 = scmp.ne.s32.totalorder %s91, %s92
    %p101 = scmp.eq.s32.totalorder %s18, 0
    %p102 = por %p100, %p101
    %p103 = scmp.ne.s32.totalorder %s91, %s92
    %p104 = scmp.eq.s32.totalorder %s19, 1
    %p105 = por %p103, %p104
    %p107 = scmp.ne.s32.totalorder %s92, %s106
    %p108 = scmp.eq.s32.totalorder %s19, 0
    %p109 = por %p107, %p108
    %s111 = sadd.s32 %s110, 1
    %p114 = scmp.eq.s32.totalorder %s13, 1
    %p115 = scmp.ne.s32.totalorder %s110, %s112
    %p116 = scmp.eq.s32.totalorder %s13, 0
    %p117 = por %p115, %p116
    %p118 = scmp.ne.s32.totalorder %s110, %s112
    %p119 = scmp.eq.s32.totalorder %s18, 1
    %p120 = por %p118, %p119
    %p121 = scmp.ne.s32.totalorder %s112, %s113
    %p122 = scmp.eq.s32.totalorder %s18, 0
    %p123 = por %p121, %p122
    %p124 = scmp.ne.s32.totalorder %s112, %s113
    %p125 = scmp.eq.s32.totalorder %s19, 1
    %p126 = por %p124, %p125
    %p128 = scmp.ne.s32.totalorder %s113, %s127
    %p129 = scmp.eq.s32.totalorder %s19, 0
    %p130 = por %p128, %p129
    %s132 = sadd.s32 %s131, 1
    %p135 = scmp.eq.s32.totalorder %s13, 1
    %p136 = scmp.ne.s32.totalorder %s131, %s133
    %p137 = scmp.eq.s32.totalorder %s13, 0
    %p138 = por %p136, %p137
    %p139 = scmp.ne.s32.totalorder %s131, %s133
    %p140 = scmp.eq.s32.totalorder %s18, 1
    %p141 = por %p139, %p140
    %p142 = scmp.ne.s32.totalorder %s133, %s134
    %p143 = scmp.eq.s32.totalorder %s18, 0
    %p144 = por %p142, %p143
    %p145 = scmp.ne.s32.totalorder %s133, %s134
    %p146 = scmp.eq.s32.totalorder %s19, 1
    %p147 = por %p145, %p146
    %p149 = scmp.ne.s32.totalorder %s134, %s148
    %p150 = scmp.eq.s32.totalorder %s19, 0
    %p151 = por %p149, %p150
    %s153 = sadd.s32 %s152, 1
    %p156 = scmp.eq.s32.totalorder %s13, 1
    %p157 = scmp.ne.s32.totalorder %s152, %s154
    %p158 = scmp.eq.s32.totalorder %s13, 0
    %p159 = por %p157, %p158
    %p160 = scmp.ne.s32.totalorder %s152, %s154
    %p161 = scmp.eq.s32.totalorder %s18, 1
    %p162 = por %p160, %p161
    %p163 = scmp.ne.s32.totalorder %s154, %s155
    %p164 = scmp.eq.s32.totalorder %s18, 0
    %p165 = por %p163, %p164
    %p166 = scmp.ne.s32.totalorder %s154, %s155
    %p167 = scmp.eq.s32.totalorder %s19, 1
    %p168 = por %p166, %p167
    %p170 = scmp.ne.s32.totalorder %s155, %s169
    %p171 = scmp.eq.s32.totalorder %s19, 0
    %p172 = por %p170, %p171
    %s173 = ssub.s32 %s13, %s20
    %p174 = scmp.eq.s32.totalorder %s173, 0
    %s176 = sadd.s32 %s175, 1
    %s177 = scalar_select %p174, %s175, %s176
    %p180 = pneg %p174
    %p181 = scmp.eq.s32.totalorder %s13, 1
    %p182 = por %p180, %p181
    %p183 = scmp.ne.s32.totalorder %s175, %s178
    %p184 = scmp.eq.s32.totalorder %s13, 0
    %p185 = por %p183, %p184
    %p186 = scmp.ne.s32.totalorder %s175, %s178
    %p187 = scmp.eq.s32.totalorder %s18, 1
    %p188 = por %p186, %p187
    %p189 = scmp.ne.s32.totalorder %s178, %s179
    %p190 = scmp.eq.s32.totalorder %s18, 0
    %p191 = por %p189, %p190
    %p192 = scmp.ne.s32.totalorder %s178, %s179
    %p193 = scmp.eq.s32.totalorder %s19, 1
    %p194 = por %p192, %p193
    %p196 = scmp.ne.s32.totalorder %s179, %s195
    %p197 = scmp.eq.s32.totalorder %s19, 0
    %p198 = por %p196, %p197
    %p199 = scmp.le.s32.totalorder 1, %s13
    %p200 = scmp.lt.s32.totalorder %s13, 3
    %p201 = pnand %p199, %p200
    %p202 = pneg %p201
    // Predicated region
    $region9: #{batchformer_forward.1} parent=5 // pred_check
      _
    $region10: #{batchformer_forward.1} parent=5 // pred_check_branch
      %204 = sbr.rel (%p201) target = $region12
    $region11: #{batchformer_forward.1} parent=5 // pred_region
      %s205 = ssub.s32 %s13, 1
      // Predicated region
      $region13: #{batchformer_forward.1} parent=11 // pred_check
        %p206 = pneg %p60
      $region14: #{batchformer_forward.1} parent=11 // pred_check_branch
        %208 = sbr.rel (%p206) target = $region16
      $region15: #{batchformer_forward.1} parent=11 // pred_region
        _
      $region16: #{batchformer_forward.1} parent=11 // pred_fallthru
        _
      // Predicated region
      $region17: #{batchformer_forward.1} parent=11 // pred_check
        %p209 = pneg %p81
      $region18: #{batchformer_forward.1} parent=11 // pred_check_branch
        %211 = sbr.rel (%p209) target = $region20
      $region19: #{batchformer_forward.1} parent=11 // pred_region
        _
      $region20: #{batchformer_forward.1} parent=11 // pred_fallthru
        _
      // Predicated region
      $region21: #{batchformer_forward.1} parent=11 // pred_check
        %p212 = pneg %p102
      $region22: #{batchformer_forward.1} parent=11 // pred_check_branch
        %214 = sbr.rel (%p212) target = $region24
      $region23: #{batchformer_forward.1} parent=11 // pred_region
        _
      $region24: #{batchformer_forward.1} parent=11 // pred_fallthru
        _
      // Predicated region
      $region25: #{batchformer_forward.1} parent=11 // pred_check
        %p215 = pneg %p123
      $region26: #{batchformer_forward.1} parent=11 // pred_check_branch
        %217 = sbr.rel (%p215) target = $region28
      $region27: #{batchformer_forward.1} parent=11 // pred_region
        _
      $region28: #{batchformer_forward.1} parent=11 // pred_fallthru
        _
      // Predicated region
      $region29: #{batchformer_forward.1} parent=11 // pred_check
        %p218 = pneg %p144
      $region30: #{batchformer_forward.1} parent=11 // pred_check_branch
        %220 = sbr.rel (%p218) target = $region32
      $region31: #{batchformer_forward.1} parent=11 // pred_region
        _
      $region32: #{batchformer_forward.1} parent=11 // pred_fallthru
        _
      // Predicated region
      $region33: #{batchformer_forward.1} parent=11 // pred_check
        %p221 = pneg %p165
      $region34: #{batchformer_forward.1} parent=11 // pred_check_branch
        %223 = sbr.rel (%p221) target = $region36
      $region35: #{batchformer_forward.1} parent=11 // pred_region
        _
      $region36: #{batchformer_forward.1} parent=11 // pred_fallthru
        _
    $region12: #{batchformer_forward.1} parent=5 // pred_fallthru
      _
    %p224 = scmp.lt.s32.totalorder %s13, 2
    // Predicated region
    $region37: #{batchformer_forward.1} parent=5 // pred_check
      %p225 = pneg %p224
    $region38: #{batchformer_forward.1} parent=5 // pred_check_branch
      %227 = sbr.rel (%p225) target = $region40
    $region39: #{batchformer_forward.1} parent=5 // pred_region
      // Predicated region
      $region41: #{batchformer_forward.1} parent=39 // pred_check
        %p228 = pneg %p33
      $region42: #{batchformer_forward.1} parent=39 // pred_check_branch
        %230 = sbr.rel (%p228) target = $region44
      $region43: #{batchformer_forward.1} parent=39 // pred_region
        %p231 = scmp.lt.s32.totalorder %s13, 1
        %s232 = scalar_select %p231, %s13, 1
        %s233 = smul.addr %s232, 32
        %s234 = smul.addr %s233, 8
        %s235 = scalar_lea.vmem %s0, %s234
      $region44: #{batchformer_forward.1} parent=39 // pred_fallthru
        _
    $region40: #{batchformer_forward.1} parent=5 // pred_fallthru
      _
    %p236 = scmp.le.s32.totalorder 1, %s13
    %p237 = scmp.lt.s32.totalorder %s13, 3
    %p238 = pnand %p236, %p237
    %p239 = pneg %p238
    // Predicated region
    $region45: #{batchformer_forward.1} parent=5 // pred_check
      _
    $region46: #{batchformer_forward.1} parent=5 // pred_check_branch
      %241 = sbr.rel (%p238) target = $region48
    $region47: #{batchformer_forward.1} parent=5 // pred_region
      %s242 = ssub.s32 %s13, 1
      %p243 = scmp.lt.s32.totalorder %s18, 1
      %s244 = scalar_select %p243, %s18, 1
      %s245 = smul.addr %s244, 32
      %s246 = smul.addr %s245, 8
      %s247 = scalar_lea.vmem %s0, %s246
      %p248 = pneg %p39
      %p249 = pneg %p36
      %p250 = pneg %p60
      %p251 = pneg %p57
      %p252 = pneg %p81
      %p253 = pneg %p78
      %p254 = pneg %p102
      %p255 = pneg %p99
      %p256 = pneg %p123
      %p257 = pneg %p120
      %p258 = pneg %p144
      %p259 = pneg %p141
      %p260 = pneg %p165
      %p261 = pneg %p162
      %p262 = pneg %p191
      %p263 = pneg %p188
      %p264 = scmp.lt.s32.totalorder %s18, 1
      %s265 = scalar_select %p264, %s18, 1
      %s266 = smul.addr %s265, 32
      %s267 = smul.addr %s266, 8
      %s268 = scalar_lea.vmem %s7, %s267
      %p269 = scmp.lt.s32.totalorder %s18, 1
      %s270 = scalar_select %p269, %s18, 1
      %s271 = smul.addr %s270, 32
      %s272 = smul.addr %s271, 8
      %s273 = scalar_lea.vmem %s0, %s272
      %p274 = scmp.lt.s32.totalorder %s18, 1
      %s275 = scalar_select %p274, %s18, 1
      %s276 = smul.addr %s275, 32
      %s277 = smul.addr %s276, 8
      %s278 = scalar_lea.vmem %s7, %s277
      %v280 = vld [vmem:[%s273] sm:$0xff]
      %v281 = vld [vmem:[%s273 + $0x8] sm:$0xff]
      %v282 = vld [vmem:[%s273 + $0x10] sm:$0xff]
      %v283 = vld [vmem:[%s273 + $0x18] sm:$0xff]
      %v284 = vld [vmem:[%s273 + $0x20] sm:$0xff]
      %v285 = vld [vmem:[%s273 + $0x28] sm:$0xff]
      %v286 = vld [vmem:[%s273 + $0x30] sm:$0xff]
      %v287 = vld [vmem:[%s273 + $0x38] sm:$0xff]
      %v288 = vld [vmem:[%s273 + $0x40] sm:$0xff]
      %v289 = vld [vmem:[%s273 + $0x48] sm:$0xff]
      %v290 = vld [vmem:[%s273 + $0x50] sm:$0xff]
      %v291 = vld [vmem:[%s273 + $0x58] sm:$0xff]
      %v292 = vld [vmem:[%s273 + $0x60] sm:$0xff]
      %v293 = vld [vmem:[%s273 + $0x68] sm:$0xff]
      %v294 = vld [vmem:[%s273 + $0x70] sm:$0xff]
      %v295 = vld [vmem:[%s273 + $0x78] sm:$0xff]
      %v296 = vld [vmem:[%s273 + $0x80] sm:$0xff]
      %v297 = vld [vmem:[%s273 + $0x88] sm:$0xff]
      %v298 = vld [vmem:[%s273 + $0x90] sm:$0xff]
      %v299 = vld [vmem:[%s273 + $0x98] sm:$0xff]
      %v300 = vld [vmem:[%s273 + $0xa0] sm:$0xff]
      %v301 = vld [vmem:[%s273 + $0xa8] sm:$0xff]
      %v302 = vld [vmem:[%s273 + $0xb0] sm:$0xff]
      %v303 = vld [vmem:[%s273 + $0xb8] sm:$0xff]
      %v304 = vld [vmem:[%s273 + $0xc0] sm:$0xff]
      %v305 = vld [vmem:[%s273 + $0xc8] sm:$0xff]
      %v306 = vld [vmem:[%s273 + $0xd0] sm:$0xff]
      %v307 = vld [vmem:[%s273 + $0xd8] sm:$0xff]
      %v308 = vld [vmem:[%s273 + $0xe0] sm:$0xff]
      %v309 = vld [vmem:[%s273 + $0xe8] sm:$0xff]
      %v310 = vld [vmem:[%s273 + $0xf0] sm:$0xff]
      %v311 = vld [vmem:[%s273 + $0xf8] sm:$0xff]
      %312 = vxpose.xlu0.b32.start [1/16] %v280, 128
      %313 = vxpose.xlu0.b32.cont [2/16] %v282, 128
      %314 = vxpose.xlu0.b32.cont [3/16] %v284, 128
      %315 = vxpose.xlu0.b32.cont [4/16] %v286, 128
      %316 = vxpose.xlu0.b32.cont [5/16] %v288, 128
      %317 = vxpose.xlu0.b32.cont [6/16] %v290, 128
      %318 = vxpose.xlu0.b32.cont [7/16] %v292, 128
      %319 = vxpose.xlu0.b32.cont [8/16] %v294, 128
      %320 = vxpose.xlu0.b32.cont [9/16] %v296, 128
      %321 = vxpose.xlu0.b32.cont [10/16] %v298, 128
      %322 = vxpose.xlu0.b32.cont [11/16] %v300, 128
      %323 = vxpose.xlu0.b32.cont [12/16] %v302, 128
      %324 = vxpose.xlu0.b32.cont [13/16] %v304, 128
      %325 = vxpose.xlu0.b32.cont [14/16] %v306, 128
      %326 = vxpose.xlu0.b32.cont [15/16] %v308, 128
      %327 = vxpose.xlu0.b32.end [16/16] %v310, 128
      %v328 = vpop.trf.xlu0
      %v329 = vpop.trf.xlu0
      %v330 = vpop.trf.xlu0
      %v331 = vpop.trf.xlu0
      %v332 = vpop.trf.xlu0
      %v333 = vpop.trf.xlu0
      %v334 = vpop.trf.xlu0
      %v335 = vpop.trf.xlu0
      %v336 = vpop.trf.xlu0
      %v337 = vpop.trf.xlu0
      %v338 = vpop.trf.xlu0
      %v339 = vpop.trf.xlu0
      %v340 = vpop.trf.xlu0
      %v341 = vpop.trf.xlu0
      %v342 = vpop.trf.xlu0
      %v343 = vpop.trf.xlu0
      %344 = vxpose.xlu0.b32.start [1/16] %v281, 128
      %345 = vxpose.xlu0.b32.cont [2/16] %v283, 128
      %346 = vxpose.xlu0.b32.cont [3/16] %v285, 128
      %347 = vxpose.xlu0.b32.cont [4/16] %v287, 128
      %348 = vxpose.xlu0.b32.cont [5/16] %v289, 128
      %349 = vxpose.xlu0.b32.cont [6/16] %v291, 128
      %350 = vxpose.xlu0.b32.cont [7/16] %v293, 128
      %351 = vxpose.xlu0.b32.cont [8/16] %v295, 128
      %352 = vxpose.xlu0.b32.cont [9/16] %v297, 128
      %353 = vxpose.xlu0.b32.cont [10/16] %v299, 128
      %354 = vxpose.xlu0.b32.cont [11/16] %v301, 128
      %355 = vxpose.xlu0.b32.cont [12/16] %v303, 128
      %356 = vxpose.xlu0.b32.cont [13/16] %v305, 128
      %357 = vxpose.xlu0.b32.cont [14/16] %v307, 128
      %358 = vxpose.xlu0.b32.cont [15/16] %v309, 128
      %359 = vxpose.xlu0.b32.end [16/16] %v311, 128
      %v360 = vpop.trf.xlu0
      %v361 = vpop.trf.xlu0
      %v362 = vpop.trf.xlu0
      %v363 = vpop.trf.xlu0
      %v364 = vpop.trf.xlu0
      %v365 = vpop.trf.xlu0
      %v366 = vpop.trf.xlu0
      %v367 = vpop.trf.xlu0
      %v368 = vpop.trf.xlu0
      %v369 = vpop.trf.xlu0
      %v370 = vpop.trf.xlu0
      %v371 = vpop.trf.xlu0
      %v372 = vpop.trf.xlu0
      %v373 = vpop.trf.xlu0
      %v374 = vpop.trf.xlu0
      %v375 = vpop.trf.xlu0
      %v376 = vpack.c.bf16 %v329, %v328
      %v377 = vpack.c.bf16 %v331, %v330
      %v378 = vpack.c.bf16 %v333, %v332
      %v379 = vpack.c.bf16 %v335, %v334
      %v380 = vpack.c.bf16 %v337, %v336
      %v381 = vpack.c.bf16 %v339, %v338
      %v382 = vpack.c.bf16 %v341, %v340
      %v383 = vpack.c.bf16 %v343, %v342
      %v384 = vpack.c.bf16 %v361, %v360
      %v385 = vpack.c.bf16 %v363, %v362
      %v386 = vpack.c.bf16 %v365, %v364
      %v387 = vpack.c.bf16 %v367, %v366
      %v388 = vpack.c.bf16 %v369, %v368
      %v389 = vpack.c.bf16 %v371, %v370
      %v390 = vpack.c.bf16 %v373, %v372
      %v391 = vpack.c.bf16 %v375, %v374
      %v392 = vld [vmem:[%s1] sm:$0xff]
      %v393 = vld [vmem:[%s1 + $0x8] sm:$0xf]
      %v394 = vld [vmem:[%s1 + $0xc] sm:$0xff]
      %v395 = vld [vmem:[%s1 + $0x14] sm:$0xf]
      %v396 = vld [vmem:[%s1 + $0x18] sm:$0xff]
      %v397 = vld [vmem:[%s1 + $0x20] sm:$0xf]
      %v398 = vld [vmem:[%s1 + $0x24] sm:$0xff]
      %v399 = vld [vmem:[%s1 + $0x2c] sm:$0xf]
      %v400 = vld [vmem:[%s1 + $0x30] sm:$0xff]
      %v401 = vld [vmem:[%s1 + $0x38] sm:$0xf]
      %v402 = vld [vmem:[%s1 + $0x3c] sm:$0xff]
      %v403 = vld [vmem:[%s1 + $0x44] sm:$0xf]
      %v404 = vld [vmem:[%s1 + $0x48] sm:$0xff]
      %v405 = vld [vmem:[%s1 + $0x50] sm:$0xf]
      %v406 = vld [vmem:[%s1 + $0x54] sm:$0xff]
      %v407 = vld [vmem:[%s1 + $0x5c] sm:$0xf]
      %v408 = vld [vmem:[%s1 + $0x60] sm:$0xff]
      %v409 = vld [vmem:[%s1 + $0x68] sm:$0xf]
      %v410 = vld [vmem:[%s1 + $0x6c] sm:$0xff]
      %v411 = vld [vmem:[%s1 + $0x74] sm:$0xf]
      %v412 = vld [vmem:[%s1 + $0x78] sm:$0xff]
      %v413 = vld [vmem:[%s1 + $0x80] sm:$0xf]
      %v414 = vld [vmem:[%s1 + $0x84] sm:$0xff]
      %v415 = vld [vmem:[%s1 + $0x8c] sm:$0xf]
      %v416 = vld [vmem:[%s1 + $0x90] sm:$0xff]
      %v417 = vld [vmem:[%s1 + $0x98] sm:$0xf]
      %v418 = vld [vmem:[%s1 + $0x9c] sm:$0xff]
      %v419 = vld [vmem:[%s1 + $0xa4] sm:$0xf]
      %v420 = vld [vmem:[%s1 + $0xa8] sm:$0xff]
      %v421 = vld [vmem:[%s1 + $0xb0] sm:$0xf]
      %v422 = vld [vmem:[%s1 + $0xb4] sm:$0xff]
      %v423 = vld [vmem:[%s1 + $0xbc] sm:$0xf]
      %v424 = vld [vmem:[%s2] sm:$0x7]
      %v426 = vperm.slane %v424, 0
      %v427 = vperm.slane %v424, 1
      %v428 = vperm.slane %v424, 2
      %v464 = vunpack.c.l.b16 %v392
      %v465 = vunpack.c.h.b16 %v392
      %v466 = vunpack.c.l.b16 %v393
      %v467 = vunpack.c.l.b16 %v394
      %v468 = vunpack.c.h.b16 %v394
      %v469 = vunpack.c.l.b16 %v395
      %v470 = vunpack.c.l.b16 %v396
      %v471 = vunpack.c.h.b16 %v396
      %v472 = vunpack.c.l.b16 %v397
      %v473 = vunpack.c.l.b16 %v398
      %v474 = vunpack.c.h.b16 %v398
      %v475 = vunpack.c.l.b16 %v399
      %v476 = vunpack.c.l.b16 %v400
      %v477 = vunpack.c.h.b16 %v400
      %v478 = vunpack.c.l.b16 %v401
      %v479 = vunpack.c.l.b16 %v402
      %v480 = vunpack.c.h.b16 %v402
      %v481 = vunpack.c.l.b16 %v403
      %v482 = vunpack.c.l.b16 %v404
      %v483 = vunpack.c.h.b16 %v404
      %v484 = vunpack.c.l.b16 %v405
      %v485 = vunpack.c.l.b16 %v406
      %v486 = vunpack.c.h.b16 %v406
      %v487 = vunpack.c.l.b16 %v407
      %v488 = vunpack.c.l.b16 %v408
      %v489 = vunpack.c.h.b16 %v408
      %v490 = vunpack.c.l.b16 %v409
      %v491 = vunpack.c.l.b16 %v410
      %v492 = vunpack.c.h.b16 %v410
      %v493 = vunpack.c.l.b16 %v411
      %v494 = vunpack.c.l.b16 %v412
      %v495 = vunpack.c.h.b16 %v412
      %v496 = vunpack.c.l.b16 %v413
      %v497 = vunpack.c.l.b16 %v414
      %v498 = vunpack.c.h.b16 %v414
      %v499 = vunpack.c.l.b16 %v415
      %v500 = vunpack.c.l.b16 %v416
      %v501 = vunpack.c.h.b16 %v416
      %v502 = vunpack.c.l.b16 %v417
      %v503 = vunpack.c.l.b16 %v418
      %v504 = vunpack.c.h.b16 %v418
      %v505 = vunpack.c.l.b16 %v419
      %v506 = vunpack.c.l.b16 %v420
      %v507 = vunpack.c.h.b16 %v420
      %v508 = vunpack.c.l.b16 %v421
      %v509 = vunpack.c.l.b16 %v422
      %v510 = vunpack.c.h.b16 %v422
      %v511 = vunpack.c.l.b16 %v423
      %v512 = vpack.c.b16 %v467, %v464
      %v513 = vpack.c.b16 %v468, %v465
      %v514 = vpack.c.b16 %v469, %v466
      %v515 = vpack.c.b16 %v473, %v470
      %v516 = vpack.c.b16 %v474, %v471
      %v517 = vpack.c.b16 %v475, %v472
      %v518 = vpack.c.b16 %v479, %v476
      %v519 = vpack.c.b16 %v480, %v477
      %v520 = vpack.c.b16 %v481, %v478
      %v521 = vpack.c.b16 %v485, %v482
      %v522 = vpack.c.b16 %v486, %v483
      %v523 = vpack.c.b16 %v487, %v484
      %v524 = vpack.c.b16 %v491, %v488
      %v525 = vpack.c.b16 %v492, %v489
      %v526 = vpack.c.b16 %v493, %v490
      %v527 = vpack.c.b16 %v497, %v494
      %v528 = vpack.c.b16 %v498, %v495
      %v529 = vpack.c.b16 %v499, %v496
      %v530 = vpack.c.b16 %v503, %v500
      %v531 = vpack.c.b16 %v504, %v501
      %v532 = vpack.c.b16 %v505, %v502
      %v533 = vpack.c.b16 %v509, %v506
      %v534 = vpack.c.b16 %v510, %v507
      %v535 = vpack.c.b16 %v511, %v508
      %560 = vmatpush.bf16.msra.mxu0 %v533
      %561 = vmatpush.bf16.msra.mxu0 %v530
      %562 = vmatpush.bf16.msra.mxu0 %v527
      %563 = vmatpush.bf16.msra.mxu0 %v524
      %564 = vmatpush.bf16.msra.mxu0 %v521
      %565 = vmatpush.bf16.msra.mxu0 %v518
      %566 = vmatpush.bf16.msra.mxu0 %v515
      %567 = vmatpush.bf16.msra.mxu0 %v512
      %568 = vmatmul.bf16.gmra.mxu0 %v376
      %v569 = vpop.f32.mrf.mxu0
      %v570 = vadd.f32 %v426, %v569
      %v571 = vpop.f32.mrf.mxu0
      %v572 = vadd.f32 %v426, %v571
      %573 = vmatmul.bf16.gmra.mxu0 %v377
      %v574 = vpop.f32.mrf.mxu0
      %v575 = vadd.f32 %v426, %v574
      %v576 = vpop.f32.mrf.mxu0
      %v577 = vadd.f32 %v426, %v576
      %578 = vmatmul.bf16.gmra.mxu0 %v378
      %v579 = vpop.f32.mrf.mxu0
      %v580 = vadd.f32 %v426, %v579
      %v581 = vpop.f32.mrf.mxu0
      %v582 = vadd.f32 %v426, %v581
      %583 = vmatmul.bf16.gmra.mxu0 %v379
      %v584 = vpop.f32.mrf.mxu0
      %v585 = vadd.f32 %v426, %v584
      %v586 = vpop.f32.mrf.mxu0
      %v587 = vadd.f32 %v426, %v586
      %588 = vmatmul.bf16.gmra.mxu0 %v380
      %v589 = vpop.f32.mrf.mxu0
      %v590 = vadd.f32 %v426, %v589
      %v591 = vpop.f32.mrf.mxu0
      %v592 = vadd.f32 %v426, %v591
      %593 = vmatmul.bf16.gmra.mxu0 %v381
      %v594 = vpop.f32.mrf.mxu0
      %v595 = vadd.f32 %v426, %v594
      %v596 = vpop.f32.mrf.mxu0
      %v597 = vadd.f32 %v426, %v596
      %598 = vmatmul.bf16.gmra.mxu0 %v382
      %v599 = vpop.f32.mrf.mxu0
      %v600 = vadd.f32 %v426, %v599
      %v601 = vpop.f32.mrf.mxu0
      %v602 = vadd.f32 %v426, %v601
      %603 = vmatmul.bf16.gmra.mxu0 %v383
      %v604 = vpop.f32.mrf.mxu0
      %v605 = vadd.f32 %v426, %v604
      %v606 = vpop.f32.mrf.mxu0
      %v607 = vadd.f32 %v426, %v606
      %608 = vmatmul.bf16.gmra.mxu0 %v384
      %v609 = vpop.f32.mrf.mxu0
      %v610 = vadd.f32 %v426, %v609
      %v611 = vpop.f32.mrf.mxu0
      %v612 = vadd.f32 %v426, %v611
      %613 = vmatmul.bf16.gmra.mxu0 %v385
      %v614 = vpop.f32.mrf.mxu0
      %v615 = vadd.f32 %v426, %v614
      %v616 = vpop.f32.mrf.mxu0
      %v617 = vadd.f32 %v426, %v616
      %618 = vmatmul.bf16.gmra.mxu0 %v386
      %v619 = vpop.f32.mrf.mxu0
      %v620 = vadd.f32 %v426, %v619
      %v621 = vpop.f32.mrf.mxu0
      %v622 = vadd.f32 %v426, %v621
      %623 = vmatmul.bf16.gmra.mxu0 %v387
      %v624 = vpop.f32.mrf.mxu0
      %v625 = vadd.f32 %v426, %v624
      %v626 = vpop.f32.mrf.mxu0
      %v627 = vadd.f32 %v426, %v626
      %628 = vmatmul.bf16.gmra.mxu0 %v388
      %v629 = vpop.f32.mrf.mxu0
      %v630 = vadd.f32 %v426, %v629
      %v631 = vpop.f32.mrf.mxu0
      %v632 = vadd.f32 %v426, %v631
      %633 = vmatmul.bf16.gmra.mxu0 %v389
      %v634 = vpop.f32.mrf.mxu0
      %v635 = vadd.f32 %v426, %v634
      %v636 = vpop.f32.mrf.mxu0
      %v637 = vadd.f32 %v426, %v636
      %638 = vmatmul.bf16.gmra.mxu0 %v390
      %v639 = vpop.f32.mrf.mxu0
      %v640 = vadd.f32 %v426, %v639
      %v641 = vpop.f32.mrf.mxu0
      %v642 = vadd.f32 %v426, %v641
      %643 = vmatmul.bf16.gmra.mxu0 %v391
      %v644 = vpop.f32.mrf.mxu0
      %v645 = vadd.f32 %v426, %v644
      %v646 = vpop.f32.mrf.mxu0
      %v647 = vadd.f32 %v426, %v646
      %648 = vdwg.mxu0
      %649 = vmatpush.bf16.msra.mxu0 %v534
      %650 = vmatpush.bf16.msra.mxu0 %v531
      %651 = vmatpush.bf16.msra.mxu0 %v528
      %652 = vmatpush.bf16.msra.mxu0 %v525
      %653 = vmatpush.bf16.msra.mxu0 %v522
      %654 = vmatpush.bf16.msra.mxu0 %v519
      %655 = vmatpush.bf16.msra.mxu0 %v516
      %656 = vmatpush.bf16.msra.mxu0 %v513
      %657 = vmatmul.bf16.gmra.mxu0 %v376
      %v658 = vpop.f32.mrf.mxu0
      %v659 = vadd.f32 %v427, %v658
      %v660 = vpop.f32.mrf.mxu0
      %v661 = vadd.f32 %v427, %v660
      %662 = vmatmul.bf16.gmra.mxu0 %v377
      %v663 = vpop.f32.mrf.mxu0
      %v664 = vadd.f32 %v427, %v663
      %v665 = vpop.f32.mrf.mxu0
      %v666 = vadd.f32 %v427, %v665
      %667 = vmatmul.bf16.gmra.mxu0 %v378
      %v668 = vpop.f32.mrf.mxu0
      %v669 = vadd.f32 %v427, %v668
      %v670 = vpop.f32.mrf.mxu0
      %v671 = vadd.f32 %v427, %v670
      %672 = vmatmul.bf16.gmra.mxu0 %v379
      %v673 = vpop.f32.mrf.mxu0
      %v674 = vadd.f32 %v427, %v673
      %v675 = vpop.f32.mrf.mxu0
      %v676 = vadd.f32 %v427, %v675
      %677 = vmatmul.bf16.gmra.mxu0 %v380
      %v678 = vpop.f32.mrf.mxu0
      %v679 = vadd.f32 %v427, %v678
      %v680 = vpop.f32.mrf.mxu0
      %v681 = vadd.f32 %v427, %v680
      %682 = vmatmul.bf16.gmra.mxu0 %v381
      %v683 = vpop.f32.mrf.mxu0
      %v684 = vadd.f32 %v427, %v683
      %v685 = vpop.f32.mrf.mxu0
      %v686 = vadd.f32 %v427, %v685
      %687 = vmatmul.bf16.gmra.mxu0 %v382
      %v688 = vpop.f32.mrf.mxu0
      %v689 = vadd.f32 %v427, %v688
      %v690 = vpop.f32.mrf.mxu0
      %v691 = vadd.f32 %v427, %v690
      %692 = vmatmul.bf16.gmra.mxu0 %v383
      %v693 = vpop.f32.mrf.mxu0
      %v694 = vadd.f32 %v427, %v693
      %v695 = vpop.f32.mrf.mxu0
      %v696 = vadd.f32 %v427, %v695
      %697 = vmatmul.bf16.gmra.mxu0 %v384
      %v698 = vpop.f32.mrf.mxu0
      %v699 = vadd.f32 %v427, %v698
      %v700 = vpop.f32.mrf.mxu0
      %v701 = vadd.f32 %v427, %v700
      %702 = vmatmul.bf16.gmra.mxu0 %v385
      %v703 = vpop.f32.mrf.mxu0
      %v704 = vadd.f32 %v427, %v703
      %v705 = vpop.f32.mrf.mxu0
      %v706 = vadd.f32 %v427, %v705
      %707 = vmatmul.bf16.gmra.mxu0 %v386
      %v708 = vpop.f32.mrf.mxu0
      %v709 = vadd.f32 %v427, %v708
      %v710 = vpop.f32.mrf.mxu0
      %v711 = vadd.f32 %v427, %v710
      %712 = vmatmul.bf16.gmra.mxu0 %v387
      %v713 = vpop.f32.mrf.mxu0
      %v714 = vadd.f32 %v427, %v713
      %v715 = vpop.f32.mrf.mxu0
      %v716 = vadd.f32 %v427, %v715
      %717 = vmatmul.bf16.gmra.mxu0 %v388
      %v718 = vpop.f32.mrf.mxu0
      %v719 = vadd.f32 %v427, %v718
      %v720 = vpop.f32.mrf.mxu0
      %v721 = vadd.f32 %v427, %v720
      %722 = vmatmul.bf16.gmra.mxu0 %v389
      %v723 = vpop.f32.mrf.mxu0
      %v724 = vadd.f32 %v427, %v723
      %v725 = vpop.f32.mrf.mxu0
      %v726 = vadd.f32 %v427, %v725
      %727 = vmatmul.bf16.gmra.mxu0 %v390
      %v728 = vpop.f32.mrf.mxu0
      %v729 = vadd.f32 %v427, %v728
      %v730 = vpop.f32.mrf.mxu0
      %v731 = vadd.f32 %v427, %v730
      %732 = vmatmul.bf16.gmra.mxu0 %v391
      %v733 = vpop.f32.mrf.mxu0
      %v734 = vadd.f32 %v427, %v733
      %v735 = vpop.f32.mrf.mxu0
      %v736 = vadd.f32 %v427, %v735
      %737 = vdwg.mxu0
      %738 = vmatpush.bf16.msra.mxu0 %v535
      %739 = vmatpush.bf16.msra.mxu0 %v532
      %740 = vmatpush.bf16.msra.mxu0 %v529
      %741 = vmatpush.bf16.msra.mxu0 %v526
      %742 = vmatpush.bf16.msra.mxu0 %v523
      %743 = vmatpush.bf16.msra.mxu0 %v520
      %744 = vmatpush.bf16.msra.mxu0 %v517
      %745 = vmatpush.bf16.msra.mxu0 %v514
      %746 = vmatmul.bf16.gmra.mxu0 %v376
      %v747 = vpop.f32.mrf.mxu0
      %v748 = vadd.f32 %v428, %v747
      %v749 = vpop.f32.mrf.mxu0
      %v750 = vadd.f32 %v428, %v749
      %751 = vmatmul.bf16.gmra.mxu0 %v377
      %v752 = vpop.f32.mrf.mxu0
      %v753 = vadd.f32 %v428, %v752
      %v754 = vpop.f32.mrf.mxu0
      %v755 = vadd.f32 %v428, %v754
      %756 = vmatmul.bf16.gmra.mxu0 %v378
      %v757 = vpop.f32.mrf.mxu0
      %v758 = vadd.f32 %v428, %v757
      %v759 = vpop.f32.mrf.mxu0
      %v760 = vadd.f32 %v428, %v759
      %761 = vmatmul.bf16.gmra.mxu0 %v379
      %v762 = vpop.f32.mrf.mxu0
      %v763 = vadd.f32 %v428, %v762
      %v764 = vpop.f32.mrf.mxu0
      %v765 = vadd.f32 %v428, %v764
      %766 = vmatmul.bf16.gmra.mxu0 %v380
      %v767 = vpop.f32.mrf.mxu0
      %v768 = vadd.f32 %v428, %v767
      %v769 = vpop.f32.mrf.mxu0
      %v770 = vadd.f32 %v428, %v769
      %771 = vmatmul.bf16.gmra.mxu0 %v381
      %v772 = vpop.f32.mrf.mxu0
      %v773 = vadd.f32 %v428, %v772
      %v774 = vpop.f32.mrf.mxu0
      %v775 = vadd.f32 %v428, %v774
      %776 = vmatmul.bf16.gmra.mxu0 %v382
      %v777 = vpop.f32.mrf.mxu0
      %v778 = vadd.f32 %v428, %v777
      %v779 = vpop.f32.mrf.mxu0
      %v780 = vadd.f32 %v428, %v779
      %781 = vmatmul.bf16.gmra.mxu0 %v383
      %v782 = vpop.f32.mrf.mxu0
      %v783 = vadd.f32 %v428, %v782
      %v784 = vpop.f32.mrf.mxu0
      %v785 = vadd.f32 %v428, %v784
      %786 = vmatmul.bf16.gmra.mxu0 %v384
      %v787 = vpop.f32.mrf.mxu0
      %v788 = vadd.f32 %v428, %v787
      %v789 = vpop.f32.mrf.mxu0
      %v790 = vadd.f32 %v428, %v789
      %791 = vmatmul.bf16.gmra.mxu0 %v385
      %v792 = vpop.f32.mrf.mxu0
      %v793 = vadd.f32 %v428, %v792
      %v794 = vpop.f32.mrf.mxu0
      %v795 = vadd.f32 %v428, %v794
      %796 = vmatmul.bf16.gmra.mxu0 %v386
      %v797 = vpop.f32.mrf.mxu0
      %v798 = vadd.f32 %v428, %v797
      %v799 = vpop.f32.mrf.mxu0
      %v800 = vadd.f32 %v428, %v799
      %801 = vmatmul.bf16.gmra.mxu0 %v387
      %v802 = vpop.f32.mrf.mxu0
      %v803 = vadd.f32 %v428, %v802
      %v804 = vpop.f32.mrf.mxu0
      %v805 = vadd.f32 %v428, %v804
      %806 = vmatmul.bf16.gmra.mxu0 %v388
      %v807 = vpop.f32.mrf.mxu0
      %v808 = vadd.f32 %v428, %v807
      %v809 = vpop.f32.mrf.mxu0
      %v810 = vadd.f32 %v428, %v809
      %811 = vmatmul.bf16.gmra.mxu0 %v389
      %v812 = vpop.f32.mrf.mxu0
      %v813 = vadd.f32 %v428, %v812
      %v814 = vpop.f32.mrf.mxu0
      %v815 = vadd.f32 %v428, %v814
      %816 = vmatmul.bf16.gmra.mxu0 %v390
      %v817 = vpop.f32.mrf.mxu0
      %v818 = vadd.f32 %v428, %v817
      %v819 = vpop.f32.mrf.mxu0
      %v820 = vadd.f32 %v428, %v819
      %821 = vmatmul.bf16.gmra.mxu0 %v391
      %v822 = vpop.f32.mrf.mxu0
      %v823 = vadd.f32 %v428, %v822
      %v824 = vpop.f32.mrf.mxu0
      %v825 = vadd.f32 %v428, %v824
      %826 = vdwg.mxu0
      %v827 = vpack.c.bf16 %v659, %v659
      %v828 = vpack.c.bf16 %v661, %v661
      %v829 = vpack.c.bf16 %v664, %v664
      %v830 = vpack.c.bf16 %v666, %v666
      %v831 = vpack.c.bf16 %v669, %v669
      %v832 = vpack.c.bf16 %v671, %v671
      %v833 = vpack.c.bf16 %v674, %v674
      %v834 = vpack.c.bf16 %v676, %v676
      %v835 = vpack.c.bf16 %v679, %v679
      %v836 = vpack.c.bf16 %v681, %v681
      %v837 = vpack.c.bf16 %v684, %v684
      %v838 = vpack.c.bf16 %v686, %v686
      %v839 = vpack.c.bf16 %v689, %v689
      %v840 = vpack.c.bf16 %v691, %v691
      %v841 = vpack.c.bf16 %v694, %v694
      %v842 = vpack.c.bf16 %v696, %v696
      %v843 = vpack.c.bf16 %v699, %v699
      %v844 = vpack.c.bf16 %v701, %v701
      %v845 = vpack.c.bf16 %v704, %v704
      %v846 = vpack.c.bf16 %v706, %v706
      %v847 = vpack.c.bf16 %v709, %v709
      %v848 = vpack.c.bf16 %v711, %v711
      %v849 = vpack.c.bf16 %v714, %v714
      %v850 = vpack.c.bf16 %v716, %v716
      %v851 = vpack.c.bf16 %v719, %v719
      %v852 = vpack.c.bf16 %v721, %v721
      %v853 = vpack.c.bf16 %v724, %v724
      %v854 = vpack.c.bf16 %v726, %v726
      %v855 = vpack.c.bf16 %v729, %v729
      %v856 = vpack.c.bf16 %v731, %v731
      %v857 = vpack.c.bf16 %v734, %v734
      %v858 = vpack.c.bf16 %v736, %v736
      %v859 = vpack.c.bf16 %v748, %v748
      %v860 = vpack.c.bf16 %v750, %v750
      %v861 = vpack.c.bf16 %v753, %v753
      %v862 = vpack.c.bf16 %v755, %v755
      %v863 = vpack.c.bf16 %v758, %v758
      %v864 = vpack.c.bf16 %v760, %v760
      %v865 = vpack.c.bf16 %v763, %v763
      %v866 = vpack.c.bf16 %v765, %v765
      %v867 = vpack.c.bf16 %v768, %v768
      %v868 = vpack.c.bf16 %v770, %v770
      %v869 = vpack.c.bf16 %v773, %v773
      %v870 = vpack.c.bf16 %v775, %v775
      %v871 = vpack.c.bf16 %v778, %v778
      %v872 = vpack.c.bf16 %v780, %v780
      %v873 = vpack.c.bf16 %v783, %v783
      %v874 = vpack.c.bf16 %v785, %v785
      %v875 = vpack.c.bf16 %v788, %v788
      %v876 = vpack.c.bf16 %v790, %v790
      %v877 = vpack.c.bf16 %v793, %v793
      %v878 = vpack.c.bf16 %v795, %v795
      %v879 = vpack.c.bf16 %v798, %v798
      %v880 = vpack.c.bf16 %v800, %v800
      %v881 = vpack.c.bf16 %v803, %v803
      %v882 = vpack.c.bf16 %v805, %v805
      %v883 = vpack.c.bf16 %v808, %v808
      %v884 = vpack.c.bf16 %v810, %v810
      %v885 = vpack.c.bf16 %v813, %v813
      %v886 = vpack.c.bf16 %v815, %v815
      %v887 = vpack.c.bf16 %v818, %v818
      %v888 = vpack.c.bf16 %v820, %v820
      %v889 = vpack.c.bf16 %v823, %v823
      %v890 = vpack.c.bf16 %v825, %v825
      %v891 = vmul.f32 %v570, 0.17677669
      %v892 = vmul.f32 %v572, 0.17677669
      %v893 = vmul.f32 %v575, 0.17677669
      %v894 = vmul.f32 %v577, 0.17677669
      %v895 = vmul.f32 %v580, 0.17677669
      %v896 = vmul.f32 %v582, 0.17677669
      %v897 = vmul.f32 %v585, 0.17677669
      %v898 = vmul.f32 %v587, 0.17677669
      %v899 = vmul.f32 %v590, 0.17677669
      %v900 = vmul.f32 %v592, 0.17677669
      %v901 = vmul.f32 %v595, 0.17677669
      %v902 = vmul.f32 %v597, 0.17677669
      %v903 = vmul.f32 %v600, 0.17677669
      %v904 = vmul.f32 %v602, 0.17677669
      %v905 = vmul.f32 %v605, 0.17677669
      %v906 = vmul.f32 %v607, 0.17677669
      %v907 = vmul.f32 %v610, 0.17677669
      %v908 = vmul.f32 %v612, 0.17677669
      %v909 = vmul.f32 %v615, 0.17677669
      %v910 = vmul.f32 %v617, 0.17677669
      %v911 = vmul.f32 %v620, 0.17677669
      %v912 = vmul.f32 %v622, 0.17677669
      %v913 = vmul.f32 %v625, 0.17677669
      %v914 = vmul.f32 %v627, 0.17677669
      %v915 = vmul.f32 %v630, 0.17677669
      %v916 = vmul.f32 %v632, 0.17677669
      %v917 = vmul.f32 %v635, 0.17677669
      %v918 = vmul.f32 %v637, 0.17677669
      %v919 = vmul.f32 %v640, 0.17677669
      %v920 = vmul.f32 %v642, 0.17677669
      %v921 = vmul.f32 %v645, 0.17677669
      %v922 = vmul.f32 %v647, 0.17677669
      %v923 = vpack.c.bf16 %v892, %v891
      %v924 = vpack.c.bf16 %v894, %v893
      %v925 = vpack.c.bf16 %v896, %v895
      %v926 = vpack.c.bf16 %v898, %v897
      %v927 = vpack.c.bf16 %v900, %v899
      %v928 = vpack.c.bf16 %v902, %v901
      %v929 = vpack.c.bf16 %v904, %v903
      %v930 = vpack.c.bf16 %v906, %v905
      %v931 = vpack.c.bf16 %v908, %v907
      %v932 = vpack.c.bf16 %v910, %v909
      %v933 = vpack.c.bf16 %v912, %v911
      %v934 = vpack.c.bf16 %v914, %v913
      %v935 = vpack.c.bf16 %v916, %v915
      %v936 = vpack.c.bf16 %v918, %v917
      %v937 = vpack.c.bf16 %v920, %v919
      %v938 = vpack.c.bf16 %v922, %v921
      %v971 = vunpack.c.l.b16 %v827
      %v972 = vunpack.c.l.b16 %v828
      %v973 = vunpack.c.l.b16 %v829
      %v974 = vunpack.c.l.b16 %v830
      %v975 = vunpack.c.l.b16 %v831
      %v976 = vunpack.c.l.b16 %v832
      %v977 = vunpack.c.l.b16 %v833
      %v978 = vunpack.c.l.b16 %v834
      %v979 = vunpack.c.l.b16 %v835
      %v980 = vunpack.c.l.b16 %v836
      %v981 = vunpack.c.l.b16 %v837
      %v982 = vunpack.c.l.b16 %v838
      %v983 = vunpack.c.l.b16 %v839
      %v984 = vunpack.c.l.b16 %v840
      %v985 = vunpack.c.l.b16 %v841
      %v986 = vunpack.c.l.b16 %v842
      %v987 = vunpack.c.l.b16 %v843
      %v988 = vunpack.c.l.b16 %v844
      %v989 = vunpack.c.l.b16 %v845
      %v990 = vunpack.c.l.b16 %v846
      %v991 = vunpack.c.l.b16 %v847
      %v992 = vunpack.c.l.b16 %v848
      %v993 = vunpack.c.l.b16 %v849
      %v994 = vunpack.c.l.b16 %v850
      %v995 = vunpack.c.l.b16 %v851
      %v996 = vunpack.c.l.b16 %v852
      %v997 = vunpack.c.l.b16 %v853
      %v998 = vunpack.c.l.b16 %v854
      %v999 = vunpack.c.l.b16 %v855
      %v1000 = vunpack.c.l.b16 %v856
      %v1001 = vunpack.c.l.b16 %v857
      %v1002 = vunpack.c.l.b16 %v858
      %v1003 = vpack.c.b16 %v972, %v971
      %v1004 = vpack.c.b16 %v974, %v973
      %v1005 = vpack.c.b16 %v976, %v975
      %v1006 = vpack.c.b16 %v978, %v977
      %v1007 = vpack.c.b16 %v980, %v979
      %v1008 = vpack.c.b16 %v982, %v981
      %v1009 = vpack.c.b16 %v984, %v983
      %v1010 = vpack.c.b16 %v986, %v985
      %v1011 = vpack.c.b16 %v988, %v987
      %v1012 = vpack.c.b16 %v990, %v989
      %v1013 = vpack.c.b16 %v992, %v991
      %v1014 = vpack.c.b16 %v994, %v993
      %v1015 = vpack.c.b16 %v996, %v995
      %v1016 = vpack.c.b16 %v998, %v997
      %v1017 = vpack.c.b16 %v1000, %v999
      %v1018 = vpack.c.b16 %v1002, %v1001
      %vm1019 = vcmask 261120
      %v1021 = vsel %vm1019, %v923, 0
      %v1024 = vsel %vm1019, %v924, 0
      %v1027 = vsel %vm1019, %v925, 0
      %v1030 = vsel %vm1019, %v926, 0
      %v1033 = vsel %vm1019, %v927, 0
      %v1036 = vsel %vm1019, %v928, 0
      %v1039 = vsel %vm1019, %v929, 0
      %v1042 = vsel %vm1019, %v930, 0
      %v1045 = vsel %vm1019, %v931, 0
      %v1048 = vsel %vm1019, %v932, 0
      %v1051 = vsel %vm1019, %v933, 0
      %v1054 = vsel %vm1019, %v934, 0
      %v1057 = vsel %vm1019, %v935, 0
      %v1060 = vsel %vm1019, %v936, 0
      %v1063 = vsel %vm1019, %v937, 0
      %v1066 = vsel %vm1019, %v938, 0
      %v1069 = vsel %vm1019, %v1003, 0
      %v1072 = vsel %vm1019, %v1004, 0
      %v1075 = vsel %vm1019, %v1005, 0
      %v1078 = vsel %vm1019, %v1006, 0
      %v1081 = vsel %vm1019, %v1007, 0
      %v1084 = vsel %vm1019, %v1008, 0
      %v1087 = vsel %vm1019, %v1009, 0
      %v1090 = vsel %vm1019, %v1010, 0
      %v1093 = vsel %vm1019, %v1011, 0
      %v1096 = vsel %vm1019, %v1012, 0
      %v1099 = vsel %vm1019, %v1013, 0
      %v1102 = vsel %vm1019, %v1014, 0
      %v1105 = vsel %vm1019, %v1015, 0
      %v1108 = vsel %vm1019, %v1016, 0
      %v1111 = vsel %vm1019, %v1017, 0
      %v1114 = vsel %vm1019, %v1018, 0
      %1116 = vmatpush.bf16.xpose.msra.mxu0 %v1090
      %1117 = vmatpush.bf16.xpose.msra.mxu0 %v1087
      %1118 = vmatpush.bf16.xpose.msra.mxu0 %v1084
      %1119 = vmatpush.bf16.xpose.msra.mxu0 %v1081
      %1120 = vmatpush.bf16.xpose.msra.mxu0 %v1078
      %1121 = vmatpush.bf16.xpose.msra.mxu0 %v1075
      %1122 = vmatpush.bf16.xpose.msra.mxu0 %v1072
      %1123 = vmatpush.bf16.xpose.msra.mxu0 %v1069
      %1124 = vmatmul.bf16.gmra.mxu0 %v1021
      %v1125 = vpop.f32.mrf.mxu0
      %v1126 = vadd.f32 0.0, %v1125
      %v1127 = vpop.f32.mrf.mxu0
      %v1128 = vadd.f32 0.0, %v1127
      %1129 = vmatmul.bf16.gmra.mxu0 %v1024
      %v1130 = vpop.f32.mrf.mxu0
      %v1131 = vadd.f32 0.0, %v1130
      %v1132 = vpop.f32.mrf.mxu0
      %v1133 = vadd.f32 0.0, %v1132
      %1134 = vmatmul.bf16.gmra.mxu0 %v1027
      %v1135 = vpop.f32.mrf.mxu0
      %v1136 = vadd.f32 0.0, %v1135
      %v1137 = vpop.f32.mrf.mxu0
      %v1138 = vadd.f32 0.0, %v1137
      %1139 = vmatmul.bf16.gmra.mxu0 %v1030
      %v1140 = vpop.f32.mrf.mxu0
      %v1141 = vadd.f32 0.0, %v1140
      %v1142 = vpop.f32.mrf.mxu0
      %v1143 = vadd.f32 0.0, %v1142
      %1144 = vmatmul.bf16.gmra.mxu0 %v1033
      %v1145 = vpop.f32.mrf.mxu0
      %v1146 = vadd.f32 0.0, %v1145
      %v1147 = vpop.f32.mrf.mxu0
      %v1148 = vadd.f32 0.0, %v1147
      %1149 = vmatmul.bf16.gmra.mxu0 %v1036
      %v1150 = vpop.f32.mrf.mxu0
      %v1151 = vadd.f32 0.0, %v1150
      %v1152 = vpop.f32.mrf.mxu0
      %v1153 = vadd.f32 0.0, %v1152
      %1154 = vmatmul.bf16.gmra.mxu0 %v1039
      %v1155 = vpop.f32.mrf.mxu0
      %v1156 = vadd.f32 0.0, %v1155
      %v1157 = vpop.f32.mrf.mxu0
      %v1158 = vadd.f32 0.0, %v1157
      %1159 = vmatmul.bf16.gmra.mxu0 %v1042
      %v1160 = vpop.f32.mrf.mxu0
      %v1161 = vadd.f32 0.0, %v1160
      %v1162 = vpop.f32.mrf.mxu0
      %v1163 = vadd.f32 0.0, %v1162
      %1164 = vmatmul.bf16.gmra.mxu0 %v1045
      %v1165 = vpop.f32.mrf.mxu0
      %v1166 = vadd.f32 0.0, %v1165
      %v1167 = vpop.f32.mrf.mxu0
      %v1168 = vadd.f32 0.0, %v1167
      %1169 = vmatmul.bf16.gmra.mxu0 %v1048
      %v1170 = vpop.f32.mrf.mxu0
      %v1171 = vadd.f32 0.0, %v1170
      %v1172 = vpop.f32.mrf.mxu0
      %v1173 = vadd.f32 0.0, %v1172
      %1174 = vmatmul.bf16.gmra.mxu0 %v1051
      %v1175 = vpop.f32.mrf.mxu0
      %v1176 = vadd.f32 0.0, %v1175
      %v1177 = vpop.f32.mrf.mxu0
      %v1178 = vadd.f32 0.0, %v1177
      %1179 = vmatmul.bf16.gmra.mxu0 %v1054
      %v1180 = vpop.f32.mrf.mxu0
      %v1181 = vadd.f32 0.0, %v1180
      %v1182 = vpop.f32.mrf.mxu0
      %v1183 = vadd.f32 0.0, %v1182
      %1184 = vmatmul.bf16.gmra.mxu0 %v1057
      %v1185 = vpop.f32.mrf.mxu0
      %v1186 = vadd.f32 0.0, %v1185
      %v1187 = vpop.f32.mrf.mxu0
      %v1188 = vadd.f32 0.0, %v1187
      %1189 = vmatmul.bf16.gmra.mxu0 %v1060
      %v1190 = vpop.f32.mrf.mxu0
      %v1191 = vadd.f32 0.0, %v1190
      %v1192 = vpop.f32.mrf.mxu0
      %v1193 = vadd.f32 0.0, %v1192
      %1194 = vmatmul.bf16.gmra.mxu0 %v1063
      %v1195 = vpop.f32.mrf.mxu0
      %v1196 = vadd.f32 0.0, %v1195
      %v1197 = vpop.f32.mrf.mxu0
      %v1198 = vadd.f32 0.0, %v1197
      %1199 = vmatmul.bf16.gmra.mxu0 %v1066
      %v1200 = vpop.f32.mrf.mxu0
      %v1201 = vadd.f32 0.0, %v1200
      %v1202 = vpop.f32.mrf.mxu0
      %v1203 = vadd.f32 0.0, %v1202
      %1204 = vdwg.mxu0
      %1205 = vmatpush.bf16.xpose.msra.mxu0 %v1114
      %1206 = vmatpush.bf16.xpose.msra.mxu0 %v1111
      %1207 = vmatpush.bf16.xpose.msra.mxu0 %v1108
      %1208 = vmatpush.bf16.xpose.msra.mxu0 %v1105
      %1209 = vmatpush.bf16.xpose.msra.mxu0 %v1102
      %1210 = vmatpush.bf16.xpose.msra.mxu0 %v1099
      %1211 = vmatpush.bf16.xpose.msra.mxu0 %v1096
      %1212 = vmatpush.bf16.xpose.msra.mxu0 %v1093
      %1213 = vmatmul.bf16.gmra.mxu0 %v1021
      %v1214 = vpop.f32.mrf.mxu0
      %v1215 = vadd.f32 0.0, %v1214
      %v1216 = vpop.f32.mrf.mxu0
      %v1217 = vadd.f32 0.0, %v1216
      %1218 = vmatmul.bf16.gmra.mxu0 %v1024
      %v1219 = vpop.f32.mrf.mxu0
      %v1220 = vadd.f32 0.0, %v1219
      %v1221 = vpop.f32.mrf.mxu0
      %v1222 = vadd.f32 0.0, %v1221
      %1223 = vmatmul.bf16.gmra.mxu0 %v1027
      %v1224 = vpop.f32.mrf.mxu0
      %v1225 = vadd.f32 0.0, %v1224
      %v1226 = vpop.f32.mrf.mxu0
      %v1227 = vadd.f32 0.0, %v1226
      %1228 = vmatmul.bf16.gmra.mxu0 %v1030
      %v1229 = vpop.f32.mrf.mxu0
      %v1230 = vadd.f32 0.0, %v1229
      %v1231 = vpop.f32.mrf.mxu0
      %v1232 = vadd.f32 0.0, %v1231
      %1233 = vmatmul.bf16.gmra.mxu0 %v1033
      %v1234 = vpop.f32.mrf.mxu0
      %v1235 = vadd.f32 0.0, %v1234
      %v1236 = vpop.f32.mrf.mxu0
      %v1237 = vadd.f32 0.0, %v1236
      %1238 = vmatmul.bf16.gmra.mxu0 %v1036
      %v1239 = vpop.f32.mrf.mxu0
      %v1240 = vadd.f32 0.0, %v1239
      %v1241 = vpop.f32.mrf.mxu0
      %v1242 = vadd.f32 0.0, %v1241
      %1243 = vmatmul.bf16.gmra.mxu0 %v1039
      %v1244 = vpop.f32.mrf.mxu0
      %v1245 = vadd.f32 0.0, %v1244
      %v1246 = vpop.f32.mrf.mxu0
      %v1247 = vadd.f32 0.0, %v1246
      %1248 = vmatmul.bf16.gmra.mxu0 %v1042
      %v1249 = vpop.f32.mrf.mxu0
      %v1250 = vadd.f32 0.0, %v1249
      %v1251 = vpop.f32.mrf.mxu0
      %v1252 = vadd.f32 0.0, %v1251
      %1253 = vmatmul.bf16.gmra.mxu0 %v1045
      %v1254 = vpop.f32.mrf.mxu0
      %v1255 = vadd.f32 0.0, %v1254
      %v1256 = vpop.f32.mrf.mxu0
      %v1257 = vadd.f32 0.0, %v1256
      %1258 = vmatmul.bf16.gmra.mxu0 %v1048
      %v1259 = vpop.f32.mrf.mxu0
      %v1260 = vadd.f32 0.0, %v1259
      %v1261 = vpop.f32.mrf.mxu0
      %v1262 = vadd.f32 0.0, %v1261
      %1263 = vmatmul.bf16.gmra.mxu0 %v1051
      %v1264 = vpop.f32.mrf.mxu0
      %v1265 = vadd.f32 0.0, %v1264
      %v1266 = vpop.f32.mrf.mxu0
      %v1267 = vadd.f32 0.0, %v1266
      %1268 = vmatmul.bf16.gmra.mxu0 %v1054
      %v1269 = vpop.f32.mrf.mxu0
      %v1270 = vadd.f32 0.0, %v1269
      %v1271 = vpop.f32.mrf.mxu0
      %v1272 = vadd.f32 0.0, %v1271
      %1273 = vmatmul.bf16.gmra.mxu0 %v1057
      %v1274 = vpop.f32.mrf.mxu0
      %v1275 = vadd.f32 0.0, %v1274
      %v1276 = vpop.f32.mrf.mxu0
      %v1277 = vadd.f32 0.0, %v1276
      %1278 = vmatmul.bf16.gmra.mxu0 %v1060
      %v1279 = vpop.f32.mrf.mxu0
      %v1280 = vadd.f32 0.0, %v1279
      %v1281 = vpop.f32.mrf.mxu0
      %v1282 = vadd.f32 0.0, %v1281
      %1283 = vmatmul.bf16.gmra.mxu0 %v1063
      %v1284 = vpop.f32.mrf.mxu0
      %v1285 = vadd.f32 0.0, %v1284
      %v1286 = vpop.f32.mrf.mxu0
      %v1287 = vadd.f32 0.0, %v1286
      %1288 = vmatmul.bf16.gmra.mxu0 %v1066
      %v1289 = vpop.f32.mrf.mxu0
      %v1290 = vadd.f32 0.0, %v1289
      %v1291 = vpop.f32.mrf.mxu0
      %v1292 = vadd.f32 0.0, %v1291
      %1293 = vdwg.mxu0
      %v1294 = vmax.f32 %v1126, %v1215
      %1295 = vmax.xlane.f32.xlu0 %v1294
      %v1296 = vpop.xlane.xlu0 %1295
      %v1297 = vmax.f32 %v1128, %v1217
      %1298 = vmax.xlane.f32.xlu0 %v1297
      %v1299 = vpop.xlane.xlu0 %1298
      %v1300 = vmax.f32 %v1131, %v1220
      %1301 = vmax.xlane.f32.xlu0 %v1300
      %v1302 = vpop.xlane.xlu0 %1301
      %v1303 = vmax.f32 %v1133, %v1222
      %1304 = vmax.xlane.f32.xlu0 %v1303
      %v1305 = vpop.xlane.xlu0 %1304
      %v1306 = vmax.f32 %v1136, %v1225
      %1307 = vmax.xlane.f32.xlu0 %v1306
      %v1308 = vpop.xlane.xlu0 %1307
      %v1309 = vmax.f32 %v1138, %v1227
      %1310 = vmax.xlane.f32.xlu0 %v1309
      %v1311 = vpop.xlane.xlu0 %1310
      %v1312 = vmax.f32 %v1141, %v1230
      %1313 = vmax.xlane.f32.xlu0 %v1312
      %v1314 = vpop.xlane.xlu0 %1313
      %v1315 = vmax.f32 %v1143, %v1232
      %1316 = vmax.xlane.f32.xlu0 %v1315
      %v1317 = vpop.xlane.xlu0 %1316
      %v1318 = vmax.f32 %v1146, %v1235
      %1319 = vmax.xlane.f32.xlu0 %v1318
      %v1320 = vpop.xlane.xlu0 %1319
      %v1321 = vmax.f32 %v1148, %v1237
      %1322 = vmax.xlane.f32.xlu0 %v1321
      %v1323 = vpop.xlane.xlu0 %1322
      %v1324 = vmax.f32 %v1151, %v1240
      %1325 = vmax.xlane.f32.xlu0 %v1324
      %v1326 = vpop.xlane.xlu0 %1325
      %v1327 = vmax.f32 %v1153, %v1242
      %1328 = vmax.xlane.f32.xlu0 %v1327
      %v1329 = vpop.xlane.xlu0 %1328
      %v1330 = vmax.f32 %v1156, %v1245
      %1331 = vmax.xlane.f32.xlu0 %v1330
      %v1332 = vpop.xlane.xlu0 %1331
      %v1333 = vmax.f32 %v1158, %v1247
      %1334 = vmax.xlane.f32.xlu0 %v1333
      %v1335 = vpop.xlane.xlu0 %1334
      %v1336 = vmax.f32 %v1161, %v1250
      %1337 = vmax.xlane.f32.xlu0 %v1336
      %v1338 = vpop.xlane.xlu0 %1337
      %v1339 = vmax.f32 %v1163, %v1252
      %1340 = vmax.xlane.f32.xlu0 %v1339
      %v1341 = vpop.xlane.xlu0 %1340
      %v1342 = vmax.f32 %v1166, %v1255
      %1343 = vmax.xlane.f32.xlu0 %v1342
      %v1344 = vpop.xlane.xlu0 %1343
      %v1345 = vmax.f32 %v1168, %v1257
      %1346 = vmax.xlane.f32.xlu0 %v1345
      %v1347 = vpop.xlane.xlu0 %1346
      %v1348 = vmax.f32 %v1171, %v1260
      %1349 = vmax.xlane.f32.xlu0 %v1348
      %v1350 = vpop.xlane.xlu0 %1349
      %v1351 = vmax.f32 %v1173, %v1262
      %1352 = vmax.xlane.f32.xlu0 %v1351
      %v1353 = vpop.xlane.xlu0 %1352
      %v1354 = vmax.f32 %v1176, %v1265
      %1355 = vmax.xlane.f32.xlu0 %v1354
      %v1356 = vpop.xlane.xlu0 %1355
      %v1357 = vmax.f32 %v1178, %v1267
      %1358 = vmax.xlane.f32.xlu0 %v1357
      %v1359 = vpop.xlane.xlu0 %1358
      %v1360 = vmax.f32 %v1181, %v1270
      %1361 = vmax.xlane.f32.xlu0 %v1360
      %v1362 = vpop.xlane.xlu0 %1361
      %v1363 = vmax.f32 %v1183, %v1272
      %1364 = vmax.xlane.f32.xlu0 %v1363
      %v1365 = vpop.xlane.xlu0 %1364
      %v1366 = vmax.f32 %v1186, %v1275
      %1367 = vmax.xlane.f32.xlu0 %v1366
      %v1368 = vpop.xlane.xlu0 %1367
      %v1369 = vmax.f32 %v1188, %v1277
      %1370 = vmax.xlane.f32.xlu0 %v1369
      %v1371 = vpop.xlane.xlu0 %1370
      %v1372 = vmax.f32 %v1191, %v1280
      %1373 = vmax.xlane.f32.xlu0 %v1372
      %v1374 = vpop.xlane.xlu0 %1373
      %v1375 = vmax.f32 %v1193, %v1282
      %1376 = vmax.xlane.f32.xlu0 %v1375
      %v1377 = vpop.xlane.xlu0 %1376
      %v1378 = vmax.f32 %v1196, %v1285
      %1379 = vmax.xlane.f32.xlu0 %v1378
      %v1380 = vpop.xlane.xlu0 %1379
      %v1381 = vmax.f32 %v1198, %v1287
      %1382 = vmax.xlane.f32.xlu0 %v1381
      %v1383 = vpop.xlane.xlu0 %1382
      %v1384 = vmax.f32 %v1201, %v1290
      %1385 = vmax.xlane.f32.xlu0 %v1384
      %v1386 = vpop.xlane.xlu0 %1385
      %v1387 = vmax.f32 %v1203, %v1292
      %1388 = vmax.xlane.f32.xlu0 %v1387
      %v1389 = vpop.xlane.xlu0 %1388
      %v1390 = vsub.f32 %v1126, %v1296
      %v1391 = vsub.f32 %v1215, %v1296
      %v1392 = vsub.f32 %v1128, %v1299
      %v1393 = vsub.f32 %v1217, %v1299
      %v1394 = vsub.f32 %v1131, %v1302
      %v1395 = vsub.f32 %v1220, %v1302
      %v1396 = vsub.f32 %v1133, %v1305
      %v1397 = vsub.f32 %v1222, %v1305
      %v1398 = vsub.f32 %v1136, %v1308
      %v1399 = vsub.f32 %v1225, %v1308
      %v1400 = vsub.f32 %v1138, %v1311
      %v1401 = vsub.f32 %v1227, %v1311
      %v1402 = vsub.f32 %v1141, %v1314
      %v1403 = vsub.f32 %v1230, %v1314
      %v1404 = vsub.f32 %v1143, %v1317
      %v1405 = vsub.f32 %v1232, %v1317
      %v1406 = vsub.f32 %v1146, %v1320
      %v1407 = vsub.f32 %v1235, %v1320
      %v1408 = vsub.f32 %v1148, %v1323
      %v1409 = vsub.f32 %v1237, %v1323
      %v1410 = vsub.f32 %v1151, %v1326
      %v1411 = vsub.f32 %v1240, %v1326
      %v1412 = vsub.f32 %v1153, %v1329
      %v1413 = vsub.f32 %v1242, %v1329
      %v1414 = vsub.f32 %v1156, %v1332
      %v1415 = vsub.f32 %v1245, %v1332
      %v1416 = vsub.f32 %v1158, %v1335
      %v1417 = vsub.f32 %v1247, %v1335
      %v1418 = vsub.f32 %v1161, %v1338
      %v1419 = vsub.f32 %v1250, %v1338
      %v1420 = vsub.f32 %v1163, %v1341
      %v1421 = vsub.f32 %v1252, %v1341
      %v1422 = vsub.f32 %v1166, %v1344
      %v1423 = vsub.f32 %v1255, %v1344
      %v1424 = vsub.f32 %v1168, %v1347
      %v1425 = vsub.f32 %v1257, %v1347
      %v1426 = vsub.f32 %v1171, %v1350
      %v1427 = vsub.f32 %v1260, %v1350
      %v1428 = vsub.f32 %v1173, %v1353
      %v1429 = vsub.f32 %v1262, %v1353
      %v1430 = vsub.f32 %v1176, %v1356
      %v1431 = vsub.f32 %v1265, %v1356
      %v1432 = vsub.f32 %v1178, %v1359
      %v1433 = vsub.f32 %v1267, %v1359
      %v1434 = vsub.f32 %v1181, %v1362
      %v1435 = vsub.f32 %v1270, %v1362
      %v1436 = vsub.f32 %v1183, %v1365
      %v1437 = vsub.f32 %v1272, %v1365
      %v1438 = vsub.f32 %v1186, %v1368
      %v1439 = vsub.f32 %v1275, %v1368
      %v1440 = vsub.f32 %v1188, %v1371
      %v1441 = vsub.f32 %v1277, %v1371
      %v1442 = vsub.f32 %v1191, %v1374
      %v1443 = vsub.f32 %v1280, %v1374
      %v1444 = vsub.f32 %v1193, %v1377
      %v1445 = vsub.f32 %v1282, %v1377
      %v1446 = vsub.f32 %v1196, %v1380
      %v1447 = vsub.f32 %v1285, %v1380
      %v1448 = vsub.f32 %v1198, %v1383
      %v1449 = vsub.f32 %v1287, %v1383
      %v1450 = vsub.f32 %v1201, %v1386
      %v1451 = vsub.f32 %v1290, %v1386
      %v1452 = vsub.f32 %v1203, %v1389
      %v1453 = vsub.f32 %v1292, %v1389
      %v1454 = vmul.f32 %v1390, 1.442695
      %v1455 = vpow.pop %v1454
      %v1456 = vmul.f32 %v1391, 1.442695
      %v1457 = vpow.pop %v1456
      %v1458 = vmul.f32 %v1392, 1.442695
      %v1459 = vpow.pop %v1458
      %v1460 = vmul.f32 %v1393, 1.442695
      %v1461 = vpow.pop %v1460
      %v1462 = vmul.f32 %v1394, 1.442695
      %v1463 = vpow.pop %v1462
      %v1464 = vmul.f32 %v1395, 1.442695
      %v1465 = vpow.pop %v1464
      %v1466 = vmul.f32 %v1396, 1.442695
      %v1467 = vpow.pop %v1466
      %v1468 = vmul.f32 %v1397, 1.442695
      %v1469 = vpow.pop %v1468
      %v1470 = vmul.f32 %v1398, 1.442695
      %v1471 = vpow.pop %v1470
      %v1472 = vmul.f32 %v1399, 1.442695
      %v1473 = vpow.pop %v1472
      %v1474 = vmul.f32 %v1400, 1.442695
      %v1475 = vpow.pop %v1474
      %v1476 = vmul.f32 %v1401, 1.442695
      %v1477 = vpow.pop %v1476
      %v1478 = vmul.f32 %v1402, 1.442695
      %v1479 = vpow.pop %v1478
      %v1480 = vmul.f32 %v1403, 1.442695
      %v1481 = vpow.pop %v1480
      %v1482 = vmul.f32 %v1404, 1.442695
      %v1483 = vpow.pop %v1482
      %v1484 = vmul.f32 %v1405, 1.442695
      %v1485 = vpow.pop %v1484
      %v1486 = vmul.f32 %v1406, 1.442695
      %v1487 = vpow.pop %v1486
      %v1488 = vmul.f32 %v1407, 1.442695
      %v1489 = vpow.pop %v1488
      %v1490 = vmul.f32 %v1408, 1.442695
      %v1491 = vpow.pop %v1490
      %v1492 = vmul.f32 %v1409, 1.442695
      %v1493 = vpow.pop %v1492
      %v1494 = vmul.f32 %v1410, 1.442695
      %v1495 = vpow.pop %v1494
      %v1496 = vmul.f32 %v1411, 1.442695
      %v1497 = vpow.pop %v1496
      %v1498 = vmul.f32 %v1412, 1.442695
      %v1499 = vpow.pop %v1498
      %v1500 = vmul.f32 %v1413, 1.442695
      %v1501 = vpow.pop %v1500
      %v1502 = vmul.f32 %v1414, 1.442695
      %v1503 = vpow.pop %v1502
      %v1504 = vmul.f32 %v1415, 1.442695
      %v1505 = vpow.pop %v1504
      %v1506 = vmul.f32 %v1416, 1.442695
      %v1507 = vpow.pop %v1506
      %v1508 = vmul.f32 %v1417, 1.442695
      %v1509 = vpow.pop %v1508
      %v1510 = vmul.f32 %v1418, 1.442695
      %v1511 = vpow.pop %v1510
      %v1512 = vmul.f32 %v1419, 1.442695
      %v1513 = vpow.pop %v1512
      %v1514 = vmul.f32 %v1420, 1.442695
      %v1515 = vpow.pop %v1514
      %v1516 = vmul.f32 %v1421, 1.442695
      %v1517 = vpow.pop %v1516
      %v1518 = vmul.f32 %v1422, 1.442695
      %v1519 = vpow.pop %v1518
      %v1520 = vmul.f32 %v1423, 1.442695
      %v1521 = vpow.pop %v1520
      %v1522 = vmul.f32 %v1424, 1.442695
      %v1523 = vpow.pop %v1522
      %v1524 = vmul.f32 %v1425, 1.442695
      %v1525 = vpow.pop %v1524
      %v1526 = vmul.f32 %v1426, 1.442695
      %v1527 = vpow.pop %v1526
      %v1528 = vmul.f32 %v1427, 1.442695
      %v1529 = vpow.pop %v1528
      %v1530 = vmul.f32 %v1428, 1.442695
      %v1531 = vpow.pop %v1530
      %v1532 = vmul.f32 %v1429, 1.442695
      %v1533 = vpow.pop %v1532
      %v1534 = vmul.f32 %v1430, 1.442695
      %v1535 = vpow.pop %v1534
      %v1536 = vmul.f32 %v1431, 1.442695
      %v1537 = vpow.pop %v1536
      %v1538 = vmul.f32 %v1432, 1.442695
      %v1539 = vpow.pop %v1538
      %v1540 = vmul.f32 %v1433, 1.442695
      %v1541 = vpow.pop %v1540
      %v1542 = vmul.f32 %v1434, 1.442695
      %v1543 = vpow.pop %v1542
      %v1544 = vmul.f32 %v1435, 1.442695
      %v1545 = vpow.pop %v1544
      %v1546 = vmul.f32 %v1436, 1.442695
      %v1547 = vpow.pop %v1546
      %v1548 = vmul.f32 %v1437, 1.442695
      %v1549 = vpow.pop %v1548
      %v1550 = vmul.f32 %v1438, 1.442695
      %v1551 = vpow.pop %v1550
      %v1552 = vmul.f32 %v1439, 1.442695
      %v1553 = vpow.pop %v1552
      %v1554 = vmul.f32 %v1440, 1.442695
      %v1555 = vpow.pop %v1554
      %v1556 = vmul.f32 %v1441, 1.442695
      %v1557 = vpow.pop %v1556
      %v1558 = vmul.f32 %v1442, 1.442695
      %v1559 = vpow.pop %v1558
      %v1560 = vmul.f32 %v1443, 1.442695
      %v1561 = vpow.pop %v1560
      %v1562 = vmul.f32 %v1444, 1.442695
      %v1563 = vpow.pop %v1562
      %v1564 = vmul.f32 %v1445, 1.442695
      %v1565 = vpow.pop %v1564
      %v1566 = vmul.f32 %v1446, 1.442695
      %v1567 = vpow.pop %v1566
      %v1568 = vmul.f32 %v1447, 1.442695
      %v1569 = vpow.pop %v1568
      %v1570 = vmul.f32 %v1448, 1.442695
      %v1571 = vpow.pop %v1570
      %v1572 = vmul.f32 %v1449, 1.442695
      %v1573 = vpow.pop %v1572
      %v1574 = vmul.f32 %v1450, 1.442695
      %v1575 = vpow.pop %v1574
      %v1576 = vmul.f32 %v1451, 1.442695
      %v1577 = vpow.pop %v1576
      %v1578 = vmul.f32 %v1452, 1.442695
      %v1579 = vpow.pop %v1578
      %v1580 = vmul.f32 %v1453, 1.442695
      %v1581 = vpow.pop %v1580
      %v1582 = vadd.f32 %v1455, %v1457
      %1583 = vadd.xlane.f32.xlu0 %v1582
      %v1584 = vpop.xlane.xlu0 %1583
      %v1585 = vadd.f32 %v1459, %v1461
      %1586 = vadd.xlane.f32.xlu0 %v1585
      %v1587 = vpop.xlane.xlu0 %1586
      %v1588 = vadd.f32 %v1463, %v1465
      %1589 = vadd.xlane.f32.xlu0 %v1588
      %v1590 = vpop.xlane.xlu0 %1589
      %v1591 = vadd.f32 %v1467, %v1469
      %1592 = vadd.xlane.f32.xlu0 %v1591
      %v1593 = vpop.xlane.xlu0 %1592
      %v1594 = vadd.f32 %v1471, %v1473
      %1595 = vadd.xlane.f32.xlu0 %v1594
      %v1596 = vpop.xlane.xlu0 %1595
      %v1597 = vadd.f32 %v1475, %v1477
      %1598 = vadd.xlane.f32.xlu0 %v1597
      %v1599 = vpop.xlane.xlu0 %1598
      %v1600 = vadd.f32 %v1479, %v1481
      %1601 = vadd.xlane.f32.xlu0 %v1600
      %v1602 = vpop.xlane.xlu0 %1601
      %v1603 = vadd.f32 %v1483, %v1485
      %1604 = vadd.xlane.f32.xlu0 %v1603
      %v1605 = vpop.xlane.xlu0 %1604
      %v1606 = vadd.f32 %v1487, %v1489
      %1607 = vadd.xlane.f32.xlu0 %v1606
      %v1608 = vpop.xlane.xlu0 %1607
      %v1609 = vadd.f32 %v1491, %v1493
      %1610 = vadd.xlane.f32.xlu0 %v1609
      %v1611 = vpop.xlane.xlu0 %1610
      %v1612 = vadd.f32 %v1495, %v1497
      %1613 = vadd.xlane.f32.xlu0 %v1612
      %v1614 = vpop.xlane.xlu0 %1613
      %v1615 = vadd.f32 %v1499, %v1501
      %1616 = vadd.xlane.f32.xlu0 %v1615
      %v1617 = vpop.xlane.xlu0 %1616
      %v1618 = vadd.f32 %v1503, %v1505
      %1619 = vadd.xlane.f32.xlu0 %v1618
      %v1620 = vpop.xlane.xlu0 %1619
      %v1621 = vadd.f32 %v1507, %v1509
      %1622 = vadd.xlane.f32.xlu0 %v1621
      %v1623 = vpop.xlane.xlu0 %1622
      %v1624 = vadd.f32 %v1511, %v1513
      %1625 = vadd.xlane.f32.xlu0 %v1624
      %v1626 = vpop.xlane.xlu0 %1625
      %v1627 = vadd.f32 %v1515, %v1517
      %1628 = vadd.xlane.f32.xlu0 %v1627
      %v1629 = vpop.xlane.xlu0 %1628
      %v1630 = vadd.f32 %v1519, %v1521
      %1631 = vadd.xlane.f32.xlu0 %v1630
      %v1632 = vpop.xlane.xlu0 %1631
      %v1633 = vadd.f32 %v1523, %v1525
      %1634 = vadd.xlane.f32.xlu0 %v1633
      %v1635 = vpop.xlane.xlu0 %1634
      %v1636 = vadd.f32 %v1527, %v1529
      %1637 = vadd.xlane.f32.xlu0 %v1636
      %v1638 = vpop.xlane.xlu0 %1637
      %v1639 = vadd.f32 %v1531, %v1533
      %1640 = vadd.xlane.f32.xlu0 %v1639
      %v1641 = vpop.xlane.xlu0 %1640
      %v1642 = vadd.f32 %v1535, %v1537
      %1643 = vadd.xlane.f32.xlu0 %v1642
      %v1644 = vpop.xlane.xlu0 %1643
      %v1645 = vadd.f32 %v1539, %v1541
      %1646 = vadd.xlane.f32.xlu0 %v1645
      %v1647 = vpop.xlane.xlu0 %1646
      %v1648 = vadd.f32 %v1543, %v1545
      %1649 = vadd.xlane.f32.xlu0 %v1648
      %v1650 = vpop.xlane.xlu0 %1649
      %v1651 = vadd.f32 %v1547, %v1549
      %1652 = vadd.xlane.f32.xlu0 %v1651
      %v1653 = vpop.xlane.xlu0 %1652
      %v1654 = vadd.f32 %v1551, %v1553
      %1655 = vadd.xlane.f32.xlu0 %v1654
      %v1656 = vpop.xlane.xlu0 %1655
      %v1657 = vadd.f32 %v1555, %v1557
      %1658 = vadd.xlane.f32.xlu0 %v1657
      %v1659 = vpop.xlane.xlu0 %1658
      %v1660 = vadd.f32 %v1559, %v1561
      %1661 = vadd.xlane.f32.xlu0 %v1660
      %v1662 = vpop.xlane.xlu0 %1661
      %v1663 = vadd.f32 %v1563, %v1565
      %1664 = vadd.xlane.f32.xlu0 %v1663
      %v1665 = vpop.xlane.xlu0 %1664
      %v1666 = vadd.f32 %v1567, %v1569
      %1667 = vadd.xlane.f32.xlu0 %v1666
      %v1668 = vpop.xlane.xlu0 %1667
      %v1669 = vadd.f32 %v1571, %v1573
      %1670 = vadd.xlane.f32.xlu0 %v1669
      %v1671 = vpop.xlane.xlu0 %1670
      %v1672 = vadd.f32 %v1575, %v1577
      %1673 = vadd.xlane.f32.xlu0 %v1672
      %v1674 = vpop.xlane.xlu0 %1673
      %v1675 = vadd.f32 %v1579, %v1581
      %1676 = vadd.xlane.f32.xlu0 %v1675
      %v1677 = vpop.xlane.xlu0 %1676
      %v1678 = vpack.c.bf16 %v1459, %v1455
      %v1679 = vpack.c.bf16 %v1461, %v1457
      %v1680 = vpack.c.bf16 %v1467, %v1463
      %v1681 = vpack.c.bf16 %v1469, %v1465
      %v1682 = vpack.c.bf16 %v1475, %v1471
      %v1683 = vpack.c.bf16 %v1477, %v1473
      %v1684 = vpack.c.bf16 %v1483, %v1479
      %v1685 = vpack.c.bf16 %v1485, %v1481
      %v1686 = vpack.c.bf16 %v1491, %v1487
      %v1687 = vpack.c.bf16 %v1493, %v1489
      %v1688 = vpack.c.bf16 %v1499, %v1495
      %v1689 = vpack.c.bf16 %v1501, %v1497
      %v1690 = vpack.c.bf16 %v1507, %v1503
      %v1691 = vpack.c.bf16 %v1509, %v1505
      %v1692 = vpack.c.bf16 %v1515, %v1511
      %v1693 = vpack.c.bf16 %v1517, %v1513
      %v1694 = vpack.c.bf16 %v1523, %v1519
      %v1695 = vpack.c.bf16 %v1525, %v1521
      %v1696 = vpack.c.bf16 %v1531, %v1527
      %v1697 = vpack.c.bf16 %v1533, %v1529
      %v1698 = vpack.c.bf16 %v1539, %v1535
      %v1699 = vpack.c.bf16 %v1541, %v1537
      %v1700 = vpack.c.bf16 %v1547, %v1543
      %v1701 = vpack.c.bf16 %v1549, %v1545
      %v1702 = vpack.c.bf16 %v1555, %v1551
      %v1703 = vpack.c.bf16 %v1557, %v1553
      %v1704 = vpack.c.bf16 %v1563, %v1559
      %v1705 = vpack.c.bf16 %v1565, %v1561
      %v1706 = vpack.c.bf16 %v1571, %v1567
      %v1707 = vpack.c.bf16 %v1573, %v1569
      %v1708 = vpack.c.bf16 %v1579, %v1575
      %v1709 = vpack.c.bf16 %v1581, %v1577
      %v1742 = vunpack.c.l.b16 %v859
      %v1743 = vunpack.c.l.b16 %v860
      %v1744 = vunpack.c.l.b16 %v861
      %v1745 = vunpack.c.l.b16 %v862
      %v1746 = vunpack.c.l.b16 %v863
      %v1747 = vunpack.c.l.b16 %v864
      %v1748 = vunpack.c.l.b16 %v865
      %v1749 = vunpack.c.l.b16 %v866
      %v1750 = vunpack.c.l.b16 %v867
      %v1751 = vunpack.c.l.b16 %v868
      %v1752 = vunpack.c.l.b16 %v869
      %v1753 = vunpack.c.l.b16 %v870
      %v1754 = vunpack.c.l.b16 %v871
      %v1755 = vunpack.c.l.b16 %v872
      %v1756 = vunpack.c.l.b16 %v873
      %v1757 = vunpack.c.l.b16 %v874
      %v1758 = vunpack.c.l.b16 %v875
      %v1759 = vunpack.c.l.b16 %v876
      %v1760 = vunpack.c.l.b16 %v877
      %v1761 = vunpack.c.l.b16 %v878
      %v1762 = vunpack.c.l.b16 %v879
      %v1763 = vunpack.c.l.b16 %v880
      %v1764 = vunpack.c.l.b16 %v881
      %v1765 = vunpack.c.l.b16 %v882
      %v1766 = vunpack.c.l.b16 %v883
      %v1767 = vunpack.c.l.b16 %v884
      %v1768 = vunpack.c.l.b16 %v885
      %v1769 = vunpack.c.l.b16 %v886
      %v1770 = vunpack.c.l.b16 %v887
      %v1771 = vunpack.c.l.b16 %v888
      %v1772 = vunpack.c.l.b16 %v889
      %v1773 = vunpack.c.l.b16 %v890
      %v1774 = vpack.c.b16 %v1743, %v1742
      %v1775 = vpack.c.b16 %v1745, %v1744
      %v1776 = vpack.c.b16 %v1747, %v1746
      %v1777 = vpack.c.b16 %v1749, %v1748
      %v1778 = vpack.c.b16 %v1751, %v1750
      %v1779 = vpack.c.b16 %v1753, %v1752
      %v1780 = vpack.c.b16 %v1755, %v1754
      %v1781 = vpack.c.b16 %v1757, %v1756
      %v1782 = vpack.c.b16 %v1759, %v1758
      %v1783 = vpack.c.b16 %v1761, %v1760
      %v1784 = vpack.c.b16 %v1763, %v1762
      %v1785 = vpack.c.b16 %v1765, %v1764
      %v1786 = vpack.c.b16 %v1767, %v1766
      %v1787 = vpack.c.b16 %v1769, %v1768
      %v1788 = vpack.c.b16 %v1771, %v1770
      %v1789 = vpack.c.b16 %v1773, %v1772
      %1806 = vmatpush.bf16.msra.mxu0 %v1781
      %1807 = vmatpush.bf16.msra.mxu0 %v1780
      %1808 = vmatpush.bf16.msra.mxu0 %v1779
      %1809 = vmatpush.bf16.msra.mxu0 %v1778
      %1810 = vmatpush.bf16.msra.mxu0 %v1777
      %1811 = vmatpush.bf16.msra.mxu0 %v1776
      %1812 = vmatpush.bf16.msra.mxu0 %v1775
      %1813 = vmatpush.bf16.msra.mxu0 %v1774
      %1814 = vmatmul.bf16.gmra.mxu0 %v1678
      %v1815 = vpop.f32.mrf.mxu0
      %v1816 = vadd.f32 0.0, %v1815
      %v1817 = vpop.f32.mrf.mxu0
      %v1818 = vadd.f32 0.0, %v1817
      %1819 = vmatmul.bf16.gmra.mxu0 %v1680
      %v1820 = vpop.f32.mrf.mxu0
      %v1821 = vadd.f32 0.0, %v1820
      %v1822 = vpop.f32.mrf.mxu0
      %v1823 = vadd.f32 0.0, %v1822
      %1824 = vmatmul.bf16.gmra.mxu0 %v1682
      %v1825 = vpop.f32.mrf.mxu0
      %v1826 = vadd.f32 0.0, %v1825
      %v1827 = vpop.f32.mrf.mxu0
      %v1828 = vadd.f32 0.0, %v1827
      %1829 = vmatmul.bf16.gmra.mxu0 %v1684
      %v1830 = vpop.f32.mrf.mxu0
      %v1831 = vadd.f32 0.0, %v1830
      %v1832 = vpop.f32.mrf.mxu0
      %v1833 = vadd.f32 0.0, %v1832
      %1834 = vmatmul.bf16.gmra.mxu0 %v1686
      %v1835 = vpop.f32.mrf.mxu0
      %v1836 = vadd.f32 0.0, %v1835
      %v1837 = vpop.f32.mrf.mxu0
      %v1838 = vadd.f32 0.0, %v1837
      %1839 = vmatmul.bf16.gmra.mxu0 %v1688
      %v1840 = vpop.f32.mrf.mxu0
      %v1841 = vadd.f32 0.0, %v1840
      %v1842 = vpop.f32.mrf.mxu0
      %v1843 = vadd.f32 0.0, %v1842
      %1844 = vmatmul.bf16.gmra.mxu0 %v1690
      %v1845 = vpop.f32.mrf.mxu0
      %v1846 = vadd.f32 0.0, %v1845
      %v1847 = vpop.f32.mrf.mxu0
      %v1848 = vadd.f32 0.0, %v1847
      %1849 = vmatmul.bf16.gmra.mxu0 %v1692
      %v1850 = vpop.f32.mrf.mxu0
      %v1851 = vadd.f32 0.0, %v1850
      %v1852 = vpop.f32.mrf.mxu0
      %v1853 = vadd.f32 0.0, %v1852
      %1854 = vmatmul.bf16.gmra.mxu0 %v1694
      %v1855 = vpop.f32.mrf.mxu0
      %v1856 = vadd.f32 0.0, %v1855
      %v1857 = vpop.f32.mrf.mxu0
      %v1858 = vadd.f32 0.0, %v1857
      %1859 = vmatmul.bf16.gmra.mxu0 %v1696
      %v1860 = vpop.f32.mrf.mxu0
      %v1861 = vadd.f32 0.0, %v1860
      %v1862 = vpop.f32.mrf.mxu0
      %v1863 = vadd.f32 0.0, %v1862
      %1864 = vmatmul.bf16.gmra.mxu0 %v1698
      %v1865 = vpop.f32.mrf.mxu0
      %v1866 = vadd.f32 0.0, %v1865
      %v1867 = vpop.f32.mrf.mxu0
      %v1868 = vadd.f32 0.0, %v1867
      %1869 = vmatmul.bf16.gmra.mxu0 %v1700
      %v1870 = vpop.f32.mrf.mxu0
      %v1871 = vadd.f32 0.0, %v1870
      %v1872 = vpop.f32.mrf.mxu0
      %v1873 = vadd.f32 0.0, %v1872
      %1874 = vmatmul.bf16.gmra.mxu0 %v1702
      %v1875 = vpop.f32.mrf.mxu0
      %v1876 = vadd.f32 0.0, %v1875
      %v1877 = vpop.f32.mrf.mxu0
      %v1878 = vadd.f32 0.0, %v1877
      %1879 = vmatmul.bf16.gmra.mxu0 %v1704
      %v1880 = vpop.f32.mrf.mxu0
      %v1881 = vadd.f32 0.0, %v1880
      %v1882 = vpop.f32.mrf.mxu0
      %v1883 = vadd.f32 0.0, %v1882
      %1884 = vmatmul.bf16.gmra.mxu0 %v1706
      %v1885 = vpop.f32.mrf.mxu0
      %v1886 = vadd.f32 0.0, %v1885
      %v1887 = vpop.f32.mrf.mxu0
      %v1888 = vadd.f32 0.0, %v1887
      %1889 = vmatmul.bf16.gmra.mxu0 %v1708
      %v1890 = vpop.f32.mrf.mxu0
      %v1891 = vadd.f32 0.0, %v1890
      %v1892 = vpop.f32.mrf.mxu0
      %v1893 = vadd.f32 0.0, %v1892
      %1894 = vdwg.mxu0
      %1895 = vmatpush.bf16.msra.mxu0 %v1789
      %1896 = vmatpush.bf16.msra.mxu0 %v1788
      %1897 = vmatpush.bf16.msra.mxu0 %v1787
      %1898 = vmatpush.bf16.msra.mxu0 %v1786
      %1899 = vmatpush.bf16.msra.mxu0 %v1785
      %1900 = vmatpush.bf16.msra.mxu0 %v1784
      %1901 = vmatpush.bf16.msra.mxu0 %v1783
      %1902 = vmatpush.bf16.msra.mxu0 %v1782
      %1903 = vmatmul.bf16.gmra.mxu0 %v1679
      %v1904 = vpop.f32.mrf.mxu0
      %v1905 = vadd.f32 %v1816, %v1904
      %v1906 = vpop.f32.mrf.mxu0
      %v1907 = vadd.f32 %v1818, %v1906
      %1908 = vmatmul.bf16.gmra.mxu0 %v1681
      %v1909 = vpop.f32.mrf.mxu0
      %v1910 = vadd.f32 %v1821, %v1909
      %v1911 = vpop.f32.mrf.mxu0
      %v1912 = vadd.f32 %v1823, %v1911
      %1913 = vmatmul.bf16.gmra.mxu0 %v1683
      %v1914 = vpop.f32.mrf.mxu0
      %v1915 = vadd.f32 %v1826, %v1914
      %v1916 = vpop.f32.mrf.mxu0
      %v1917 = vadd.f32 %v1828, %v1916
      %1918 = vmatmul.bf16.gmra.mxu0 %v1685
      %v1919 = vpop.f32.mrf.mxu0
      %v1920 = vadd.f32 %v1831, %v1919
      %v1921 = vpop.f32.mrf.mxu0
      %v1922 = vadd.f32 %v1833, %v1921
      %1923 = vmatmul.bf16.gmra.mxu0 %v1687
      %v1924 = vpop.f32.mrf.mxu0
      %v1925 = vadd.f32 %v1836, %v1924
      %v1926 = vpop.f32.mrf.mxu0
      %v1927 = vadd.f32 %v1838, %v1926
      %1928 = vmatmul.bf16.gmra.mxu0 %v1689
      %v1929 = vpop.f32.mrf.mxu0
      %v1930 = vadd.f32 %v1841, %v1929
      %v1931 = vpop.f32.mrf.mxu0
      %v1932 = vadd.f32 %v1843, %v1931
      %1933 = vmatmul.bf16.gmra.mxu0 %v1691
      %v1934 = vpop.f32.mrf.mxu0
      %v1935 = vadd.f32 %v1846, %v1934
      %v1936 = vpop.f32.mrf.mxu0
      %v1937 = vadd.f32 %v1848, %v1936
      %1938 = vmatmul.bf16.gmra.mxu0 %v1693
      %v1939 = vpop.f32.mrf.mxu0
      %v1940 = vadd.f32 %v1851, %v1939
      %v1941 = vpop.f32.mrf.mxu0
      %v1942 = vadd.f32 %v1853, %v1941
      %1943 = vmatmul.bf16.gmra.mxu0 %v1695
      %v1944 = vpop.f32.mrf.mxu0
      %v1945 = vadd.f32 %v1856, %v1944
      %v1946 = vpop.f32.mrf.mxu0
      %v1947 = vadd.f32 %v1858, %v1946
      %1948 = vmatmul.bf16.gmra.mxu0 %v1697
      %v1949 = vpop.f32.mrf.mxu0
      %v1950 = vadd.f32 %v1861, %v1949
      %v1951 = vpop.f32.mrf.mxu0
      %v1952 = vadd.f32 %v1863, %v1951
      %1953 = vmatmul.bf16.gmra.mxu0 %v1699
      %v1954 = vpop.f32.mrf.mxu0
      %v1955 = vadd.f32 %v1866, %v1954
      %v1956 = vpop.f32.mrf.mxu0
      %v1957 = vadd.f32 %v1868, %v1956
      %1958 = vmatmul.bf16.gmra.mxu0 %v1701
      %v1959 = vpop.f32.mrf.mxu0
      %v1960 = vadd.f32 %v1871, %v1959
      %v1961 = vpop.f32.mrf.mxu0
      %v1962 = vadd.f32 %v1873, %v1961
      %1963 = vmatmul.bf16.gmra.mxu0 %v1703
      %v1964 = vpop.f32.mrf.mxu0
      %v1965 = vadd.f32 %v1876, %v1964
      %v1966 = vpop.f32.mrf.mxu0
      %v1967 = vadd.f32 %v1878, %v1966
      %1968 = vmatmul.bf16.gmra.mxu0 %v1705
      %v1969 = vpop.f32.mrf.mxu0
      %v1970 = vadd.f32 %v1881, %v1969
      %v1971 = vpop.f32.mrf.mxu0
      %v1972 = vadd.f32 %v1883, %v1971
      %1973 = vmatmul.bf16.gmra.mxu0 %v1707
      %v1974 = vpop.f32.mrf.mxu0
      %v1975 = vadd.f32 %v1886, %v1974
      %v1976 = vpop.f32.mrf.mxu0
      %v1977 = vadd.f32 %v1888, %v1976
      %1978 = vmatmul.bf16.gmra.mxu0 %v1709
      %v1979 = vpop.f32.mrf.mxu0
      %v1980 = vadd.f32 %v1891, %v1979
      %v1981 = vpop.f32.mrf.mxu0
      %v1982 = vadd.f32 %v1893, %v1981
      %1983 = vdwg.mxu0
      %v1984 = vrcp.pop %v1584
      %v1985 = vrcp.pop %v1587
      %v1986 = vrcp.pop %v1590
      %v1987 = vrcp.pop %v1593
      %v1988 = vrcp.pop %v1596
      %v1989 = vrcp.pop %v1599
      %v1990 = vrcp.pop %v1602
      %v1991 = vrcp.pop %v1605
      %v1992 = vrcp.pop %v1608
      %v1993 = vrcp.pop %v1611
      %v1994 = vrcp.pop %v1614
      %v1995 = vrcp.pop %v1617
      %v1996 = vrcp.pop %v1620
      %v1997 = vrcp.pop %v1623
      %v1998 = vrcp.pop %v1626
      %v1999 = vrcp.pop %v1629
      %v2000 = vrcp.pop %v1632
      %v2001 = vrcp.pop %v1635
      %v2002 = vrcp.pop %v1638
      %v2003 = vrcp.pop %v1641
      %v2004 = vrcp.pop %v1644
      %v2005 = vrcp.pop %v1647
      %v2006 = vrcp.pop %v1650
      %v2007 = vrcp.pop %v1653
      %v2008 = vrcp.pop %v1656
      %v2009 = vrcp.pop %v1659
      %v2010 = vrcp.pop %v1662
      %v2011 = vrcp.pop %v1665
      %v2012 = vrcp.pop %v1668
      %v2013 = vrcp.pop %v1671
      %v2014 = vrcp.pop %v1674
      %v2015 = vrcp.pop %v1677
      %v2016 = vmul.f32 %v1905, %v1984
      %v2017 = vmul.f32 %v1907, %v1985
      %v2018 = vmul.f32 %v1910, %v1986
      %v2019 = vmul.f32 %v1912, %v1987
      %v2020 = vmul.f32 %v1915, %v1988
      %v2021 = vmul.f32 %v1917, %v1989
      %v2022 = vmul.f32 %v1920, %v1990
      %v2023 = vmul.f32 %v1922, %v1991
      %v2024 = vmul.f32 %v1925, %v1992
      %v2025 = vmul.f32 %v1927, %v1993
      %v2026 = vmul.f32 %v1930, %v1994
      %v2027 = vmul.f32 %v1932, %v1995
      %v2028 = vmul.f32 %v1935, %v1996
      %v2029 = vmul.f32 %v1937, %v1997
      %v2030 = vmul.f32 %v1940, %v1998
      %v2031 = vmul.f32 %v1942, %v1999
      %v2032 = vmul.f32 %v1945, %v2000
      %v2033 = vmul.f32 %v1947, %v2001
      %v2034 = vmul.f32 %v1950, %v2002
      %v2035 = vmul.f32 %v1952, %v2003
      %v2036 = vmul.f32 %v1955, %v2004
      %v2037 = vmul.f32 %v1957, %v2005
      %v2038 = vmul.f32 %v1960, %v2006
      %v2039 = vmul.f32 %v1962, %v2007
      %v2040 = vmul.f32 %v1965, %v2008
      %v2041 = vmul.f32 %v1967, %v2009
      %v2042 = vmul.f32 %v1970, %v2010
      %v2043 = vmul.f32 %v1972, %v2011
      %v2044 = vmul.f32 %v1975, %v2012
      %v2045 = vmul.f32 %v1977, %v2013
      %v2046 = vmul.f32 %v1980, %v2014
      %v2047 = vmul.f32 %v1982, %v2015
      %v2048 = vpack.c.bf16 %v2017, %v2016
      %v2049 = vpack.c.bf16 %v2019, %v2018
      %v2050 = vpack.c.bf16 %v2021, %v2020
      %v2051 = vpack.c.bf16 %v2023, %v2022
      %v2052 = vpack.c.bf16 %v2025, %v2024
      %v2053 = vpack.c.bf16 %v2027, %v2026
      %v2054 = vpack.c.bf16 %v2029, %v2028
      %v2055 = vpack.c.bf16 %v2031, %v2030
      %v2056 = vpack.c.bf16 %v2033, %v2032
      %v2057 = vpack.c.bf16 %v2035, %v2034
      %v2058 = vpack.c.bf16 %v2037, %v2036
      %v2059 = vpack.c.bf16 %v2039, %v2038
      %v2060 = vpack.c.bf16 %v2041, %v2040
      %v2061 = vpack.c.bf16 %v2043, %v2042
      %v2062 = vpack.c.bf16 %v2045, %v2044
      %v2063 = vpack.c.bf16 %v2047, %v2046
      %v2064 = vld [vmem:[%s3] sm:$0xf]
      %v2065 = vld [vmem:[%s3 + $0x4] sm:$0xf]
      %v2066 = vld [vmem:[%s3 + $0x8] sm:$0xf]
      %v2067 = vld [vmem:[%s3 + $0xc] sm:$0xf]
      %2084 = vrot.lane.b32.xlu0 %v923, 96
      %v2085 = vpop.permute.xlu0 %2084
      %2086 = vrot.lane.b32.xlu0 %v924, 96
      %v2087 = vpop.permute.xlu0 %2086
      %2088 = vrot.lane.b32.xlu0 %v925, 96
      %v2089 = vpop.permute.xlu0 %2088
      %2090 = vrot.lane.b32.xlu0 %v926, 96
      %v2091 = vpop.permute.xlu0 %2090
      %2092 = vrot.lane.b32.xlu0 %v927, 96
      %v2093 = vpop.permute.xlu0 %2092
      %2094 = vrot.lane.b32.xlu0 %v928, 96
      %v2095 = vpop.permute.xlu0 %2094
      %2096 = vrot.lane.b32.xlu0 %v929, 96
      %v2097 = vpop.permute.xlu0 %2096
      %2098 = vrot.lane.b32.xlu0 %v930, 96
      %v2099 = vpop.permute.xlu0 %2098
      %2100 = vrot.lane.b32.xlu0 %v931, 96
      %v2101 = vpop.permute.xlu0 %2100
      %2102 = vrot.lane.b32.xlu0 %v932, 96
      %v2103 = vpop.permute.xlu0 %2102
      %2104 = vrot.lane.b32.xlu0 %v933, 96
      %v2105 = vpop.permute.xlu0 %2104
      %2106 = vrot.lane.b32.xlu0 %v934, 96
      %v2107 = vpop.permute.xlu0 %2106
      %2108 = vrot.lane.b32.xlu0 %v935, 96
      %v2109 = vpop.permute.xlu0 %2108
      %2110 = vrot.lane.b32.xlu0 %v936, 96
      %v2111 = vpop.permute.xlu0 %2110
      %2112 = vrot.lane.b32.xlu0 %v937, 96
      %v2113 = vpop.permute.xlu0 %2112
      %2114 = vrot.lane.b32.xlu0 %v938, 96
      %v2115 = vpop.permute.xlu0 %2114
      %2116 = vrot.lane.b32.xlu0 %v1003, 96
      %v2117 = vpop.permute.xlu0 %2116
      %2118 = vrot.lane.b32.xlu0 %v1004, 96
      %v2119 = vpop.permute.xlu0 %2118
      %2120 = vrot.lane.b32.xlu0 %v1005, 96
      %v2121 = vpop.permute.xlu0 %2120
      %2122 = vrot.lane.b32.xlu0 %v1006, 96
      %v2123 = vpop.permute.xlu0 %2122
      %2124 = vrot.lane.b32.xlu0 %v1007, 96
      %v2125 = vpop.permute.xlu0 %2124
      %2126 = vrot.lane.b32.xlu0 %v1008, 96
      %v2127 = vpop.permute.xlu0 %2126
      %2128 = vrot.lane.b32.xlu0 %v1009, 96
      %v2129 = vpop.permute.xlu0 %2128
      %2130 = vrot.lane.b32.xlu0 %v1010, 96
      %v2131 = vpop.permute.xlu0 %2130
      %2132 = vrot.lane.b32.xlu0 %v1011, 96
      %v2133 = vpop.permute.xlu0 %2132
      %2134 = vrot.lane.b32.xlu0 %v1012, 96
      %v2135 = vpop.permute.xlu0 %2134
      %2136 = vrot.lane.b32.xlu0 %v1013, 96
      %v2137 = vpop.permute.xlu0 %2136
      %2138 = vrot.lane.b32.xlu0 %v1014, 96
      %v2139 = vpop.permute.xlu0 %2138
      %2140 = vrot.lane.b32.xlu0 %v1015, 96
      %v2141 = vpop.permute.xlu0 %2140
      %2142 = vrot.lane.b32.xlu0 %v1016, 96
      %v2143 = vpop.permute.xlu0 %2142
      %2144 = vrot.lane.b32.xlu0 %v1017, 96
      %v2145 = vpop.permute.xlu0 %2144
      %2146 = vrot.lane.b32.xlu0 %v1018, 96
      %v2147 = vpop.permute.xlu0 %2146
      %v2149 = vsel %vm1019, %v2085, 0
      %v2152 = vsel %vm1019, %v2087, 0
      %v2155 = vsel %vm1019, %v2089, 0
      %v2158 = vsel %vm1019, %v2091, 0
      %v2161 = vsel %vm1019, %v2093, 0
      %v2164 = vsel %vm1019, %v2095, 0
      %v2167 = vsel %vm1019, %v2097, 0
      %v2170 = vsel %vm1019, %v2099, 0
      %v2173 = vsel %vm1019, %v2101, 0
      %v2176 = vsel %vm1019, %v2103, 0
      %v2179 = vsel %vm1019, %v2105, 0
      %v2182 = vsel %vm1019, %v2107, 0
      %v2185 = vsel %vm1019, %v2109, 0
      %v2188 = vsel %vm1019, %v2111, 0
      %v2191 = vsel %vm1019, %v2113, 0
      %v2194 = vsel %vm1019, %v2115, 0
      %v2197 = vsel %vm1019, %v2117, 0
      %v2200 = vsel %vm1019, %v2119, 0
      %v2203 = vsel %vm1019, %v2121, 0
      %v2206 = vsel %vm1019, %v2123, 0
      %v2209 = vsel %vm1019, %v2125, 0
      %v2212 = vsel %vm1019, %v2127, 0
      %v2215 = vsel %vm1019, %v2129, 0
      %v2218 = vsel %vm1019, %v2131, 0
      %v2221 = vsel %vm1019, %v2133, 0
      %v2224 = vsel %vm1019, %v2135, 0
      %v2227 = vsel %vm1019, %v2137, 0
      %v2230 = vsel %vm1019, %v2139, 0
      %v2233 = vsel %vm1019, %v2141, 0
      %v2236 = vsel %vm1019, %v2143, 0
      %v2239 = vsel %vm1019, %v2145, 0
      %v2242 = vsel %vm1019, %v2147, 0
      %2244 = vmatpush.bf16.xpose.msra.mxu0 %v2218
      %2245 = vmatpush.bf16.xpose.msra.mxu0 %v2215
      %2246 = vmatpush.bf16.xpose.msra.mxu0 %v2212
      %2247 = vmatpush.bf16.xpose.msra.mxu0 %v2209
      %2248 = vmatpush.bf16.xpose.msra.mxu0 %v2206
      %2249 = vmatpush.bf16.xpose.msra.mxu0 %v2203
      %2250 = vmatpush.bf16.xpose.msra.mxu0 %v2200
      %2251 = vmatpush.bf16.xpose.msra.mxu0 %v2197
      %2252 = vmatmul.bf16.gmra.mxu0 %v2149
      %v2253 = vpop.f32.mrf.mxu0
      %v2254 = vadd.f32 0.0, %v2253
      %v2255 = vpop.f32.mrf.mxu0
      %v2256 = vadd.f32 0.0, %v2255
      %2257 = vmatmul.bf16.gmra.mxu0 %v2152
      %v2258 = vpop.f32.mrf.mxu0
      %v2259 = vadd.f32 0.0, %v2258
      %v2260 = vpop.f32.mrf.mxu0
      %v2261 = vadd.f32 0.0, %v2260
      %2262 = vmatmul.bf16.gmra.mxu0 %v2155
      %v2263 = vpop.f32.mrf.mxu0
      %v2264 = vadd.f32 0.0, %v2263
      %v2265 = vpop.f32.mrf.mxu0
      %v2266 = vadd.f32 0.0, %v2265
      %2267 = vmatmul.bf16.gmra.mxu0 %v2158
      %v2268 = vpop.f32.mrf.mxu0
      %v2269 = vadd.f32 0.0, %v2268
      %v2270 = vpop.f32.mrf.mxu0
      %v2271 = vadd.f32 0.0, %v2270
      %2272 = vmatmul.bf16.gmra.mxu0 %v2161
      %v2273 = vpop.f32.mrf.mxu0
      %v2274 = vadd.f32 0.0, %v2273
      %v2275 = vpop.f32.mrf.mxu0
      %v2276 = vadd.f32 0.0, %v2275
      %2277 = vmatmul.bf16.gmra.mxu0 %v2164
      %v2278 = vpop.f32.mrf.mxu0
      %v2279 = vadd.f32 0.0, %v2278
      %v2280 = vpop.f32.mrf.mxu0
      %v2281 = vadd.f32 0.0, %v2280
      %2282 = vmatmul.bf16.gmra.mxu0 %v2167
      %v2283 = vpop.f32.mrf.mxu0
      %v2284 = vadd.f32 0.0, %v2283
      %v2285 = vpop.f32.mrf.mxu0
      %v2286 = vadd.f32 0.0, %v2285
      %2287 = vmatmul.bf16.gmra.mxu0 %v2170
      %v2288 = vpop.f32.mrf.mxu0
      %v2289 = vadd.f32 0.0, %v2288
      %v2290 = vpop.f32.mrf.mxu0
      %v2291 = vadd.f32 0.0, %v2290
      %2292 = vmatmul.bf16.gmra.mxu0 %v2173
      %v2293 = vpop.f32.mrf.mxu0
      %v2294 = vadd.f32 0.0, %v2293
      %v2295 = vpop.f32.mrf.mxu0
      %v2296 = vadd.f32 0.0, %v2295
      %2297 = vmatmul.bf16.gmra.mxu0 %v2176
      %v2298 = vpop.f32.mrf.mxu0
      %v2299 = vadd.f32 0.0, %v2298
      %v2300 = vpop.f32.mrf.mxu0
      %v2301 = vadd.f32 0.0, %v2300
      %2302 = vmatmul.bf16.gmra.mxu0 %v2179
      %v2303 = vpop.f32.mrf.mxu0
      %v2304 = vadd.f32 0.0, %v2303
      %v2305 = vpop.f32.mrf.mxu0
      %v2306 = vadd.f32 0.0, %v2305
      %2307 = vmatmul.bf16.gmra.mxu0 %v2182
      %v2308 = vpop.f32.mrf.mxu0
      %v2309 = vadd.f32 0.0, %v2308
      %v2310 = vpop.f32.mrf.mxu0
      %v2311 = vadd.f32 0.0, %v2310
      %2312 = vmatmul.bf16.gmra.mxu0 %v2185
      %v2313 = vpop.f32.mrf.mxu0
      %v2314 = vadd.f32 0.0, %v2313
      %v2315 = vpop.f32.mrf.mxu0
      %v2316 = vadd.f32 0.0, %v2315
      %2317 = vmatmul.bf16.gmra.mxu0 %v2188
      %v2318 = vpop.f32.mrf.mxu0
      %v2319 = vadd.f32 0.0, %v2318
      %v2320 = vpop.f32.mrf.mxu0
      %v2321 = vadd.f32 0.0, %v2320
      %2322 = vmatmul.bf16.gmra.mxu0 %v2191
      %v2323 = vpop.f32.mrf.mxu0
      %v2324 = vadd.f32 0.0, %v2323
      %v2325 = vpop.f32.mrf.mxu0
      %v2326 = vadd.f32 0.0, %v2325
      %2327 = vmatmul.bf16.gmra.mxu0 %v2194
      %v2328 = vpop.f32.mrf.mxu0
      %v2329 = vadd.f32 0.0, %v2328
      %v2330 = vpop.f32.mrf.mxu0
      %v2331 = vadd.f32 0.0, %v2330
      %2332 = vdwg.mxu0
      %2333 = vmatpush.bf16.xpose.msra.mxu0 %v2242
      %2334 = vmatpush.bf16.xpose.msra.mxu0 %v2239
      %2335 = vmatpush.bf16.xpose.msra.mxu0 %v2236
      %2336 = vmatpush.bf16.xpose.msra.mxu0 %v2233
      %2337 = vmatpush.bf16.xpose.msra.mxu0 %v2230
      %2338 = vmatpush.bf16.xpose.msra.mxu0 %v2227
      %2339 = vmatpush.bf16.xpose.msra.mxu0 %v2224
      %2340 = vmatpush.bf16.xpose.msra.mxu0 %v2221
      %2341 = vmatmul.bf16.gmra.mxu0 %v2149
      %v2342 = vpop.f32.mrf.mxu0
      %v2343 = vadd.f32 0.0, %v2342
      %v2344 = vpop.f32.mrf.mxu0
      %v2345 = vadd.f32 0.0, %v2344
      %2346 = vmatmul.bf16.gmra.mxu0 %v2152
      %v2347 = vpop.f32.mrf.mxu0
      %v2348 = vadd.f32 0.0, %v2347
      %v2349 = vpop.f32.mrf.mxu0
      %v2350 = vadd.f32 0.0, %v2349
      %2351 = vmatmul.bf16.gmra.mxu0 %v2155
      %v2352 = vpop.f32.mrf.mxu0
      %v2353 = vadd.f32 0.0, %v2352
      %v2354 = vpop.f32.mrf.mxu0
      %v2355 = vadd.f32 0.0, %v2354
      %2356 = vmatmul.bf16.gmra.mxu0 %v2158
      %v2357 = vpop.f32.mrf.mxu0
      %v2358 = vadd.f32 0.0, %v2357
      %v2359 = vpop.f32.mrf.mxu0
      %v2360 = vadd.f32 0.0, %v2359
      %2361 = vmatmul.bf16.gmra.mxu0 %v2161
      %v2362 = vpop.f32.mrf.mxu0
      %v2363 = vadd.f32 0.0, %v2362
      %v2364 = vpop.f32.mrf.mxu0
      %v2365 = vadd.f32 0.0, %v2364
      %2366 = vmatmul.bf16.gmra.mxu0 %v2164
      %v2367 = vpop.f32.mrf.mxu0
      %v2368 = vadd.f32 0.0, %v2367
      %v2369 = vpop.f32.mrf.mxu0
      %v2370 = vadd.f32 0.0, %v2369
      %2371 = vmatmul.bf16.gmra.mxu0 %v2167
      %v2372 = vpop.f32.mrf.mxu0
      %v2373 = vadd.f32 0.0, %v2372
      %v2374 = vpop.f32.mrf.mxu0
      %v2375 = vadd.f32 0.0, %v2374
      %2376 = vmatmul.bf16.gmra.mxu0 %v2170
      %v2377 = vpop.f32.mrf.mxu0
      %v2378 = vadd.f32 0.0, %v2377
      %v2379 = vpop.f32.mrf.mxu0
      %v2380 = vadd.f32 0.0, %v2379
      %2381 = vmatmul.bf16.gmra.mxu0 %v2173
      %v2382 = vpop.f32.mrf.mxu0
      %v2383 = vadd.f32 0.0, %v2382
      %v2384 = vpop.f32.mrf.mxu0
      %v2385 = vadd.f32 0.0, %v2384
      %2386 = vmatmul.bf16.gmra.mxu0 %v2176
      %v2387 = vpop.f32.mrf.mxu0
      %v2388 = vadd.f32 0.0, %v2387
      %v2389 = vpop.f32.mrf.mxu0
      %v2390 = vadd.f32 0.0, %v2389
      %2391 = vmatmul.bf16.gmra.mxu0 %v2179
      %v2392 = vpop.f32.mrf.mxu0
      %v2393 = vadd.f32 0.0, %v2392
      %v2394 = vpop.f32.mrf.mxu0
      %v2395 = vadd.f32 0.0, %v2394
      %2396 = vmatmul.bf16.gmra.mxu0 %v2182
      %v2397 = vpop.f32.mrf.mxu0
      %v2398 = vadd.f32 0.0, %v2397
      %v2399 = vpop.f32.mrf.mxu0
      %v2400 = vadd.f32 0.0, %v2399
      %2401 = vmatmul.bf16.gmra.mxu0 %v2185
      %v2402 = vpop.f32.mrf.mxu0
      %v2403 = vadd.f32 0.0, %v2402
      %v2404 = vpop.f32.mrf.mxu0
      %v2405 = vadd.f32 0.0, %v2404
      %2406 = vmatmul.bf16.gmra.mxu0 %v2188
      %v2407 = vpop.f32.mrf.mxu0
      %v2408 = vadd.f32 0.0, %v2407
      %v2409 = vpop.f32.mrf.mxu0
      %v2410 = vadd.f32 0.0, %v2409
      %2411 = vmatmul.bf16.gmra.mxu0 %v2191
      %v2412 = vpop.f32.mrf.mxu0
      %v2413 = vadd.f32 0.0, %v2412
      %v2414 = vpop.f32.mrf.mxu0
      %v2415 = vadd.f32 0.0, %v2414
      %2416 = vmatmul.bf16.gmra.mxu0 %v2194
      %v2417 = vpop.f32.mrf.mxu0
      %v2418 = vadd.f32 0.0, %v2417
      %v2419 = vpop.f32.mrf.mxu0
      %v2420 = vadd.f32 0.0, %v2419
      %2421 = vdwg.mxu0
      %v2422 = vmax.f32 %v2254, %v2343
      %2423 = vmax.xlane.f32.xlu0 %v2422
      %v2424 = vpop.xlane.xlu0 %2423
      %v2425 = vmax.f32 %v2256, %v2345
      %2426 = vmax.xlane.f32.xlu0 %v2425
      %v2427 = vpop.xlane.xlu0 %2426
      %v2428 = vmax.f32 %v2259, %v2348
      %2429 = vmax.xlane.f32.xlu0 %v2428
      %v2430 = vpop.xlane.xlu0 %2429
      %v2431 = vmax.f32 %v2261, %v2350
      %2432 = vmax.xlane.f32.xlu0 %v2431
      %v2433 = vpop.xlane.xlu0 %2432
      %v2434 = vmax.f32 %v2264, %v2353
      %2435 = vmax.xlane.f32.xlu0 %v2434
      %v2436 = vpop.xlane.xlu0 %2435
      %v2437 = vmax.f32 %v2266, %v2355
      %2438 = vmax.xlane.f32.xlu0 %v2437
      %v2439 = vpop.xlane.xlu0 %2438
      %v2440 = vmax.f32 %v2269, %v2358
      %2441 = vmax.xlane.f32.xlu0 %v2440
      %v2442 = vpop.xlane.xlu0 %2441
      %v2443 = vmax.f32 %v2271, %v2360
      %2444 = vmax.xlane.f32.xlu0 %v2443
      %v2445 = vpop.xlane.xlu0 %2444
      %v2446 = vmax.f32 %v2274, %v2363
      %2447 = vmax.xlane.f32.xlu0 %v2446
      %v2448 = vpop.xlane.xlu0 %2447
      %v2449 = vmax.f32 %v2276, %v2365
      %2450 = vmax.xlane.f32.xlu0 %v2449
      %v2451 = vpop.xlane.xlu0 %2450
      %v2452 = vmax.f32 %v2279, %v2368
      %2453 = vmax.xlane.f32.xlu0 %v2452
      %v2454 = vpop.xlane.xlu0 %2453
      %v2455 = vmax.f32 %v2281, %v2370
      %2456 = vmax.xlane.f32.xlu0 %v2455
      %v2457 = vpop.xlane.xlu0 %2456
      %v2458 = vmax.f32 %v2284, %v2373
      %2459 = vmax.xlane.f32.xlu0 %v2458
      %v2460 = vpop.xlane.xlu0 %2459
      %v2461 = vmax.f32 %v2286, %v2375
      %2462 = vmax.xlane.f32.xlu0 %v2461
      %v2463 = vpop.xlane.xlu0 %2462
      %v2464 = vmax.f32 %v2289, %v2378
      %2465 = vmax.xlane.f32.xlu0 %v2464
      %v2466 = vpop.xlane.xlu0 %2465
      %v2467 = vmax.f32 %v2291, %v2380
      %2468 = vmax.xlane.f32.xlu0 %v2467
      %v2469 = vpop.xlane.xlu0 %2468
      %v2470 = vmax.f32 %v2294, %v2383
      %2471 = vmax.xlane.f32.xlu0 %v2470
      %v2472 = vpop.xlane.xlu0 %2471
      %v2473 = vmax.f32 %v2296, %v2385
      %2474 = vmax.xlane.f32.xlu0 %v2473
      %v2475 = vpop.xlane.xlu0 %2474
      %v2476 = vmax.f32 %v2299, %v2388
      %2477 = vmax.xlane.f32.xlu0 %v2476
      %v2478 = vpop.xlane.xlu0 %2477
      %v2479 = vmax.f32 %v2301, %v2390
      %2480 = vmax.xlane.f32.xlu0 %v2479
      %v2481 = vpop.xlane.xlu0 %2480
      %v2482 = vmax.f32 %v2304, %v2393
      %2483 = vmax.xlane.f32.xlu0 %v2482
      %v2484 = vpop.xlane.xlu0 %2483
      %v2485 = vmax.f32 %v2306, %v2395
      %2486 = vmax.xlane.f32.xlu0 %v2485
      %v2487 = vpop.xlane.xlu0 %2486
      %v2488 = vmax.f32 %v2309, %v2398
      %2489 = vmax.xlane.f32.xlu0 %v2488
      %v2490 = vpop.xlane.xlu0 %2489
      %v2491 = vmax.f32 %v2311, %v2400
      %2492 = vmax.xlane.f32.xlu0 %v2491
      %v2493 = vpop.xlane.xlu0 %2492
      %v2494 = vmax.f32 %v2314, %v2403
      %2495 = vmax.xlane.f32.xlu0 %v2494
      %v2496 = vpop.xlane.xlu0 %2495
      %v2497 = vmax.f32 %v2316, %v2405
      %2498 = vmax.xlane.f32.xlu0 %v2497
      %v2499 = vpop.xlane.xlu0 %2498
      %v2500 = vmax.f32 %v2319, %v2408
      %2501 = vmax.xlane.f32.xlu0 %v2500
      %v2502 = vpop.xlane.xlu0 %2501
      %v2503 = vmax.f32 %v2321, %v2410
      %2504 = vmax.xlane.f32.xlu0 %v2503
      %v2505 = vpop.xlane.xlu0 %2504
      %v2506 = vmax.f32 %v2324, %v2413
      %2507 = vmax.xlane.f32.xlu0 %v2506
      %v2508 = vpop.xlane.xlu0 %2507
      %v2509 = vmax.f32 %v2326, %v2415
      %2510 = vmax.xlane.f32.xlu0 %v2509
      %v2511 = vpop.xlane.xlu0 %2510
      %v2512 = vmax.f32 %v2329, %v2418
      %2513 = vmax.xlane.f32.xlu0 %v2512
      %v2514 = vpop.xlane.xlu0 %2513
      %v2515 = vmax.f32 %v2331, %v2420
      %2516 = vmax.xlane.f32.xlu0 %v2515
      %v2517 = vpop.xlane.xlu0 %2516
      %v2518 = vsub.f32 %v2254, %v2424
      %v2519 = vsub.f32 %v2343, %v2424
      %v2520 = vsub.f32 %v2256, %v2427
      %v2521 = vsub.f32 %v2345, %v2427
      %v2522 = vsub.f32 %v2259, %v2430
      %v2523 = vsub.f32 %v2348, %v2430
      %v2524 = vsub.f32 %v2261, %v2433
      %v2525 = vsub.f32 %v2350, %v2433
      %v2526 = vsub.f32 %v2264, %v2436
      %v2527 = vsub.f32 %v2353, %v2436
      %v2528 = vsub.f32 %v2266, %v2439
      %v2529 = vsub.f32 %v2355, %v2439
      %v2530 = vsub.f32 %v2269, %v2442
      %v2531 = vsub.f32 %v2358, %v2442
      %v2532 = vsub.f32 %v2271, %v2445
      %v2533 = vsub.f32 %v2360, %v2445
      %v2534 = vsub.f32 %v2274, %v2448
      %v2535 = vsub.f32 %v2363, %v2448
      %v2536 = vsub.f32 %v2276, %v2451
      %v2537 = vsub.f32 %v2365, %v2451
      %v2538 = vsub.f32 %v2279, %v2454
      %v2539 = vsub.f32 %v2368, %v2454
      %v2540 = vsub.f32 %v2281, %v2457
      %v2541 = vsub.f32 %v2370, %v2457
      %v2542 = vsub.f32 %v2284, %v2460
      %v2543 = vsub.f32 %v2373, %v2460
      %v2544 = vsub.f32 %v2286, %v2463
      %v2545 = vsub.f32 %v2375, %v2463
      %v2546 = vsub.f32 %v2289, %v2466
      %v2547 = vsub.f32 %v2378, %v2466
      %v2548 = vsub.f32 %v2291, %v2469
      %v2549 = vsub.f32 %v2380, %v2469
      %v2550 = vsub.f32 %v2294, %v2472
      %v2551 = vsub.f32 %v2383, %v2472
      %v2552 = vsub.f32 %v2296, %v2475
      %v2553 = vsub.f32 %v2385, %v2475
      %v2554 = vsub.f32 %v2299, %v2478
      %v2555 = vsub.f32 %v2388, %v2478
      %v2556 = vsub.f32 %v2301, %v2481
      %v2557 = vsub.f32 %v2390, %v2481
      %v2558 = vsub.f32 %v2304, %v2484
      %v2559 = vsub.f32 %v2393, %v2484
      %v2560 = vsub.f32 %v2306, %v2487
      %v2561 = vsub.f32 %v2395, %v2487
      %v2562 = vsub.f32 %v2309, %v2490
      %v2563 = vsub.f32 %v2398, %v2490
      %v2564 = vsub.f32 %v2311, %v2493
      %v2565 = vsub.f32 %v2400, %v2493
      %v2566 = vsub.f32 %v2314, %v2496
      %v2567 = vsub.f32 %v2403, %v2496
      %v2568 = vsub.f32 %v2316, %v2499
      %v2569 = vsub.f32 %v2405, %v2499
      %v2570 = vsub.f32 %v2319, %v2502
      %v2571 = vsub.f32 %v2408, %v2502
      %v2572 = vsub.f32 %v2321, %v2505
      %v2573 = vsub.f32 %v2410, %v2505
      %v2574 = vsub.f32 %v2324, %v2508
      %v2575 = vsub.f32 %v2413, %v2508
      %v2576 = vsub.f32 %v2326, %v2511
      %v2577 = vsub.f32 %v2415, %v2511
      %v2578 = vsub.f32 %v2329, %v2514
      %v2579 = vsub.f32 %v2418, %v2514
      %v2580 = vsub.f32 %v2331, %v2517
      %v2581 = vsub.f32 %v2420, %v2517
      %v2582 = vmul.f32 %v2518, 1.442695
      %v2583 = vpow.pop %v2582
      %v2584 = vmul.f32 %v2519, 1.442695
      %v2585 = vpow.pop %v2584
      %v2586 = vmul.f32 %v2520, 1.442695
      %v2587 = vpow.pop %v2586
      %v2588 = vmul.f32 %v2521, 1.442695
      %v2589 = vpow.pop %v2588
      %v2590 = vmul.f32 %v2522, 1.442695
      %v2591 = vpow.pop %v2590
      %v2592 = vmul.f32 %v2523, 1.442695
      %v2593 = vpow.pop %v2592
      %v2594 = vmul.f32 %v2524, 1.442695
      %v2595 = vpow.pop %v2594
      %v2596 = vmul.f32 %v2525, 1.442695
      %v2597 = vpow.pop %v2596
      %v2598 = vmul.f32 %v2526, 1.442695
      %v2599 = vpow.pop %v2598
      %v2600 = vmul.f32 %v2527, 1.442695
      %v2601 = vpow.pop %v2600
      %v2602 = vmul.f32 %v2528, 1.442695
      %v2603 = vpow.pop %v2602
      %v2604 = vmul.f32 %v2529, 1.442695
      %v2605 = vpow.pop %v2604
      %v2606 = vmul.f32 %v2530, 1.442695
      %v2607 = vpow.pop %v2606
      %v2608 = vmul.f32 %v2531, 1.442695
      %v2609 = vpow.pop %v2608
      %v2610 = vmul.f32 %v2532, 1.442695
      %v2611 = vpow.pop %v2610
      %v2612 = vmul.f32 %v2533, 1.442695
      %v2613 = vpow.pop %v2612
      %v2614 = vmul.f32 %v2534, 1.442695
      %v2615 = vpow.pop %v2614
      %v2616 = vmul.f32 %v2535, 1.442695
      %v2617 = vpow.pop %v2616
      %v2618 = vmul.f32 %v2536, 1.442695
      %v2619 = vpow.pop %v2618
      %v2620 = vmul.f32 %v2537, 1.442695
      %v2621 = vpow.pop %v2620
      %v2622 = vmul.f32 %v2538, 1.442695
      %v2623 = vpow.pop %v2622
      %v2624 = vmul.f32 %v2539, 1.442695
      %v2625 = vpow.pop %v2624
      %v2626 = vmul.f32 %v2540, 1.442695
      %v2627 = vpow.pop %v2626
      %v2628 = vmul.f32 %v2541, 1.442695
      %v2629 = vpow.pop %v2628
      %v2630 = vmul.f32 %v2542, 1.442695
      %v2631 = vpow.pop %v2630
      %v2632 = vmul.f32 %v2543, 1.442695
      %v2633 = vpow.pop %v2632
      %v2634 = vmul.f32 %v2544, 1.442695
      %v2635 = vpow.pop %v2634
      %v2636 = vmul.f32 %v2545, 1.442695
      %v2637 = vpow.pop %v2636
      %v2638 = vmul.f32 %v2546, 1.442695
      %v2639 = vpow.pop %v2638
      %v2640 = vmul.f32 %v2547, 1.442695
      %v2641 = vpow.pop %v2640
      %v2642 = vmul.f32 %v2548, 1.442695
      %v2643 = vpow.pop %v2642
      %v2644 = vmul.f32 %v2549, 1.442695
      %v2645 = vpow.pop %v2644
      %v2646 = vmul.f32 %v2550, 1.442695
      %v2647 = vpow.pop %v2646
      %v2648 = vmul.f32 %v2551, 1.442695
      %v2649 = vpow.pop %v2648
      %v2650 = vmul.f32 %v2552, 1.442695
      %v2651 = vpow.pop %v2650
      %v2652 = vmul.f32 %v2553, 1.442695
      %v2653 = vpow.pop %v2652
      %v2654 = vmul.f32 %v2554, 1.442695
      %v2655 = vpow.pop %v2654
      %v2656 = vmul.f32 %v2555, 1.442695
      %v2657 = vpow.pop %v2656
      %v2658 = vmul.f32 %v2556, 1.442695
      %v2659 = vpow.pop %v2658
      %v2660 = vmul.f32 %v2557, 1.442695
      %v2661 = vpow.pop %v2660
      %v2662 = vmul.f32 %v2558, 1.442695
      %v2663 = vpow.pop %v2662
      %v2664 = vmul.f32 %v2559, 1.442695
      %v2665 = vpow.pop %v2664
      %v2666 = vmul.f32 %v2560, 1.442695
      %v2667 = vpow.pop %v2666
      %v2668 = vmul.f32 %v2561, 1.442695
      %v2669 = vpow.pop %v2668
      %v2670 = vmul.f32 %v2562, 1.442695
      %v2671 = vpow.pop %v2670
      %v2672 = vmul.f32 %v2563, 1.442695
      %v2673 = vpow.pop %v2672
      %v2674 = vmul.f32 %v2564, 1.442695
      %v2675 = vpow.pop %v2674
      %v2676 = vmul.f32 %v2565, 1.442695
      %v2677 = vpow.pop %v2676
      %v2678 = vmul.f32 %v2566, 1.442695
      %v2679 = vpow.pop %v2678
      %v2680 = vmul.f32 %v2567, 1.442695
      %v2681 = vpow.pop %v2680
      %v2682 = vmul.f32 %v2568, 1.442695
      %v2683 = vpow.pop %v2682
      %v2684 = vmul.f32 %v2569, 1.442695
      %v2685 = vpow.pop %v2684
      %v2686 = vmul.f32 %v2570, 1.442695
      %v2687 = vpow.pop %v2686
      %v2688 = vmul.f32 %v2571, 1.442695
      %v2689 = vpow.pop %v2688
      %v2690 = vmul.f32 %v2572, 1.442695
      %v2691 = vpow.pop %v2690
      %v2692 = vmul.f32 %v2573, 1.442695
      %v2693 = vpow.pop %v2692
      %v2694 = vmul.f32 %v2574, 1.442695
      %v2695 = vpow.pop %v2694
      %v2696 = vmul.f32 %v2575, 1.442695
      %v2697 = vpow.pop %v2696
      %v2698 = vmul.f32 %v2576, 1.442695
      %v2699 = vpow.pop %v2698
      %v2700 = vmul.f32 %v2577, 1.442695
      %v2701 = vpow.pop %v2700
      %v2702 = vmul.f32 %v2578, 1.442695
      %v2703 = vpow.pop %v2702
      %v2704 = vmul.f32 %v2579, 1.442695
      %v2705 = vpow.pop %v2704
      %v2706 = vmul.f32 %v2580, 1.442695
      %v2707 = vpow.pop %v2706
      %v2708 = vmul.f32 %v2581, 1.442695
      %v2709 = vpow.pop %v2708
      %v2710 = vadd.f32 %v2583, %v2585
      %2711 = vadd.xlane.f32.xlu0 %v2710
      %v2712 = vpop.xlane.xlu0 %2711
      %v2713 = vadd.f32 %v2587, %v2589
      %2714 = vadd.xlane.f32.xlu0 %v2713
      %v2715 = vpop.xlane.xlu0 %2714
      %v2716 = vadd.f32 %v2591, %v2593
      %2717 = vadd.xlane.f32.xlu0 %v2716
      %v2718 = vpop.xlane.xlu0 %2717
      %v2719 = vadd.f32 %v2595, %v2597
      %2720 = vadd.xlane.f32.xlu0 %v2719
      %v2721 = vpop.xlane.xlu0 %2720
      %v2722 = vadd.f32 %v2599, %v2601
      %2723 = vadd.xlane.f32.xlu0 %v2722
      %v2724 = vpop.xlane.xlu0 %2723
      %v2725 = vadd.f32 %v2603, %v2605
      %2726 = vadd.xlane.f32.xlu0 %v2725
      %v2727 = vpop.xlane.xlu0 %2726
      %v2728 = vadd.f32 %v2607, %v2609
      %2729 = vadd.xlane.f32.xlu0 %v2728
      %v2730 = vpop.xlane.xlu0 %2729
      %v2731 = vadd.f32 %v2611, %v2613
      %2732 = vadd.xlane.f32.xlu0 %v2731
      %v2733 = vpop.xlane.xlu0 %2732
      %v2734 = vadd.f32 %v2615, %v2617
      %2735 = vadd.xlane.f32.xlu0 %v2734
      %v2736 = vpop.xlane.xlu0 %2735
      %v2737 = vadd.f32 %v2619, %v2621
      %2738 = vadd.xlane.f32.xlu0 %v2737
      %v2739 = vpop.xlane.xlu0 %2738
      %v2740 = vadd.f32 %v2623, %v2625
      %2741 = vadd.xlane.f32.xlu0 %v2740
      %v2742 = vpop.xlane.xlu0 %2741
      %v2743 = vadd.f32 %v2627, %v2629
      %2744 = vadd.xlane.f32.xlu0 %v2743
      %v2745 = vpop.xlane.xlu0 %2744
      %v2746 = vadd.f32 %v2631, %v2633
      %2747 = vadd.xlane.f32.xlu0 %v2746
      %v2748 = vpop.xlane.xlu0 %2747
      %v2749 = vadd.f32 %v2635, %v2637
      %2750 = vadd.xlane.f32.xlu0 %v2749
      %v2751 = vpop.xlane.xlu0 %2750
      %v2752 = vadd.f32 %v2639, %v2641
      %2753 = vadd.xlane.f32.xlu0 %v2752
      %v2754 = vpop.xlane.xlu0 %2753
      %v2755 = vadd.f32 %v2643, %v2645
      %2756 = vadd.xlane.f32.xlu0 %v2755
      %v2757 = vpop.xlane.xlu0 %2756
      %v2758 = vadd.f32 %v2647, %v2649
      %2759 = vadd.xlane.f32.xlu0 %v2758
      %v2760 = vpop.xlane.xlu0 %2759
      %v2761 = vadd.f32 %v2651, %v2653
      %2762 = vadd.xlane.f32.xlu0 %v2761
      %v2763 = vpop.xlane.xlu0 %2762
      %v2764 = vadd.f32 %v2655, %v2657
      %2765 = vadd.xlane.f32.xlu0 %v2764
      %v2766 = vpop.xlane.xlu0 %2765
      %v2767 = vadd.f32 %v2659, %v2661
      %2768 = vadd.xlane.f32.xlu0 %v2767
      %v2769 = vpop.xlane.xlu0 %2768
      %v2770 = vadd.f32 %v2663, %v2665
      %2771 = vadd.xlane.f32.xlu0 %v2770
      %v2772 = vpop.xlane.xlu0 %2771
      %v2773 = vadd.f32 %v2667, %v2669
      %2774 = vadd.xlane.f32.xlu0 %v2773
      %v2775 = vpop.xlane.xlu0 %2774
      %v2776 = vadd.f32 %v2671, %v2673
      %2777 = vadd.xlane.f32.xlu0 %v2776
      %v2778 = vpop.xlane.xlu0 %2777
      %v2779 = vadd.f32 %v2675, %v2677
      %2780 = vadd.xlane.f32.xlu0 %v2779
      %v2781 = vpop.xlane.xlu0 %2780
      %v2782 = vadd.f32 %v2679, %v2681
      %2783 = vadd.xlane.f32.xlu0 %v2782
      %v2784 = vpop.xlane.xlu0 %2783
      %v2785 = vadd.f32 %v2683, %v2685
      %2786 = vadd.xlane.f32.xlu0 %v2785
      %v2787 = vpop.xlane.xlu0 %2786
      %v2788 = vadd.f32 %v2687, %v2689
      %2789 = vadd.xlane.f32.xlu0 %v2788
      %v2790 = vpop.xlane.xlu0 %2789
      %v2791 = vadd.f32 %v2691, %v2693
      %2792 = vadd.xlane.f32.xlu0 %v2791
      %v2793 = vpop.xlane.xlu0 %2792
      %v2794 = vadd.f32 %v2695, %v2697
      %2795 = vadd.xlane.f32.xlu0 %v2794
      %v2796 = vpop.xlane.xlu0 %2795
      %v2797 = vadd.f32 %v2699, %v2701
      %2798 = vadd.xlane.f32.xlu0 %v2797
      %v2799 = vpop.xlane.xlu0 %2798
      %v2800 = vadd.f32 %v2703, %v2705
      %2801 = vadd.xlane.f32.xlu0 %v2800
      %v2802 = vpop.xlane.xlu0 %2801
      %v2803 = vadd.f32 %v2707, %v2709
      %2804 = vadd.xlane.f32.xlu0 %v2803
      %v2805 = vpop.xlane.xlu0 %2804
      %v2806 = vpack.c.bf16 %v2587, %v2583
      %v2807 = vpack.c.bf16 %v2589, %v2585
      %v2808 = vpack.c.bf16 %v2595, %v2591
      %v2809 = vpack.c.bf16 %v2597, %v2593
      %v2810 = vpack.c.bf16 %v2603, %v2599
      %v2811 = vpack.c.bf16 %v2605, %v2601
      %v2812 = vpack.c.bf16 %v2611, %v2607
      %v2813 = vpack.c.bf16 %v2613, %v2609
      %v2814 = vpack.c.bf16 %v2619, %v2615
      %v2815 = vpack.c.bf16 %v2621, %v2617
      %v2816 = vpack.c.bf16 %v2627, %v2623
      %v2817 = vpack.c.bf16 %v2629, %v2625
      %v2818 = vpack.c.bf16 %v2635, %v2631
      %v2819 = vpack.c.bf16 %v2637, %v2633
      %v2820 = vpack.c.bf16 %v2643, %v2639
      %v2821 = vpack.c.bf16 %v2645, %v2641
      %v2822 = vpack.c.bf16 %v2651, %v2647
      %v2823 = vpack.c.bf16 %v2653, %v2649
      %v2824 = vpack.c.bf16 %v2659, %v2655
      %v2825 = vpack.c.bf16 %v2661, %v2657
      %v2826 = vpack.c.bf16 %v2667, %v2663
      %v2827 = vpack.c.bf16 %v2669, %v2665
      %v2828 = vpack.c.bf16 %v2675, %v2671
      %v2829 = vpack.c.bf16 %v2677, %v2673
      %v2830 = vpack.c.bf16 %v2683, %v2679
      %v2831 = vpack.c.bf16 %v2685, %v2681
      %v2832 = vpack.c.bf16 %v2691, %v2687
      %v2833 = vpack.c.bf16 %v2693, %v2689
      %v2834 = vpack.c.bf16 %v2699, %v2695
      %v2835 = vpack.c.bf16 %v2701, %v2697
      %v2836 = vpack.c.bf16 %v2707, %v2703
      %v2837 = vpack.c.bf16 %v2709, %v2705
      %2838 = vrot.lane.b32.xlu0 %v1774, 96
      %v2839 = vpop.permute.xlu0 %2838
      %2840 = vrot.lane.b32.xlu0 %v1775, 96
      %v2841 = vpop.permute.xlu0 %2840
      %2842 = vrot.lane.b32.xlu0 %v1776, 96
      %v2843 = vpop.permute.xlu0 %2842
      %2844 = vrot.lane.b32.xlu0 %v1777, 96
      %v2845 = vpop.permute.xlu0 %2844
      %2846 = vrot.lane.b32.xlu0 %v1778, 96
      %v2847 = vpop.permute.xlu0 %2846
      %2848 = vrot.lane.b32.xlu0 %v1779, 96
      %v2849 = vpop.permute.xlu0 %2848
      %2850 = vrot.lane.b32.xlu0 %v1780, 96
      %v2851 = vpop.permute.xlu0 %2850
      %2852 = vrot.lane.b32.xlu0 %v1781, 96
      %v2853 = vpop.permute.xlu0 %2852
      %2854 = vrot.lane.b32.xlu0 %v1782, 96
      %v2855 = vpop.permute.xlu0 %2854
      %2856 = vrot.lane.b32.xlu0 %v1783, 96
      %v2857 = vpop.permute.xlu0 %2856
      %2858 = vrot.lane.b32.xlu0 %v1784, 96
      %v2859 = vpop.permute.xlu0 %2858
      %2860 = vrot.lane.b32.xlu0 %v1785, 96
      %v2861 = vpop.permute.xlu0 %2860
      %2862 = vrot.lane.b32.xlu0 %v1786, 96
      %v2863 = vpop.permute.xlu0 %2862
      %2864 = vrot.lane.b32.xlu0 %v1787, 96
      %v2865 = vpop.permute.xlu0 %2864
      %2866 = vrot.lane.b32.xlu0 %v1788, 96
      %v2867 = vpop.permute.xlu0 %2866
      %2868 = vrot.lane.b32.xlu0 %v1789, 96
      %v2869 = vpop.permute.xlu0 %2868
      %2886 = vmatpush.bf16.msra.mxu0 %v2853
      %2887 = vmatpush.bf16.msra.mxu0 %v2851
      %2888 = vmatpush.bf16.msra.mxu0 %v2849
      %2889 = vmatpush.bf16.msra.mxu0 %v2847
      %2890 = vmatpush.bf16.msra.mxu0 %v2845
      %2891 = vmatpush.bf16.msra.mxu0 %v2843
      %2892 = vmatpush.bf16.msra.mxu0 %v2841
      %2893 = vmatpush.bf16.msra.mxu0 %v2839
      %2894 = vmatmul.bf16.gmra.mxu0 %v2806
      %v2895 = vpop.f32.mrf.mxu0
      %v2896 = vadd.f32 0.0, %v2895
      %v2897 = vpop.f32.mrf.mxu0
      %v2898 = vadd.f32 0.0, %v2897
      %2899 = vmatmul.bf16.gmra.mxu0 %v2808
      %v2900 = vpop.f32.mrf.mxu0
      %v2901 = vadd.f32 0.0, %v2900
      %v2902 = vpop.f32.mrf.mxu0
      %v2903 = vadd.f32 0.0, %v2902
      %2904 = vmatmul.bf16.gmra.mxu0 %v2810
      %v2905 = vpop.f32.mrf.mxu0
      %v2906 = vadd.f32 0.0, %v2905
      %v2907 = vpop.f32.mrf.mxu0
      %v2908 = vadd.f32 0.0, %v2907
      %2909 = vmatmul.bf16.gmra.mxu0 %v2812
      %v2910 = vpop.f32.mrf.mxu0
      %v2911 = vadd.f32 0.0, %v2910
      %v2912 = vpop.f32.mrf.mxu0
      %v2913 = vadd.f32 0.0, %v2912
      %2914 = vmatmul.bf16.gmra.mxu0 %v2814
      %v2915 = vpop.f32.mrf.mxu0
      %v2916 = vadd.f32 0.0, %v2915
      %v2917 = vpop.f32.mrf.mxu0
      %v2918 = vadd.f32 0.0, %v2917
      %2919 = vmatmul.bf16.gmra.mxu0 %v2816
      %v2920 = vpop.f32.mrf.mxu0
      %v2921 = vadd.f32 0.0, %v2920
      %v2922 = vpop.f32.mrf.mxu0
      %v2923 = vadd.f32 0.0, %v2922
      %2924 = vmatmul.bf16.gmra.mxu0 %v2818
      %v2925 = vpop.f32.mrf.mxu0
      %v2926 = vadd.f32 0.0, %v2925
      %v2927 = vpop.f32.mrf.mxu0
      %v2928 = vadd.f32 0.0, %v2927
      %2929 = vmatmul.bf16.gmra.mxu0 %v2820
      %v2930 = vpop.f32.mrf.mxu0
      %v2931 = vadd.f32 0.0, %v2930
      %v2932 = vpop.f32.mrf.mxu0
      %v2933 = vadd.f32 0.0, %v2932
      %2934 = vmatmul.bf16.gmra.mxu0 %v2822
      %v2935 = vpop.f32.mrf.mxu0
      %v2936 = vadd.f32 0.0, %v2935
      %v2937 = vpop.f32.mrf.mxu0
      %v2938 = vadd.f32 0.0, %v2937
      %2939 = vmatmul.bf16.gmra.mxu0 %v2824
      %v2940 = vpop.f32.mrf.mxu0
      %v2941 = vadd.f32 0.0, %v2940
      %v2942 = vpop.f32.mrf.mxu0
      %v2943 = vadd.f32 0.0, %v2942
      %2944 = vmatmul.bf16.gmra.mxu0 %v2826
      %v2945 = vpop.f32.mrf.mxu0
      %v2946 = vadd.f32 0.0, %v2945
      %v2947 = vpop.f32.mrf.mxu0
      %v2948 = vadd.f32 0.0, %v2947
      %2949 = vmatmul.bf16.gmra.mxu0 %v2828
      %v2950 = vpop.f32.mrf.mxu0
      %v2951 = vadd.f32 0.0, %v2950
      %v2952 = vpop.f32.mrf.mxu0
      %v2953 = vadd.f32 0.0, %v2952
      %2954 = vmatmul.bf16.gmra.mxu0 %v2830
      %v2955 = vpop.f32.mrf.mxu0
      %v2956 = vadd.f32 0.0, %v2955
      %v2957 = vpop.f32.mrf.mxu0
      %v2958 = vadd.f32 0.0, %v2957
      %2959 = vmatmul.bf16.gmra.mxu0 %v2832
      %v2960 = vpop.f32.mrf.mxu0
      %v2961 = vadd.f32 0.0, %v2960
      %v2962 = vpop.f32.mrf.mxu0
      %v2963 = vadd.f32 0.0, %v2962
      %2964 = vmatmul.bf16.gmra.mxu0 %v2834
      %v2965 = vpop.f32.mrf.mxu0
      %v2966 = vadd.f32 0.0, %v2965
      %v2967 = vpop.f32.mrf.mxu0
      %v2968 = vadd.f32 0.0, %v2967
      %2969 = vmatmul.bf16.gmra.mxu0 %v2836
      %v2970 = vpop.f32.mrf.mxu0
      %v2971 = vadd.f32 0.0, %v2970
      %v2972 = vpop.f32.mrf.mxu0
      %v2973 = vadd.f32 0.0, %v2972
      %2974 = vdwg.mxu0
      %2975 = vmatpush.bf16.msra.mxu0 %v2869
      %2976 = vmatpush.bf16.msra.mxu0 %v2867
      %2977 = vmatpush.bf16.msra.mxu0 %v2865
      %2978 = vmatpush.bf16.msra.mxu0 %v2863
      %2979 = vmatpush.bf16.msra.mxu0 %v2861
      %2980 = vmatpush.bf16.msra.mxu0 %v2859
      %2981 = vmatpush.bf16.msra.mxu0 %v2857
      %2982 = vmatpush.bf16.msra.mxu0 %v2855
      %2983 = vmatmul.bf16.gmra.mxu0 %v2807
      %v2984 = vpop.f32.mrf.mxu0
      %v2985 = vadd.f32 %v2896, %v2984
      %v2986 = vpop.f32.mrf.mxu0
      %v2987 = vadd.f32 %v2898, %v2986
      %2988 = vmatmul.bf16.gmra.mxu0 %v2809
      %v2989 = vpop.f32.mrf.mxu0
      %v2990 = vadd.f32 %v2901, %v2989
      %v2991 = vpop.f32.mrf.mxu0
      %v2992 = vadd.f32 %v2903, %v2991
      %2993 = vmatmul.bf16.gmra.mxu0 %v2811
      %v2994 = vpop.f32.mrf.mxu0
      %v2995 = vadd.f32 %v2906, %v2994
      %v2996 = vpop.f32.mrf.mxu0
      %v2997 = vadd.f32 %v2908, %v2996
      %2998 = vmatmul.bf16.gmra.mxu0 %v2813
      %v2999 = vpop.f32.mrf.mxu0
      %v3000 = vadd.f32 %v2911, %v2999
      %v3001 = vpop.f32.mrf.mxu0
      %v3002 = vadd.f32 %v2913, %v3001
      %3003 = vmatmul.bf16.gmra.mxu0 %v2815
      %v3004 = vpop.f32.mrf.mxu0
      %v3005 = vadd.f32 %v2916, %v3004
      %v3006 = vpop.f32.mrf.mxu0
      %v3007 = vadd.f32 %v2918, %v3006
      %3008 = vmatmul.bf16.gmra.mxu0 %v2817
      %v3009 = vpop.f32.mrf.mxu0
      %v3010 = vadd.f32 %v2921, %v3009
      %v3011 = vpop.f32.mrf.mxu0
      %v3012 = vadd.f32 %v2923, %v3011
      %3013 = vmatmul.bf16.gmra.mxu0 %v2819
      %v3014 = vpop.f32.mrf.mxu0
      %v3015 = vadd.f32 %v2926, %v3014
      %v3016 = vpop.f32.mrf.mxu0
      %v3017 = vadd.f32 %v2928, %v3016
      %3018 = vmatmul.bf16.gmra.mxu0 %v2821
      %v3019 = vpop.f32.mrf.mxu0
      %v3020 = vadd.f32 %v2931, %v3019
      %v3021 = vpop.f32.mrf.mxu0
      %v3022 = vadd.f32 %v2933, %v3021
      %3023 = vmatmul.bf16.gmra.mxu0 %v2823
      %v3024 = vpop.f32.mrf.mxu0
      %v3025 = vadd.f32 %v2936, %v3024
      %v3026 = vpop.f32.mrf.mxu0
      %v3027 = vadd.f32 %v2938, %v3026
      %3028 = vmatmul.bf16.gmra.mxu0 %v2825
      %v3029 = vpop.f32.mrf.mxu0
      %v3030 = vadd.f32 %v2941, %v3029
      %v3031 = vpop.f32.mrf.mxu0
      %v3032 = vadd.f32 %v2943, %v3031
      %3033 = vmatmul.bf16.gmra.mxu0 %v2827
      %v3034 = vpop.f32.mrf.mxu0
      %v3035 = vadd.f32 %v2946, %v3034
      %v3036 = vpop.f32.mrf.mxu0
      %v3037 = vadd.f32 %v2948, %v3036
      %3038 = vmatmul.bf16.gmra.mxu0 %v2829
      %v3039 = vpop.f32.mrf.mxu0
      %v3040 = vadd.f32 %v2951, %v3039
      %v3041 = vpop.f32.mrf.mxu0
      %v3042 = vadd.f32 %v2953, %v3041
      %3043 = vmatmul.bf16.gmra.mxu0 %v2831
      %v3044 = vpop.f32.mrf.mxu0
      %v3045 = vadd.f32 %v2956, %v3044
      %v3046 = vpop.f32.mrf.mxu0
      %v3047 = vadd.f32 %v2958, %v3046
      %3048 = vmatmul.bf16.gmra.mxu0 %v2833
      %v3049 = vpop.f32.mrf.mxu0
      %v3050 = vadd.f32 %v2961, %v3049
      %v3051 = vpop.f32.mrf.mxu0
      %v3052 = vadd.f32 %v2963, %v3051
      %3053 = vmatmul.bf16.gmra.mxu0 %v2835
      %v3054 = vpop.f32.mrf.mxu0
      %v3055 = vadd.f32 %v2966, %v3054
      %v3056 = vpop.f32.mrf.mxu0
      %v3057 = vadd.f32 %v2968, %v3056
      %3058 = vmatmul.bf16.gmra.mxu0 %v2837
      %v3059 = vpop.f32.mrf.mxu0
      %v3060 = vadd.f32 %v2971, %v3059
      %v3061 = vpop.f32.mrf.mxu0
      %v3062 = vadd.f32 %v2973, %v3061
      %3063 = vdwg.mxu0
      %v3064 = vrcp.pop %v2712
      %v3065 = vrcp.pop %v2715
      %v3066 = vrcp.pop %v2718
      %v3067 = vrcp.pop %v2721
      %v3068 = vrcp.pop %v2724
      %v3069 = vrcp.pop %v2727
      %v3070 = vrcp.pop %v2730
      %v3071 = vrcp.pop %v2733
      %v3072 = vrcp.pop %v2736
      %v3073 = vrcp.pop %v2739
      %v3074 = vrcp.pop %v2742
      %v3075 = vrcp.pop %v2745
      %v3076 = vrcp.pop %v2748
      %v3077 = vrcp.pop %v2751
      %v3078 = vrcp.pop %v2754
      %v3079 = vrcp.pop %v2757
      %v3080 = vrcp.pop %v2760
      %v3081 = vrcp.pop %v2763
      %v3082 = vrcp.pop %v2766
      %v3083 = vrcp.pop %v2769
      %v3084 = vrcp.pop %v2772
      %v3085 = vrcp.pop %v2775
      %v3086 = vrcp.pop %v2778
      %v3087 = vrcp.pop %v2781
      %v3088 = vrcp.pop %v2784
      %v3089 = vrcp.pop %v2787
      %v3090 = vrcp.pop %v2790
      %v3091 = vrcp.pop %v2793
      %v3092 = vrcp.pop %v2796
      %v3093 = vrcp.pop %v2799
      %v3094 = vrcp.pop %v2802
      %v3095 = vrcp.pop %v2805
      %v3096 = vmul.f32 %v2985, %v3064
      %v3097 = vmul.f32 %v2987, %v3065
      %v3098 = vmul.f32 %v2990, %v3066
      %v3099 = vmul.f32 %v2992, %v3067
      %v3100 = vmul.f32 %v2995, %v3068
      %v3101 = vmul.f32 %v2997, %v3069
      %v3102 = vmul.f32 %v3000, %v3070
      %v3103 = vmul.f32 %v3002, %v3071
      %v3104 = vmul.f32 %v3005, %v3072
      %v3105 = vmul.f32 %v3007, %v3073
      %v3106 = vmul.f32 %v3010, %v3074
      %v3107 = vmul.f32 %v3012, %v3075
      %v3108 = vmul.f32 %v3015, %v3076
      %v3109 = vmul.f32 %v3017, %v3077
      %v3110 = vmul.f32 %v3020, %v3078
      %v3111 = vmul.f32 %v3022, %v3079
      %v3112 = vmul.f32 %v3025, %v3080
      %v3113 = vmul.f32 %v3027, %v3081
      %v3114 = vmul.f32 %v3030, %v3082
      %v3115 = vmul.f32 %v3032, %v3083
      %v3116 = vmul.f32 %v3035, %v3084
      %v3117 = vmul.f32 %v3037, %v3085
      %v3118 = vmul.f32 %v3040, %v3086
      %v3119 = vmul.f32 %v3042, %v3087
      %v3120 = vmul.f32 %v3045, %v3088
      %v3121 = vmul.f32 %v3047, %v3089
      %v3122 = vmul.f32 %v3050, %v3090
      %v3123 = vmul.f32 %v3052, %v3091
      %v3124 = vmul.f32 %v3055, %v3092
      %v3125 = vmul.f32 %v3057, %v3093
      %v3126 = vmul.f32 %v3060, %v3094
      %v3127 = vmul.f32 %v3062, %v3095
      %v3128 = vpack.c.bf16 %v3097, %v3096
      %v3129 = vpack.c.bf16 %v3099, %v3098
      %v3130 = vpack.c.bf16 %v3101, %v3100
      %v3131 = vpack.c.bf16 %v3103, %v3102
      %v3132 = vpack.c.bf16 %v3105, %v3104
      %v3133 = vpack.c.bf16 %v3107, %v3106
      %v3134 = vpack.c.bf16 %v3109, %v3108
      %v3135 = vpack.c.bf16 %v3111, %v3110
      %v3136 = vpack.c.bf16 %v3113, %v3112
      %v3137 = vpack.c.bf16 %v3115, %v3114
      %v3138 = vpack.c.bf16 %v3117, %v3116
      %v3139 = vpack.c.bf16 %v3119, %v3118
      %v3140 = vpack.c.bf16 %v3121, %v3120
      %v3141 = vpack.c.bf16 %v3123, %v3122
      %v3142 = vpack.c.bf16 %v3125, %v3124
      %v3143 = vpack.c.bf16 %v3127, %v3126
      %v3144 = vld [vmem:[%s3 + $0x10] sm:$0xf]
      %v3145 = vld [vmem:[%s3 + $0x14] sm:$0xf]
      %v3146 = vld [vmem:[%s3 + $0x18] sm:$0xf]
      %v3147 = vld [vmem:[%s3 + $0x1c] sm:$0xf]
      %v3152 = vunpack.c.l.b16 %v3144
      %v3153 = vunpack.c.l.b16 %v3145
      %v3154 = vunpack.c.l.b16 %v3146
      %v3155 = vunpack.c.l.b16 %v3147
      %v3156 = vpack.c.b16 %v3153, %v3152
      %v3157 = vpack.c.b16 %v3155, %v3154
      %v3161 = vsel %vm1019, %v3128, 0
      %v3164 = vsel %vm1019, %v3129, 0
      %v3167 = vsel %vm1019, %v3130, 0
      %v3170 = vsel %vm1019, %v3131, 0
      %v3173 = vsel %vm1019, %v3132, 0
      %v3176 = vsel %vm1019, %v3133, 0
      %v3179 = vsel %vm1019, %v3134, 0
      %v3182 = vsel %vm1019, %v3135, 0
      %v3185 = vsel %vm1019, %v3136, 0
      %v3188 = vsel %vm1019, %v3137, 0
      %v3191 = vsel %vm1019, %v3138, 0
      %v3194 = vsel %vm1019, %v3139, 0
      %v3197 = vsel %vm1019, %v3140, 0
      %v3200 = vsel %vm1019, %v3141, 0
      %v3203 = vsel %vm1019, %v3142, 0
      %v3206 = vsel %vm1019, %v3143, 0
      %3208 = vmatpush.bf16.msra.mxu0 0
      %3209 = vmatpush.bf16.msra.mxu0 0
      %3210 = vmatpush.bf16.msra.mxu0 0
      %3211 = vmatpush.bf16.msra.mxu0 0
      %3212 = vmatpush.bf16.msra.mxu0 0
      %3213 = vmatpush.bf16.msra.mxu0 0
      %3214 = vmatpush.bf16.msra.mxu0 %v3157
      %3215 = vmatpush.bf16.msra.mxu0 %v3156
      %3216 = vmatmul.bf16.gmra.mxu0 %v3161
      %v3217 = vpop.f32.mrf.mxu0
      %v3218 = vadd.f32 0.0, %v3217
      %v3219 = vpop.f32.mrf.mxu0
      %v3220 = vadd.f32 0.0, %v3219
      %3221 = vmatmul.bf16.gmra.mxu0 %v3164
      %v3222 = vpop.f32.mrf.mxu0
      %v3223 = vadd.f32 0.0, %v3222
      %v3224 = vpop.f32.mrf.mxu0
      %v3225 = vadd.f32 0.0, %v3224
      %3226 = vmatmul.bf16.gmra.mxu0 %v3167
      %v3227 = vpop.f32.mrf.mxu0
      %v3228 = vadd.f32 0.0, %v3227
      %v3229 = vpop.f32.mrf.mxu0
      %v3230 = vadd.f32 0.0, %v3229
      %3231 = vmatmul.bf16.gmra.mxu0 %v3170
      %v3232 = vpop.f32.mrf.mxu0
      %v3233 = vadd.f32 0.0, %v3232
      %v3234 = vpop.f32.mrf.mxu0
      %v3235 = vadd.f32 0.0, %v3234
      %3236 = vmatmul.bf16.gmra.mxu0 %v3173
      %v3237 = vpop.f32.mrf.mxu0
      %v3238 = vadd.f32 0.0, %v3237
      %v3239 = vpop.f32.mrf.mxu0
      %v3240 = vadd.f32 0.0, %v3239
      %3241 = vmatmul.bf16.gmra.mxu0 %v3176
      %v3242 = vpop.f32.mrf.mxu0
      %v3243 = vadd.f32 0.0, %v3242
      %v3244 = vpop.f32.mrf.mxu0
      %v3245 = vadd.f32 0.0, %v3244
      %3246 = vmatmul.bf16.gmra.mxu0 %v3179
      %v3247 = vpop.f32.mrf.mxu0
      %v3248 = vadd.f32 0.0, %v3247
      %v3249 = vpop.f32.mrf.mxu0
      %v3250 = vadd.f32 0.0, %v3249
      %3251 = vmatmul.bf16.gmra.mxu0 %v3182
      %v3252 = vpop.f32.mrf.mxu0
      %v3253 = vadd.f32 0.0, %v3252
      %v3254 = vpop.f32.mrf.mxu0
      %v3255 = vadd.f32 0.0, %v3254
      %3256 = vmatmul.bf16.gmra.mxu0 %v3185
      %v3257 = vpop.f32.mrf.mxu0
      %v3258 = vadd.f32 0.0, %v3257
      %v3259 = vpop.f32.mrf.mxu0
      %v3260 = vadd.f32 0.0, %v3259
      %3261 = vmatmul.bf16.gmra.mxu0 %v3188
      %v3262 = vpop.f32.mrf.mxu0
      %v3263 = vadd.f32 0.0, %v3262
      %v3264 = vpop.f32.mrf.mxu0
      %v3265 = vadd.f32 0.0, %v3264
      %3266 = vmatmul.bf16.gmra.mxu0 %v3191
      %v3267 = vpop.f32.mrf.mxu0
      %v3268 = vadd.f32 0.0, %v3267
      %v3269 = vpop.f32.mrf.mxu0
      %v3270 = vadd.f32 0.0, %v3269
      %3271 = vmatmul.bf16.gmra.mxu0 %v3194
      %v3272 = vpop.f32.mrf.mxu0
      %v3273 = vadd.f32 0.0, %v3272
      %v3274 = vpop.f32.mrf.mxu0
      %v3275 = vadd.f32 0.0, %v3274
      %3276 = vmatmul.bf16.gmra.mxu0 %v3197
      %v3277 = vpop.f32.mrf.mxu0
      %v3278 = vadd.f32 0.0, %v3277
      %v3279 = vpop.f32.mrf.mxu0
      %v3280 = vadd.f32 0.0, %v3279
      %3281 = vmatmul.bf16.gmra.mxu0 %v3200
      %v3282 = vpop.f32.mrf.mxu0
      %v3283 = vadd.f32 0.0, %v3282
      %v3284 = vpop.f32.mrf.mxu0
      %v3285 = vadd.f32 0.0, %v3284
      %3286 = vmatmul.bf16.gmra.mxu0 %v3203
      %v3287 = vpop.f32.mrf.mxu0
      %v3288 = vadd.f32 0.0, %v3287
      %v3289 = vpop.f32.mrf.mxu0
      %v3290 = vadd.f32 0.0, %v3289
      %3291 = vmatmul.bf16.gmra.mxu0 %v3206
      %v3292 = vpop.f32.mrf.mxu0
      %v3293 = vadd.f32 0.0, %v3292
      %v3294 = vpop.f32.mrf.mxu0
      %v3295 = vadd.f32 0.0, %v3294
      %3296 = vdwg.mxu0
      %v3301 = vunpack.c.l.b16 %v2064
      %v3302 = vunpack.c.l.b16 %v2065
      %v3303 = vunpack.c.l.b16 %v2066
      %v3304 = vunpack.c.l.b16 %v2067
      %v3305 = vpack.c.b16 %v3302, %v3301
      %v3306 = vpack.c.b16 %v3304, %v3303
      %v3310 = vsel %vm1019, %v2048, 0
      %v3313 = vsel %vm1019, %v2049, 0
      %v3316 = vsel %vm1019, %v2050, 0
      %v3319 = vsel %vm1019, %v2051, 0
      %v3322 = vsel %vm1019, %v2052, 0
      %v3325 = vsel %vm1019, %v2053, 0
      %v3328 = vsel %vm1019, %v2054, 0
      %v3331 = vsel %vm1019, %v2055, 0
      %v3334 = vsel %vm1019, %v2056, 0
      %v3337 = vsel %vm1019, %v2057, 0
      %v3340 = vsel %vm1019, %v2058, 0
      %v3343 = vsel %vm1019, %v2059, 0
      %v3346 = vsel %vm1019, %v2060, 0
      %v3349 = vsel %vm1019, %v2061, 0
      %v3352 = vsel %vm1019, %v2062, 0
      %v3355 = vsel %vm1019, %v2063, 0
      %3357 = vmatpush.bf16.msra.mxu0 0
      %3358 = vmatpush.bf16.msra.mxu0 0
      %3359 = vmatpush.bf16.msra.mxu0 0
      %3360 = vmatpush.bf16.msra.mxu0 0
      %3361 = vmatpush.bf16.msra.mxu0 0
      %3362 = vmatpush.bf16.msra.mxu0 0
      %3363 = vmatpush.bf16.msra.mxu0 %v3306
      %3364 = vmatpush.bf16.msra.mxu0 %v3305
      %3365 = vmatmul.bf16.gmra.mxu0 %v3310
      %v3366 = vpop.f32.mrf.mxu0
      %v3367 = vadd.f32 %v3218, %v3366
      %v3368 = vpop.f32.mrf.mxu0
      %v3369 = vadd.f32 %v3220, %v3368
      %3370 = vmatmul.bf16.gmra.mxu0 %v3313
      %v3371 = vpop.f32.mrf.mxu0
      %v3372 = vadd.f32 %v3223, %v3371
      %v3373 = vpop.f32.mrf.mxu0
      %v3374 = vadd.f32 %v3225, %v3373
      %3375 = vmatmul.bf16.gmra.mxu0 %v3316
      %v3376 = vpop.f32.mrf.mxu0
      %v3377 = vadd.f32 %v3228, %v3376
      %v3378 = vpop.f32.mrf.mxu0
      %v3379 = vadd.f32 %v3230, %v3378
      %3380 = vmatmul.bf16.gmra.mxu0 %v3319
      %v3381 = vpop.f32.mrf.mxu0
      %v3382 = vadd.f32 %v3233, %v3381
      %v3383 = vpop.f32.mrf.mxu0
      %v3384 = vadd.f32 %v3235, %v3383
      %3385 = vmatmul.bf16.gmra.mxu0 %v3322
      %v3386 = vpop.f32.mrf.mxu0
      %v3387 = vadd.f32 %v3238, %v3386
      %v3388 = vpop.f32.mrf.mxu0
      %v3389 = vadd.f32 %v3240, %v3388
      %3390 = vmatmul.bf16.gmra.mxu0 %v3325
      %v3391 = vpop.f32.mrf.mxu0
      %v3392 = vadd.f32 %v3243, %v3391
      %v3393 = vpop.f32.mrf.mxu0
      %v3394 = vadd.f32 %v3245, %v3393
      %3395 = vmatmul.bf16.gmra.mxu0 %v3328
      %v3396 = vpop.f32.mrf.mxu0
      %v3397 = vadd.f32 %v3248, %v3396
      %v3398 = vpop.f32.mrf.mxu0
      %v3399 = vadd.f32 %v3250, %v3398
      %3400 = vmatmul.bf16.gmra.mxu0 %v3331
      %v3401 = vpop.f32.mrf.mxu0
      %v3402 = vadd.f32 %v3253, %v3401
      %v3403 = vpop.f32.mrf.mxu0
      %v3404 = vadd.f32 %v3255, %v3403
      %3405 = vmatmul.bf16.gmra.mxu0 %v3334
      %v3406 = vpop.f32.mrf.mxu0
      %v3407 = vadd.f32 %v3258, %v3406
      %v3408 = vpop.f32.mrf.mxu0
      %v3409 = vadd.f32 %v3260, %v3408
      %3410 = vmatmul.bf16.gmra.mxu0 %v3337
      %v3411 = vpop.f32.mrf.mxu0
      %v3412 = vadd.f32 %v3263, %v3411
      %v3413 = vpop.f32.mrf.mxu0
      %v3414 = vadd.f32 %v3265, %v3413
      %3415 = vmatmul.bf16.gmra.mxu0 %v3340
      %v3416 = vpop.f32.mrf.mxu0
      %v3417 = vadd.f32 %v3268, %v3416
      %v3418 = vpop.f32.mrf.mxu0
      %v3419 = vadd.f32 %v3270, %v3418
      %3420 = vmatmul.bf16.gmra.mxu0 %v3343
      %v3421 = vpop.f32.mrf.mxu0
      %v3422 = vadd.f32 %v3273, %v3421
      %v3423 = vpop.f32.mrf.mxu0
      %v3424 = vadd.f32 %v3275, %v3423
      %3425 = vmatmul.bf16.gmra.mxu0 %v3346
      %v3426 = vpop.f32.mrf.mxu0
      %v3427 = vadd.f32 %v3278, %v3426
      %v3428 = vpop.f32.mrf.mxu0
      %v3429 = vadd.f32 %v3280, %v3428
      %3430 = vmatmul.bf16.gmra.mxu0 %v3349
      %v3431 = vpop.f32.mrf.mxu0
      %v3432 = vadd.f32 %v3283, %v3431
      %v3433 = vpop.f32.mrf.mxu0
      %v3434 = vadd.f32 %v3285, %v3433
      %3435 = vmatmul.bf16.gmra.mxu0 %v3352
      %v3436 = vpop.f32.mrf.mxu0
      %v3437 = vadd.f32 %v3288, %v3436
      %v3438 = vpop.f32.mrf.mxu0
      %v3439 = vadd.f32 %v3290, %v3438
      %3440 = vmatmul.bf16.gmra.mxu0 %v3355
      %v3441 = vpop.f32.mrf.mxu0
      %v3442 = vadd.f32 %v3293, %v3441
      %v3443 = vpop.f32.mrf.mxu0
      %v3444 = vadd.f32 %v3295, %v3443
      %3445 = vdwg.mxu0
      %3446 = vrot.lane.b32.xlu0 %v923, 64
      %v3447 = vpop.permute.xlu0 %3446
      %3448 = vrot.lane.b32.xlu0 %v924, 64
      %v3449 = vpop.permute.xlu0 %3448
      %3450 = vrot.lane.b32.xlu0 %v925, 64
      %v3451 = vpop.permute.xlu0 %3450
      %3452 = vrot.lane.b32.xlu0 %v926, 64
      %v3453 = vpop.permute.xlu0 %3452
      %3454 = vrot.lane.b32.xlu0 %v927, 64
      %v3455 = vpop.permute.xlu0 %3454
      %3456 = vrot.lane.b32.xlu0 %v928, 64
      %v3457 = vpop.permute.xlu0 %3456
      %3458 = vrot.lane.b32.xlu0 %v929, 64
      %v3459 = vpop.permute.xlu0 %3458
      %3460 = vrot.lane.b32.xlu0 %v930, 64
      %v3461 = vpop.permute.xlu0 %3460
      %3462 = vrot.lane.b32.xlu0 %v931, 64
      %v3463 = vpop.permute.xlu0 %3462
      %3464 = vrot.lane.b32.xlu0 %v932, 64
      %v3465 = vpop.permute.xlu0 %3464
      %3466 = vrot.lane.b32.xlu0 %v933, 64
      %v3467 = vpop.permute.xlu0 %3466
      %3468 = vrot.lane.b32.xlu0 %v934, 64
      %v3469 = vpop.permute.xlu0 %3468
      %3470 = vrot.lane.b32.xlu0 %v935, 64
      %v3471 = vpop.permute.xlu0 %3470
      %3472 = vrot.lane.b32.xlu0 %v936, 64
      %v3473 = vpop.permute.xlu0 %3472
      %3474 = vrot.lane.b32.xlu0 %v937, 64
      %v3475 = vpop.permute.xlu0 %3474
      %3476 = vrot.lane.b32.xlu0 %v938, 64
      %v3477 = vpop.permute.xlu0 %3476
      %3478 = vrot.lane.b32.xlu0 %v1003, 64
      %v3479 = vpop.permute.xlu0 %3478
      %3480 = vrot.lane.b32.xlu0 %v1004, 64
      %v3481 = vpop.permute.xlu0 %3480
      %3482 = vrot.lane.b32.xlu0 %v1005, 64
      %v3483 = vpop.permute.xlu0 %3482
      %3484 = vrot.lane.b32.xlu0 %v1006, 64
      %v3485 = vpop.permute.xlu0 %3484
      %3486 = vrot.lane.b32.xlu0 %v1007, 64
      %v3487 = vpop.permute.xlu0 %3486
      %3488 = vrot.lane.b32.xlu0 %v1008, 64
      %v3489 = vpop.permute.xlu0 %3488
      %3490 = vrot.lane.b32.xlu0 %v1009, 64
      %v3491 = vpop.permute.xlu0 %3490
      %3492 = vrot.lane.b32.xlu0 %v1010, 64
      %v3493 = vpop.permute.xlu0 %3492
      %3494 = vrot.lane.b32.xlu0 %v1011, 64
      %v3495 = vpop.permute.xlu0 %3494
      %3496 = vrot.lane.b32.xlu0 %v1012, 64
      %v3497 = vpop.permute.xlu0 %3496
      %3498 = vrot.lane.b32.xlu0 %v1013, 64
      %v3499 = vpop.permute.xlu0 %3498
      %3500 = vrot.lane.b32.xlu0 %v1014, 64
      %v3501 = vpop.permute.xlu0 %3500
      %3502 = vrot.lane.b32.xlu0 %v1015, 64
      %v3503 = vpop.permute.xlu0 %3502
      %3504 = vrot.lane.b32.xlu0 %v1016, 64
      %v3505 = vpop.permute.xlu0 %3504
      %3506 = vrot.lane.b32.xlu0 %v1017, 64
      %v3507 = vpop.permute.xlu0 %3506
      %3508 = vrot.lane.b32.xlu0 %v1018, 64
      %v3509 = vpop.permute.xlu0 %3508
      %v3511 = vsel %vm1019, %v3447, 0
      %v3514 = vsel %vm1019, %v3449, 0
      %v3517 = vsel %vm1019, %v3451, 0
      %v3520 = vsel %vm1019, %v3453, 0
      %v3523 = vsel %vm1019, %v3455, 0
      %v3526 = vsel %vm1019, %v3457, 0
      %v3529 = vsel %vm1019, %v3459, 0
      %v3532 = vsel %vm1019, %v3461, 0
      %v3535 = vsel %vm1019, %v3463, 0
      %v3538 = vsel %vm1019, %v3465, 0
      %v3541 = vsel %vm1019, %v3467, 0
      %v3544 = vsel %vm1019, %v3469, 0
      %v3547 = vsel %vm1019, %v3471, 0
      %v3550 = vsel %vm1019, %v3473, 0
      %v3553 = vsel %vm1019, %v3475, 0
      %v3556 = vsel %vm1019, %v3477, 0
      %v3559 = vsel %vm1019, %v3479, 0
      %v3562 = vsel %vm1019, %v3481, 0
      %v3565 = vsel %vm1019, %v3483, 0
      %v3568 = vsel %vm1019, %v3485, 0
      %v3571 = vsel %vm1019, %v3487, 0
      %v3574 = vsel %vm1019, %v3489, 0
      %v3577 = vsel %vm1019, %v3491, 0
      %v3580 = vsel %vm1019, %v3493, 0
      %v3583 = vsel %vm1019, %v3495, 0
      %v3586 = vsel %vm1019, %v3497, 0
      %v3589 = vsel %vm1019, %v3499, 0
      %v3592 = vsel %vm1019, %v3501, 0
      %v3595 = vsel %vm1019, %v3503, 0
      %v3598 = vsel %vm1019, %v3505, 0
      %v3601 = vsel %vm1019, %v3507, 0
      %v3604 = vsel %vm1019, %v3509, 0
      %3606 = vmatpush.bf16.xpose.msra.mxu0 %v3580
      %3607 = vmatpush.bf16.xpose.msra.mxu0 %v3577
      %3608 = vmatpush.bf16.xpose.msra.mxu0 %v3574
      %3609 = vmatpush.bf16.xpose.msra.mxu0 %v3571
      %3610 = vmatpush.bf16.xpose.msra.mxu0 %v3568
      %3611 = vmatpush.bf16.xpose.msra.mxu0 %v3565
      %3612 = vmatpush.bf16.xpose.msra.mxu0 %v3562
      %3613 = vmatpush.bf16.xpose.msra.mxu0 %v3559
      %3614 = vmatmul.bf16.gmra.mxu0 %v3511
      %v3615 = vpop.f32.mrf.mxu0
      %v3616 = vadd.f32 0.0, %v3615
      %v3617 = vpop.f32.mrf.mxu0
      %v3618 = vadd.f32 0.0, %v3617
      %3619 = vmatmul.bf16.gmra.mxu0 %v3514
      %v3620 = vpop.f32.mrf.mxu0
      %v3621 = vadd.f32 0.0, %v3620
      %v3622 = vpop.f32.mrf.mxu0
      %v3623 = vadd.f32 0.0, %v3622
      %3624 = vmatmul.bf16.gmra.mxu0 %v3517
      %v3625 = vpop.f32.mrf.mxu0
      %v3626 = vadd.f32 0.0, %v3625
      %v3627 = vpop.f32.mrf.mxu0
      %v3628 = vadd.f32 0.0, %v3627
      %3629 = vmatmul.bf16.gmra.mxu0 %v3520
      %v3630 = vpop.f32.mrf.mxu0
      %v3631 = vadd.f32 0.0, %v3630
      %v3632 = vpop.f32.mrf.mxu0
      %v3633 = vadd.f32 0.0, %v3632
      %3634 = vmatmul.bf16.gmra.mxu0 %v3523
      %v3635 = vpop.f32.mrf.mxu0
      %v3636 = vadd.f32 0.0, %v3635
      %v3637 = vpop.f32.mrf.mxu0
      %v3638 = vadd.f32 0.0, %v3637
      %3639 = vmatmul.bf16.gmra.mxu0 %v3526
      %v3640 = vpop.f32.mrf.mxu0
      %v3641 = vadd.f32 0.0, %v3640
      %v3642 = vpop.f32.mrf.mxu0
      %v3643 = vadd.f32 0.0, %v3642
      %3644 = vmatmul.bf16.gmra.mxu0 %v3529
      %v3645 = vpop.f32.mrf.mxu0
      %v3646 = vadd.f32 0.0, %v3645
      %v3647 = vpop.f32.mrf.mxu0
      %v3648 = vadd.f32 0.0, %v3647
      %3649 = vmatmul.bf16.gmra.mxu0 %v3532
      %v3650 = vpop.f32.mrf.mxu0
      %v3651 = vadd.f32 0.0, %v3650
      %v3652 = vpop.f32.mrf.mxu0
      %v3653 = vadd.f32 0.0, %v3652
      %3654 = vmatmul.bf16.gmra.mxu0 %v3535
      %v3655 = vpop.f32.mrf.mxu0
      %v3656 = vadd.f32 0.0, %v3655
      %v3657 = vpop.f32.mrf.mxu0
      %v3658 = vadd.f32 0.0, %v3657
      %3659 = vmatmul.bf16.gmra.mxu0 %v3538
      %v3660 = vpop.f32.mrf.mxu0
      %v3661 = vadd.f32 0.0, %v3660
      %v3662 = vpop.f32.mrf.mxu0
      %v3663 = vadd.f32 0.0, %v3662
      %3664 = vmatmul.bf16.gmra.mxu0 %v3541
      %v3665 = vpop.f32.mrf.mxu0
      %v3666 = vadd.f32 0.0, %v3665
      %v3667 = vpop.f32.mrf.mxu0
      %v3668 = vadd.f32 0.0, %v3667
      %3669 = vmatmul.bf16.gmra.mxu0 %v3544
      %v3670 = vpop.f32.mrf.mxu0
      %v3671 = vadd.f32 0.0, %v3670
      %v3672 = vpop.f32.mrf.mxu0
      %v3673 = vadd.f32 0.0, %v3672
      %3674 = vmatmul.bf16.gmra.mxu0 %v3547
      %v3675 = vpop.f32.mrf.mxu0
      %v3676 = vadd.f32 0.0, %v3675
      %v3677 = vpop.f32.mrf.mxu0
      %v3678 = vadd.f32 0.0, %v3677
      %3679 = vmatmul.bf16.gmra.mxu0 %v3550
      %v3680 = vpop.f32.mrf.mxu0
      %v3681 = vadd.f32 0.0, %v3680
      %v3682 = vpop.f32.mrf.mxu0
      %v3683 = vadd.f32 0.0, %v3682
      %3684 = vmatmul.bf16.gmra.mxu0 %v3553
      %v3685 = vpop.f32.mrf.mxu0
      %v3686 = vadd.f32 0.0, %v3685
      %v3687 = vpop.f32.mrf.mxu0
      %v3688 = vadd.f32 0.0, %v3687
      %3689 = vmatmul.bf16.gmra.mxu0 %v3556
      %v3690 = vpop.f32.mrf.mxu0
      %v3691 = vadd.f32 0.0, %v3690
      %v3692 = vpop.f32.mrf.mxu0
      %v3693 = vadd.f32 0.0, %v3692
      %3694 = vdwg.mxu0
      %3695 = vmatpush.bf16.xpose.msra.mxu0 %v3604
      %3696 = vmatpush.bf16.xpose.msra.mxu0 %v3601
      %3697 = vmatpush.bf16.xpose.msra.mxu0 %v3598
      %3698 = vmatpush.bf16.xpose.msra.mxu0 %v3595
      %3699 = vmatpush.bf16.xpose.msra.mxu0 %v3592
      %3700 = vmatpush.bf16.xpose.msra.mxu0 %v3589
      %3701 = vmatpush.bf16.xpose.msra.mxu0 %v3586
      %3702 = vmatpush.bf16.xpose.msra.mxu0 %v3583
      %3703 = vmatmul.bf16.gmra.mxu0 %v3511
      %v3704 = vpop.f32.mrf.mxu0
      %v3705 = vadd.f32 0.0, %v3704
      %v3706 = vpop.f32.mrf.mxu0
      %v3707 = vadd.f32 0.0, %v3706
      %3708 = vmatmul.bf16.gmra.mxu0 %v3514
      %v3709 = vpop.f32.mrf.mxu0
      %v3710 = vadd.f32 0.0, %v3709
      %v3711 = vpop.f32.mrf.mxu0
      %v3712 = vadd.f32 0.0, %v3711
      %3713 = vmatmul.bf16.gmra.mxu0 %v3517
      %v3714 = vpop.f32.mrf.mxu0
      %v3715 = vadd.f32 0.0, %v3714
      %v3716 = vpop.f32.mrf.mxu0
      %v3717 = vadd.f32 0.0, %v3716
      %3718 = vmatmul.bf16.gmra.mxu0 %v3520
      %v3719 = vpop.f32.mrf.mxu0
      %v3720 = vadd.f32 0.0, %v3719
      %v3721 = vpop.f32.mrf.mxu0
      %v3722 = vadd.f32 0.0, %v3721
      %3723 = vmatmul.bf16.gmra.mxu0 %v3523
      %v3724 = vpop.f32.mrf.mxu0
      %v3725 = vadd.f32 0.0, %v3724
      %v3726 = vpop.f32.mrf.mxu0
      %v3727 = vadd.f32 0.0, %v3726
      %3728 = vmatmul.bf16.gmra.mxu0 %v3526
      %v3729 = vpop.f32.mrf.mxu0
      %v3730 = vadd.f32 0.0, %v3729
      %v3731 = vpop.f32.mrf.mxu0
      %v3732 = vadd.f32 0.0, %v3731
      %3733 = vmatmul.bf16.gmra.mxu0 %v3529
      %v3734 = vpop.f32.mrf.mxu0
      %v3735 = vadd.f32 0.0, %v3734
      %v3736 = vpop.f32.mrf.mxu0
      %v3737 = vadd.f32 0.0, %v3736
      %3738 = vmatmul.bf16.gmra.mxu0 %v3532
      %v3739 = vpop.f32.mrf.mxu0
      %v3740 = vadd.f32 0.0, %v3739
      %v3741 = vpop.f32.mrf.mxu0
      %v3742 = vadd.f32 0.0, %v3741
      %3743 = vmatmul.bf16.gmra.mxu0 %v3535
      %v3744 = vpop.f32.mrf.mxu0
      %v3745 = vadd.f32 0.0, %v3744
      %v3746 = vpop.f32.mrf.mxu0
      %v3747 = vadd.f32 0.0, %v3746
      %3748 = vmatmul.bf16.gmra.mxu0 %v3538
      %v3749 = vpop.f32.mrf.mxu0
      %v3750 = vadd.f32 0.0, %v3749
      %v3751 = vpop.f32.mrf.mxu0
      %v3752 = vadd.f32 0.0, %v3751
      %3753 = vmatmul.bf16.gmra.mxu0 %v3541
      %v3754 = vpop.f32.mrf.mxu0
      %v3755 = vadd.f32 0.0, %v3754
      %v3756 = vpop.f32.mrf.mxu0
      %v3757 = vadd.f32 0.0, %v3756
      %3758 = vmatmul.bf16.gmra.mxu0 %v3544
      %v3759 = vpop.f32.mrf.mxu0
      %v3760 = vadd.f32 0.0, %v3759
      %v3761 = vpop.f32.mrf.mxu0
      %v3762 = vadd.f32 0.0, %v3761
      %3763 = vmatmul.bf16.gmra.mxu0 %v3547
      %v3764 = vpop.f32.mrf.mxu0
      %v3765 = vadd.f32 0.0, %v3764
      %v3766 = vpop.f32.mrf.mxu0
      %v3767 = vadd.f32 0.0, %v3766
      %3768 = vmatmul.bf16.gmra.mxu0 %v3550
      %v3769 = vpop.f32.mrf.mxu0
      %v3770 = vadd.f32 0.0, %v3769
      %v3771 = vpop.f32.mrf.mxu0
      %v3772 = vadd.f32 0.0, %v3771
      %3773 = vmatmul.bf16.gmra.mxu0 %v3553
      %v3774 = vpop.f32.mrf.mxu0
      %v3775 = vadd.f32 0.0, %v3774
      %v3776 = vpop.f32.mrf.mxu0
      %v3777 = vadd.f32 0.0, %v3776
      %3778 = vmatmul.bf16.gmra.mxu0 %v3556
      %v3779 = vpop.f32.mrf.mxu0
      %v3780 = vadd.f32 0.0, %v3779
      %v3781 = vpop.f32.mrf.mxu0
      %v3782 = vadd.f32 0.0, %v3781
      %3783 = vdwg.mxu0
      %v3784 = vmax.f32 %v3616, %v3705
      %3785 = vmax.xlane.f32.xlu0 %v3784
      %v3786 = vpop.xlane.xlu0 %3785
      %v3787 = vmax.f32 %v3618, %v3707
      %3788 = vmax.xlane.f32.xlu0 %v3787
      %v3789 = vpop.xlane.xlu0 %3788
      %v3790 = vmax.f32 %v3621, %v3710
      %3791 = vmax.xlane.f32.xlu0 %v3790
      %v3792 = vpop.xlane.xlu0 %3791
      %v3793 = vmax.f32 %v3623, %v3712
      %3794 = vmax.xlane.f32.xlu0 %v3793
      %v3795 = vpop.xlane.xlu0 %3794
      %v3796 = vmax.f32 %v3626, %v3715
      %3797 = vmax.xlane.f32.xlu0 %v3796
      %v3798 = vpop.xlane.xlu0 %3797
      %v3799 = vmax.f32 %v3628, %v3717
      %3800 = vmax.xlane.f32.xlu0 %v3799
      %v3801 = vpop.xlane.xlu0 %3800
      %v3802 = vmax.f32 %v3631, %v3720
      %3803 = vmax.xlane.f32.xlu0 %v3802
      %v3804 = vpop.xlane.xlu0 %3803
      %v3805 = vmax.f32 %v3633, %v3722
      %3806 = vmax.xlane.f32.xlu0 %v3805
      %v3807 = vpop.xlane.xlu0 %3806
      %v3808 = vmax.f32 %v3636, %v3725
      %3809 = vmax.xlane.f32.xlu0 %v3808
      %v3810 = vpop.xlane.xlu0 %3809
      %v3811 = vmax.f32 %v3638, %v3727
      %3812 = vmax.xlane.f32.xlu0 %v3811
      %v3813 = vpop.xlane.xlu0 %3812
      %v3814 = vmax.f32 %v3641, %v3730
      %3815 = vmax.xlane.f32.xlu0 %v3814
      %v3816 = vpop.xlane.xlu0 %3815
      %v3817 = vmax.f32 %v3643, %v3732
      %3818 = vmax.xlane.f32.xlu0 %v3817
      %v3819 = vpop.xlane.xlu0 %3818
      %v3820 = vmax.f32 %v3646, %v3735
      %3821 = vmax.xlane.f32.xlu0 %v3820
      %v3822 = vpop.xlane.xlu0 %3821
      %v3823 = vmax.f32 %v3648, %v3737
      %3824 = vmax.xlane.f32.xlu0 %v3823
      %v3825 = vpop.xlane.xlu0 %3824
      %v3826 = vmax.f32 %v3651, %v3740
      %3827 = vmax.xlane.f32.xlu0 %v3826
      %v3828 = vpop.xlane.xlu0 %3827
      %v3829 = vmax.f32 %v3653, %v3742
      %3830 = vmax.xlane.f32.xlu0 %v3829
      %v3831 = vpop.xlane.xlu0 %3830
      %v3832 = vmax.f32 %v3656, %v3745
      %3833 = vmax.xlane.f32.xlu0 %v3832
      %v3834 = vpop.xlane.xlu0 %3833
      %v3835 = vmax.f32 %v3658, %v3747
      %3836 = vmax.xlane.f32.xlu0 %v3835
      %v3837 = vpop.xlane.xlu0 %3836
      %v3838 = vmax.f32 %v3661, %v3750
      %3839 = vmax.xlane.f32.xlu0 %v3838
      %v3840 = vpop.xlane.xlu0 %3839
      %v3841 = vmax.f32 %v3663, %v3752
      %3842 = vmax.xlane.f32.xlu0 %v3841
      %v3843 = vpop.xlane.xlu0 %3842
      %v3844 = vmax.f32 %v3666, %v3755
      %3845 = vmax.xlane.f32.xlu0 %v3844
      %v3846 = vpop.xlane.xlu0 %3845
      %v3847 = vmax.f32 %v3668, %v3757
      %3848 = vmax.xlane.f32.xlu0 %v3847
      %v3849 = vpop.xlane.xlu0 %3848
      %v3850 = vmax.f32 %v3671, %v3760
      %3851 = vmax.xlane.f32.xlu0 %v3850
      %v3852 = vpop.xlane.xlu0 %3851
      %v3853 = vmax.f32 %v3673, %v3762
      %3854 = vmax.xlane.f32.xlu0 %v3853
      %v3855 = vpop.xlane.xlu0 %3854
      %v3856 = vmax.f32 %v3676, %v3765
      %3857 = vmax.xlane.f32.xlu0 %v3856
      %v3858 = vpop.xlane.xlu0 %3857
      %v3859 = vmax.f32 %v3678, %v3767
      %3860 = vmax.xlane.f32.xlu0 %v3859
      %v3861 = vpop.xlane.xlu0 %3860
      %v3862 = vmax.f32 %v3681, %v3770
      %3863 = vmax.xlane.f32.xlu0 %v3862
      %v3864 = vpop.xlane.xlu0 %3863
      %v3865 = vmax.f32 %v3683, %v3772
      %3866 = vmax.xlane.f32.xlu0 %v3865
      %v3867 = vpop.xlane.xlu0 %3866
      %v3868 = vmax.f32 %v3686, %v3775
      %3869 = vmax.xlane.f32.xlu0 %v3868
      %v3870 = vpop.xlane.xlu0 %3869
      %v3871 = vmax.f32 %v3688, %v3777
      %3872 = vmax.xlane.f32.xlu0 %v3871
      %v3873 = vpop.xlane.xlu0 %3872
      %v3874 = vmax.f32 %v3691, %v3780
      %3875 = vmax.xlane.f32.xlu0 %v3874
      %v3876 = vpop.xlane.xlu0 %3875
      %v3877 = vmax.f32 %v3693, %v3782
      %3878 = vmax.xlane.f32.xlu0 %v3877
      %v3879 = vpop.xlane.xlu0 %3878
      %v3880 = vsub.f32 %v3616, %v3786
      %v3881 = vsub.f32 %v3705, %v3786
      %v3882 = vsub.f32 %v3618, %v3789
      %v3883 = vsub.f32 %v3707, %v3789
      %v3884 = vsub.f32 %v3621, %v3792
      %v3885 = vsub.f32 %v3710, %v3792
      %v3886 = vsub.f32 %v3623, %v3795
      %v3887 = vsub.f32 %v3712, %v3795
      %v3888 = vsub.f32 %v3626, %v3798
      %v3889 = vsub.f32 %v3715, %v3798
      %v3890 = vsub.f32 %v3628, %v3801
      %v3891 = vsub.f32 %v3717, %v3801
      %v3892 = vsub.f32 %v3631, %v3804
      %v3893 = vsub.f32 %v3720, %v3804
      %v3894 = vsub.f32 %v3633, %v3807
      %v3895 = vsub.f32 %v3722, %v3807
      %v3896 = vsub.f32 %v3636, %v3810
      %v3897 = vsub.f32 %v3725, %v3810
      %v3898 = vsub.f32 %v3638, %v3813
      %v3899 = vsub.f32 %v3727, %v3813
      %v3900 = vsub.f32 %v3641, %v3816
      %v3901 = vsub.f32 %v3730, %v3816
      %v3902 = vsub.f32 %v3643, %v3819
      %v3903 = vsub.f32 %v3732, %v3819
      %v3904 = vsub.f32 %v3646, %v3822
      %v3905 = vsub.f32 %v3735, %v3822
      %v3906 = vsub.f32 %v3648, %v3825
      %v3907 = vsub.f32 %v3737, %v3825
      %v3908 = vsub.f32 %v3651, %v3828
      %v3909 = vsub.f32 %v3740, %v3828
      %v3910 = vsub.f32 %v3653, %v3831
      %v3911 = vsub.f32 %v3742, %v3831
      %v3912 = vsub.f32 %v3656, %v3834
      %v3913 = vsub.f32 %v3745, %v3834
      %v3914 = vsub.f32 %v3658, %v3837
      %v3915 = vsub.f32 %v3747, %v3837
      %v3916 = vsub.f32 %v3661, %v3840
      %v3917 = vsub.f32 %v3750, %v3840
      %v3918 = vsub.f32 %v3663, %v3843
      %v3919 = vsub.f32 %v3752, %v3843
      %v3920 = vsub.f32 %v3666, %v3846
      %v3921 = vsub.f32 %v3755, %v3846
      %v3922 = vsub.f32 %v3668, %v3849
      %v3923 = vsub.f32 %v3757, %v3849
      %v3924 = vsub.f32 %v3671, %v3852
      %v3925 = vsub.f32 %v3760, %v3852
      %v3926 = vsub.f32 %v3673, %v3855
      %v3927 = vsub.f32 %v3762, %v3855
      %v3928 = vsub.f32 %v3676, %v3858
      %v3929 = vsub.f32 %v3765, %v3858
      %v3930 = vsub.f32 %v3678, %v3861
      %v3931 = vsub.f32 %v3767, %v3861
      %v3932 = vsub.f32 %v3681, %v3864
      %v3933 = vsub.f32 %v3770, %v3864
      %v3934 = vsub.f32 %v3683, %v3867
      %v3935 = vsub.f32 %v3772, %v3867
      %v3936 = vsub.f32 %v3686, %v3870
      %v3937 = vsub.f32 %v3775, %v3870
      %v3938 = vsub.f32 %v3688, %v3873
      %v3939 = vsub.f32 %v3777, %v3873
      %v3940 = vsub.f32 %v3691, %v3876
      %v3941 = vsub.f32 %v3780, %v3876
      %v3942 = vsub.f32 %v3693, %v3879
      %v3943 = vsub.f32 %v3782, %v3879
      %v3944 = vmul.f32 %v3880, 1.442695
      %v3945 = vpow.pop %v3944
      %v3946 = vmul.f32 %v3881, 1.442695
      %v3947 = vpow.pop %v3946
      %v3948 = vmul.f32 %v3882, 1.442695
      %v3949 = vpow.pop %v3948
      %v3950 = vmul.f32 %v3883, 1.442695
      %v3951 = vpow.pop %v3950
      %v3952 = vmul.f32 %v3884, 1.442695
      %v3953 = vpow.pop %v3952
      %v3954 = vmul.f32 %v3885, 1.442695
      %v3955 = vpow.pop %v3954
      %v3956 = vmul.f32 %v3886, 1.442695
      %v3957 = vpow.pop %v3956
      %v3958 = vmul.f32 %v3887, 1.442695
      %v3959 = vpow.pop %v3958
      %v3960 = vmul.f32 %v3888, 1.442695
      %v3961 = vpow.pop %v3960
      %v3962 = vmul.f32 %v3889, 1.442695
      %v3963 = vpow.pop %v3962
      %v3964 = vmul.f32 %v3890, 1.442695
      %v3965 = vpow.pop %v3964
      %v3966 = vmul.f32 %v3891, 1.442695
      %v3967 = vpow.pop %v3966
      %v3968 = vmul.f32 %v3892, 1.442695
      %v3969 = vpow.pop %v3968
      %v3970 = vmul.f32 %v3893, 1.442695
      %v3971 = vpow.pop %v3970
      %v3972 = vmul.f32 %v3894, 1.442695
      %v3973 = vpow.pop %v3972
      %v3974 = vmul.f32 %v3895, 1.442695
      %v3975 = vpow.pop %v3974
      %v3976 = vmul.f32 %v3896, 1.442695
      %v3977 = vpow.pop %v3976
      %v3978 = vmul.f32 %v3897, 1.442695
      %v3979 = vpow.pop %v3978
      %v3980 = vmul.f32 %v3898, 1.442695
      %v3981 = vpow.pop %v3980
      %v3982 = vmul.f32 %v3899, 1.442695
      %v3983 = vpow.pop %v3982
      %v3984 = vmul.f32 %v3900, 1.442695
      %v3985 = vpow.pop %v3984
      %v3986 = vmul.f32 %v3901, 1.442695
      %v3987 = vpow.pop %v3986
      %v3988 = vmul.f32 %v3902, 1.442695
      %v3989 = vpow.pop %v3988
      %v3990 = vmul.f32 %v3903, 1.442695
      %v3991 = vpow.pop %v3990
      %v3992 = vmul.f32 %v3904, 1.442695
      %v3993 = vpow.pop %v3992
      %v3994 = vmul.f32 %v3905, 1.442695
      %v3995 = vpow.pop %v3994
      %v3996 = vmul.f32 %v3906, 1.442695
      %v3997 = vpow.pop %v3996
      %v3998 = vmul.f32 %v3907, 1.442695
      %v3999 = vpow.pop %v3998
      %v4000 = vmul.f32 %v3908, 1.442695
      %v4001 = vpow.pop %v4000
      %v4002 = vmul.f32 %v3909, 1.442695
      %v4003 = vpow.pop %v4002
      %v4004 = vmul.f32 %v3910, 1.442695
      %v4005 = vpow.pop %v4004
      %v4006 = vmul.f32 %v3911, 1.442695
      %v4007 = vpow.pop %v4006
      %v4008 = vmul.f32 %v3912, 1.442695
      %v4009 = vpow.pop %v4008
      %v4010 = vmul.f32 %v3913, 1.442695
      %v4011 = vpow.pop %v4010
      %v4012 = vmul.f32 %v3914, 1.442695
      %v4013 = vpow.pop %v4012
      %v4014 = vmul.f32 %v3915, 1.442695
      %v4015 = vpow.pop %v4014
      %v4016 = vmul.f32 %v3916, 1.442695
      %v4017 = vpow.pop %v4016
      %v4018 = vmul.f32 %v3917, 1.442695
      %v4019 = vpow.pop %v4018
      %v4020 = vmul.f32 %v3918, 1.442695
      %v4021 = vpow.pop %v4020
      %v4022 = vmul.f32 %v3919, 1.442695
      %v4023 = vpow.pop %v4022
      %v4024 = vmul.f32 %v3920, 1.442695
      %v4025 = vpow.pop %v4024
      %v4026 = vmul.f32 %v3921, 1.442695
      %v4027 = vpow.pop %v4026
      %v4028 = vmul.f32 %v3922, 1.442695
      %v4029 = vpow.pop %v4028
      %v4030 = vmul.f32 %v3923, 1.442695
      %v4031 = vpow.pop %v4030
      %v4032 = vmul.f32 %v3924, 1.442695
      %v4033 = vpow.pop %v4032
      %v4034 = vmul.f32 %v3925, 1.442695
      %v4035 = vpow.pop %v4034
      %v4036 = vmul.f32 %v3926, 1.442695
      %v4037 = vpow.pop %v4036
      %v4038 = vmul.f32 %v3927, 1.442695
      %v4039 = vpow.pop %v4038
      %v4040 = vmul.f32 %v3928, 1.442695
      %v4041 = vpow.pop %v4040
      %v4042 = vmul.f32 %v3929, 1.442695
      %v4043 = vpow.pop %v4042
      %v4044 = vmul.f32 %v3930, 1.442695
      %v4045 = vpow.pop %v4044
      %v4046 = vmul.f32 %v3931, 1.442695
      %v4047 = vpow.pop %v4046
      %v4048 = vmul.f32 %v3932, 1.442695
      %v4049 = vpow.pop %v4048
      %v4050 = vmul.f32 %v3933, 1.442695
      %v4051 = vpow.pop %v4050
      %v4052 = vmul.f32 %v3934, 1.442695
      %v4053 = vpow.pop %v4052
      %v4054 = vmul.f32 %v3935, 1.442695
      %v4055 = vpow.pop %v4054
      %v4056 = vmul.f32 %v3936, 1.442695
      %v4057 = vpow.pop %v4056
      %v4058 = vmul.f32 %v3937, 1.442695
      %v4059 = vpow.pop %v4058
      %v4060 = vmul.f32 %v3938, 1.442695
      %v4061 = vpow.pop %v4060
      %v4062 = vmul.f32 %v3939, 1.442695
      %v4063 = vpow.pop %v4062
      %v4064 = vmul.f32 %v3940, 1.442695
      %v4065 = vpow.pop %v4064
      %v4066 = vmul.f32 %v3941, 1.442695
      %v4067 = vpow.pop %v4066
      %v4068 = vmul.f32 %v3942, 1.442695
      %v4069 = vpow.pop %v4068
      %v4070 = vmul.f32 %v3943, 1.442695
      %v4071 = vpow.pop %v4070
      %v4072 = vadd.f32 %v3945, %v3947
      %4073 = vadd.xlane.f32.xlu0 %v4072
      %v4074 = vpop.xlane.xlu0 %4073
      %v4075 = vadd.f32 %v3949, %v3951
      %4076 = vadd.xlane.f32.xlu0 %v4075
      %v4077 = vpop.xlane.xlu0 %4076
      %v4078 = vadd.f32 %v3953, %v3955
      %4079 = vadd.xlane.f32.xlu0 %v4078
      %v4080 = vpop.xlane.xlu0 %4079
      %v4081 = vadd.f32 %v3957, %v3959
      %4082 = vadd.xlane.f32.xlu0 %v4081
      %v4083 = vpop.xlane.xlu0 %4082
      %v4084 = vadd.f32 %v3961, %v3963
      %4085 = vadd.xlane.f32.xlu0 %v4084
      %v4086 = vpop.xlane.xlu0 %4085
      %v4087 = vadd.f32 %v3965, %v3967
      %4088 = vadd.xlane.f32.xlu0 %v4087
      %v4089 = vpop.xlane.xlu0 %4088
      %v4090 = vadd.f32 %v3969, %v3971
      %4091 = vadd.xlane.f32.xlu0 %v4090
      %v4092 = vpop.xlane.xlu0 %4091
      %v4093 = vadd.f32 %v3973, %v3975
      %4094 = vadd.xlane.f32.xlu0 %v4093
      %v4095 = vpop.xlane.xlu0 %4094
      %v4096 = vadd.f32 %v3977, %v3979
      %4097 = vadd.xlane.f32.xlu0 %v4096
      %v4098 = vpop.xlane.xlu0 %4097
      %v4099 = vadd.f32 %v3981, %v3983
      %4100 = vadd.xlane.f32.xlu0 %v4099
      %v4101 = vpop.xlane.xlu0 %4100
      %v4102 = vadd.f32 %v3985, %v3987
      %4103 = vadd.xlane.f32.xlu0 %v4102
      %v4104 = vpop.xlane.xlu0 %4103
      %v4105 = vadd.f32 %v3989, %v3991
      %4106 = vadd.xlane.f32.xlu0 %v4105
      %v4107 = vpop.xlane.xlu0 %4106
      %v4108 = vadd.f32 %v3993, %v3995
      %4109 = vadd.xlane.f32.xlu0 %v4108
      %v4110 = vpop.xlane.xlu0 %4109
      %v4111 = vadd.f32 %v3997, %v3999
      %4112 = vadd.xlane.f32.xlu0 %v4111
      %v4113 = vpop.xlane.xlu0 %4112
      %v4114 = vadd.f32 %v4001, %v4003
      %4115 = vadd.xlane.f32.xlu0 %v4114
      %v4116 = vpop.xlane.xlu0 %4115
      %v4117 = vadd.f32 %v4005, %v4007
      %4118 = vadd.xlane.f32.xlu0 %v4117
      %v4119 = vpop.xlane.xlu0 %4118
      %v4120 = vadd.f32 %v4009, %v4011
      %4121 = vadd.xlane.f32.xlu0 %v4120
      %v4122 = vpop.xlane.xlu0 %4121
      %v4123 = vadd.f32 %v4013, %v4015
      %4124 = vadd.xlane.f32.xlu0 %v4123
      %v4125 = vpop.xlane.xlu0 %4124
      %v4126 = vadd.f32 %v4017, %v4019
      %4127 = vadd.xlane.f32.xlu0 %v4126
      %v4128 = vpop.xlane.xlu0 %4127
      %v4129 = vadd.f32 %v4021, %v4023
      %4130 = vadd.xlane.f32.xlu0 %v4129
      %v4131 = vpop.xlane.xlu0 %4130
      %v4132 = vadd.f32 %v4025, %v4027
      %4133 = vadd.xlane.f32.xlu0 %v4132
      %v4134 = vpop.xlane.xlu0 %4133
      %v4135 = vadd.f32 %v4029, %v4031
      %4136 = vadd.xlane.f32.xlu0 %v4135
      %v4137 = vpop.xlane.xlu0 %4136
      %v4138 = vadd.f32 %v4033, %v4035
      %4139 = vadd.xlane.f32.xlu0 %v4138
      %v4140 = vpop.xlane.xlu0 %4139
      %v4141 = vadd.f32 %v4037, %v4039
      %4142 = vadd.xlane.f32.xlu0 %v4141
      %v4143 = vpop.xlane.xlu0 %4142
      %v4144 = vadd.f32 %v4041, %v4043
      %4145 = vadd.xlane.f32.xlu0 %v4144
      %v4146 = vpop.xlane.xlu0 %4145
      %v4147 = vadd.f32 %v4045, %v4047
      %4148 = vadd.xlane.f32.xlu0 %v4147
      %v4149 = vpop.xlane.xlu0 %4148
      %v4150 = vadd.f32 %v4049, %v4051
      %4151 = vadd.xlane.f32.xlu0 %v4150
      %v4152 = vpop.xlane.xlu0 %4151
      %v4153 = vadd.f32 %v4053, %v4055
      %4154 = vadd.xlane.f32.xlu0 %v4153
      %v4155 = vpop.xlane.xlu0 %4154
      %v4156 = vadd.f32 %v4057, %v4059
      %4157 = vadd.xlane.f32.xlu0 %v4156
      %v4158 = vpop.xlane.xlu0 %4157
      %v4159 = vadd.f32 %v4061, %v4063
      %4160 = vadd.xlane.f32.xlu0 %v4159
      %v4161 = vpop.xlane.xlu0 %4160
      %v4162 = vadd.f32 %v4065, %v4067
      %4163 = vadd.xlane.f32.xlu0 %v4162
      %v4164 = vpop.xlane.xlu0 %4163
      %v4165 = vadd.f32 %v4069, %v4071
      %4166 = vadd.xlane.f32.xlu0 %v4165
      %v4167 = vpop.xlane.xlu0 %4166
      %v4168 = vpack.c.bf16 %v3949, %v3945
      %v4169 = vpack.c.bf16 %v3951, %v3947
      %v4170 = vpack.c.bf16 %v3957, %v3953
      %v4171 = vpack.c.bf16 %v3959, %v3955
      %v4172 = vpack.c.bf16 %v3965, %v3961
      %v4173 = vpack.c.bf16 %v3967, %v3963
      %v4174 = vpack.c.bf16 %v3973, %v3969
      %v4175 = vpack.c.bf16 %v3975, %v3971
      %v4176 = vpack.c.bf16 %v3981, %v3977
      %v4177 = vpack.c.bf16 %v3983, %v3979
      %v4178 = vpack.c.bf16 %v3989, %v3985
      %v4179 = vpack.c.bf16 %v3991, %v3987
      %v4180 = vpack.c.bf16 %v3997, %v3993
      %v4181 = vpack.c.bf16 %v3999, %v3995
      %v4182 = vpack.c.bf16 %v4005, %v4001
      %v4183 = vpack.c.bf16 %v4007, %v4003
      %v4184 = vpack.c.bf16 %v4013, %v4009
      %v4185 = vpack.c.bf16 %v4015, %v4011
      %v4186 = vpack.c.bf16 %v4021, %v4017
      %v4187 = vpack.c.bf16 %v4023, %v4019
      %v4188 = vpack.c.bf16 %v4029, %v4025
      %v4189 = vpack.c.bf16 %v4031, %v4027
      %v4190 = vpack.c.bf16 %v4037, %v4033
      %v4191 = vpack.c.bf16 %v4039, %v4035
      %v4192 = vpack.c.bf16 %v4045, %v4041
      %v4193 = vpack.c.bf16 %v4047, %v4043
      %v4194 = vpack.c.bf16 %v4053, %v4049
      %v4195 = vpack.c.bf16 %v4055, %v4051
      %v4196 = vpack.c.bf16 %v4061, %v4057
      %v4197 = vpack.c.bf16 %v4063, %v4059
      %v4198 = vpack.c.bf16 %v4069, %v4065
      %v4199 = vpack.c.bf16 %v4071, %v4067
      %4200 = vrot.lane.b32.xlu0 %v1774, 64
      %v4201 = vpop.permute.xlu0 %4200
      %4202 = vrot.lane.b32.xlu0 %v1775, 64
      %v4203 = vpop.permute.xlu0 %4202
      %4204 = vrot.lane.b32.xlu0 %v1776, 64
      %v4205 = vpop.permute.xlu0 %4204
      %4206 = vrot.lane.b32.xlu0 %v1777, 64
      %v4207 = vpop.permute.xlu0 %4206
      %4208 = vrot.lane.b32.xlu0 %v1778, 64
      %v4209 = vpop.permute.xlu0 %4208
      %4210 = vrot.lane.b32.xlu0 %v1779, 64
      %v4211 = vpop.permute.xlu0 %4210
      %4212 = vrot.lane.b32.xlu0 %v1780, 64
      %v4213 = vpop.permute.xlu0 %4212
      %4214 = vrot.lane.b32.xlu0 %v1781, 64
      %v4215 = vpop.permute.xlu0 %4214
      %4216 = vrot.lane.b32.xlu0 %v1782, 64
      %v4217 = vpop.permute.xlu0 %4216
      %4218 = vrot.lane.b32.xlu0 %v1783, 64
      %v4219 = vpop.permute.xlu0 %4218
      %4220 = vrot.lane.b32.xlu0 %v1784, 64
      %v4221 = vpop.permute.xlu0 %4220
      %4222 = vrot.lane.b32.xlu0 %v1785, 64
      %v4223 = vpop.permute.xlu0 %4222
      %4224 = vrot.lane.b32.xlu0 %v1786, 64
      %v4225 = vpop.permute.xlu0 %4224
      %4226 = vrot.lane.b32.xlu0 %v1787, 64
      %v4227 = vpop.permute.xlu0 %4226
      %4228 = vrot.lane.b32.xlu0 %v1788, 64
      %v4229 = vpop.permute.xlu0 %4228
      %4230 = vrot.lane.b32.xlu0 %v1789, 64
      %v4231 = vpop.permute.xlu0 %4230
      %4248 = vmatpush.bf16.msra.mxu0 %v4215
      %4249 = vmatpush.bf16.msra.mxu0 %v4213
      %4250 = vmatpush.bf16.msra.mxu0 %v4211
      %4251 = vmatpush.bf16.msra.mxu0 %v4209
      %4252 = vmatpush.bf16.msra.mxu0 %v4207
      %4253 = vmatpush.bf16.msra.mxu0 %v4205
      %4254 = vmatpush.bf16.msra.mxu0 %v4203
      %4255 = vmatpush.bf16.msra.mxu0 %v4201
      %4256 = vmatmul.bf16.gmra.mxu0 %v4168
      %v4257 = vpop.f32.mrf.mxu0
      %v4258 = vadd.f32 0.0, %v4257
      %v4259 = vpop.f32.mrf.mxu0
      %v4260 = vadd.f32 0.0, %v4259
      %4261 = vmatmul.bf16.gmra.mxu0 %v4170
      %v4262 = vpop.f32.mrf.mxu0
      %v4263 = vadd.f32 0.0, %v4262
      %v4264 = vpop.f32.mrf.mxu0
      %v4265 = vadd.f32 0.0, %v4264
      %4266 = vmatmul.bf16.gmra.mxu0 %v4172
      %v4267 = vpop.f32.mrf.mxu0
      %v4268 = vadd.f32 0.0, %v4267
      %v4269 = vpop.f32.mrf.mxu0
      %v4270 = vadd.f32 0.0, %v4269
      %4271 = vmatmul.bf16.gmra.mxu0 %v4174
      %v4272 = vpop.f32.mrf.mxu0
      %v4273 = vadd.f32 0.0, %v4272
      %v4274 = vpop.f32.mrf.mxu0
      %v4275 = vadd.f32 0.0, %v4274
      %4276 = vmatmul.bf16.gmra.mxu0 %v4176
      %v4277 = vpop.f32.mrf.mxu0
      %v4278 = vadd.f32 0.0, %v4277
      %v4279 = vpop.f32.mrf.mxu0
      %v4280 = vadd.f32 0.0, %v4279
      %4281 = vmatmul.bf16.gmra.mxu0 %v4178
      %v4282 = vpop.f32.mrf.mxu0
      %v4283 = vadd.f32 0.0, %v4282
      %v4284 = vpop.f32.mrf.mxu0
      %v4285 = vadd.f32 0.0, %v4284
      %4286 = vmatmul.bf16.gmra.mxu0 %v4180
      %v4287 = vpop.f32.mrf.mxu0
      %v4288 = vadd.f32 0.0, %v4287
      %v4289 = vpop.f32.mrf.mxu0
      %v4290 = vadd.f32 0.0, %v4289
      %4291 = vmatmul.bf16.gmra.mxu0 %v4182
      %v4292 = vpop.f32.mrf.mxu0
      %v4293 = vadd.f32 0.0, %v4292
      %v4294 = vpop.f32.mrf.mxu0
      %v4295 = vadd.f32 0.0, %v4294
      %4296 = vmatmul.bf16.gmra.mxu0 %v4184
      %v4297 = vpop.f32.mrf.mxu0
      %v4298 = vadd.f32 0.0, %v4297
      %v4299 = vpop.f32.mrf.mxu0
      %v4300 = vadd.f32 0.0, %v4299
      %4301 = vmatmul.bf16.gmra.mxu0 %v4186
      %v4302 = vpop.f32.mrf.mxu0
      %v4303 = vadd.f32 0.0, %v4302
      %v4304 = vpop.f32.mrf.mxu0
      %v4305 = vadd.f32 0.0, %v4304
      %4306 = vmatmul.bf16.gmra.mxu0 %v4188
      %v4307 = vpop.f32.mrf.mxu0
      %v4308 = vadd.f32 0.0, %v4307
      %v4309 = vpop.f32.mrf.mxu0
      %v4310 = vadd.f32 0.0, %v4309
      %4311 = vmatmul.bf16.gmra.mxu0 %v4190
      %v4312 = vpop.f32.mrf.mxu0
      %v4313 = vadd.f32 0.0, %v4312
      %v4314 = vpop.f32.mrf.mxu0
      %v4315 = vadd.f32 0.0, %v4314
      %4316 = vmatmul.bf16.gmra.mxu0 %v4192
      %v4317 = vpop.f32.mrf.mxu0
      %v4318 = vadd.f32 0.0, %v4317
      %v4319 = vpop.f32.mrf.mxu0
      %v4320 = vadd.f32 0.0, %v4319
      %4321 = vmatmul.bf16.gmra.mxu0 %v4194
      %v4322 = vpop.f32.mrf.mxu0
      %v4323 = vadd.f32 0.0, %v4322
      %v4324 = vpop.f32.mrf.mxu0
      %v4325 = vadd.f32 0.0, %v4324
      %4326 = vmatmul.bf16.gmra.mxu0 %v4196
      %v4327 = vpop.f32.mrf.mxu0
      %v4328 = vadd.f32 0.0, %v4327
      %v4329 = vpop.f32.mrf.mxu0
      %v4330 = vadd.f32 0.0, %v4329
      %4331 = vmatmul.bf16.gmra.mxu0 %v4198
      %v4332 = vpop.f32.mrf.mxu0
      %v4333 = vadd.f32 0.0, %v4332
      %v4334 = vpop.f32.mrf.mxu0
      %v4335 = vadd.f32 0.0, %v4334
      %4336 = vdwg.mxu0
      %4337 = vmatpush.bf16.msra.mxu0 %v4231
      %4338 = vmatpush.bf16.msra.mxu0 %v4229
      %4339 = vmatpush.bf16.msra.mxu0 %v4227
      %4340 = vmatpush.bf16.msra.mxu0 %v4225
      %4341 = vmatpush.bf16.msra.mxu0 %v4223
      %4342 = vmatpush.bf16.msra.mxu0 %v4221
      %4343 = vmatpush.bf16.msra.mxu0 %v4219
      %4344 = vmatpush.bf16.msra.mxu0 %v4217
      %4345 = vmatmul.bf16.gmra.mxu0 %v4169
      %v4346 = vpop.f32.mrf.mxu0
      %v4347 = vadd.f32 %v4258, %v4346
      %v4348 = vpop.f32.mrf.mxu0
      %v4349 = vadd.f32 %v4260, %v4348
      %4350 = vmatmul.bf16.gmra.mxu0 %v4171
      %v4351 = vpop.f32.mrf.mxu0
      %v4352 = vadd.f32 %v4263, %v4351
      %v4353 = vpop.f32.mrf.mxu0
      %v4354 = vadd.f32 %v4265, %v4353
      %4355 = vmatmul.bf16.gmra.mxu0 %v4173
      %v4356 = vpop.f32.mrf.mxu0
      %v4357 = vadd.f32 %v4268, %v4356
      %v4358 = vpop.f32.mrf.mxu0
      %v4359 = vadd.f32 %v4270, %v4358
      %4360 = vmatmul.bf16.gmra.mxu0 %v4175
      %v4361 = vpop.f32.mrf.mxu0
      %v4362 = vadd.f32 %v4273, %v4361
      %v4363 = vpop.f32.mrf.mxu0
      %v4364 = vadd.f32 %v4275, %v4363
      %4365 = vmatmul.bf16.gmra.mxu0 %v4177
      %v4366 = vpop.f32.mrf.mxu0
      %v4367 = vadd.f32 %v4278, %v4366
      %v4368 = vpop.f32.mrf.mxu0
      %v4369 = vadd.f32 %v4280, %v4368
      %4370 = vmatmul.bf16.gmra.mxu0 %v4179
      %v4371 = vpop.f32.mrf.mxu0
      %v4372 = vadd.f32 %v4283, %v4371
      %v4373 = vpop.f32.mrf.mxu0
      %v4374 = vadd.f32 %v4285, %v4373
      %4375 = vmatmul.bf16.gmra.mxu0 %v4181
      %v4376 = vpop.f32.mrf.mxu0
      %v4377 = vadd.f32 %v4288, %v4376
      %v4378 = vpop.f32.mrf.mxu0
      %v4379 = vadd.f32 %v4290, %v4378
      %4380 = vmatmul.bf16.gmra.mxu0 %v4183
      %v4381 = vpop.f32.mrf.mxu0
      %v4382 = vadd.f32 %v4293, %v4381
      %v4383 = vpop.f32.mrf.mxu0
      %v4384 = vadd.f32 %v4295, %v4383
      %4385 = vmatmul.bf16.gmra.mxu0 %v4185
      %v4386 = vpop.f32.mrf.mxu0
      %v4387 = vadd.f32 %v4298, %v4386
      %v4388 = vpop.f32.mrf.mxu0
      %v4389 = vadd.f32 %v4300, %v4388
      %4390 = vmatmul.bf16.gmra.mxu0 %v4187
      %v4391 = vpop.f32.mrf.mxu0
      %v4392 = vadd.f32 %v4303, %v4391
      %v4393 = vpop.f32.mrf.mxu0
      %v4394 = vadd.f32 %v4305, %v4393
      %4395 = vmatmul.bf16.gmra.mxu0 %v4189
      %v4396 = vpop.f32.mrf.mxu0
      %v4397 = vadd.f32 %v4308, %v4396
      %v4398 = vpop.f32.mrf.mxu0
      %v4399 = vadd.f32 %v4310, %v4398
      %4400 = vmatmul.bf16.gmra.mxu0 %v4191
      %v4401 = vpop.f32.mrf.mxu0
      %v4402 = vadd.f32 %v4313, %v4401
      %v4403 = vpop.f32.mrf.mxu0
      %v4404 = vadd.f32 %v4315, %v4403
      %4405 = vmatmul.bf16.gmra.mxu0 %v4193
      %v4406 = vpop.f32.mrf.mxu0
      %v4407 = vadd.f32 %v4318, %v4406
      %v4408 = vpop.f32.mrf.mxu0
      %v4409 = vadd.f32 %v4320, %v4408
      %4410 = vmatmul.bf16.gmra.mxu0 %v4195
      %v4411 = vpop.f32.mrf.mxu0
      %v4412 = vadd.f32 %v4323, %v4411
      %v4413 = vpop.f32.mrf.mxu0
      %v4414 = vadd.f32 %v4325, %v4413
      %4415 = vmatmul.bf16.gmra.mxu0 %v4197
      %v4416 = vpop.f32.mrf.mxu0
      %v4417 = vadd.f32 %v4328, %v4416
      %v4418 = vpop.f32.mrf.mxu0
      %v4419 = vadd.f32 %v4330, %v4418
      %4420 = vmatmul.bf16.gmra.mxu0 %v4199
      %v4421 = vpop.f32.mrf.mxu0
      %v4422 = vadd.f32 %v4333, %v4421
      %v4423 = vpop.f32.mrf.mxu0
      %v4424 = vadd.f32 %v4335, %v4423
      %4425 = vdwg.mxu0
      %v4426 = vrcp.pop %v4074
      %v4427 = vrcp.pop %v4077
      %v4428 = vrcp.pop %v4080
      %v4429 = vrcp.pop %v4083
      %v4430 = vrcp.pop %v4086
      %v4431 = vrcp.pop %v4089
      %v4432 = vrcp.pop %v4092
      %v4433 = vrcp.pop %v4095
      %v4434 = vrcp.pop %v4098
      %v4435 = vrcp.pop %v4101
      %v4436 = vrcp.pop %v4104
      %v4437 = vrcp.pop %v4107
      %v4438 = vrcp.pop %v4110
      %v4439 = vrcp.pop %v4113
      %v4440 = vrcp.pop %v4116
      %v4441 = vrcp.pop %v4119
      %v4442 = vrcp.pop %v4122
      %v4443 = vrcp.pop %v4125
      %v4444 = vrcp.pop %v4128
      %v4445 = vrcp.pop %v4131
      %v4446 = vrcp.pop %v4134
      %v4447 = vrcp.pop %v4137
      %v4448 = vrcp.pop %v4140
      %v4449 = vrcp.pop %v4143
      %v4450 = vrcp.pop %v4146
      %v4451 = vrcp.pop %v4149
      %v4452 = vrcp.pop %v4152
      %v4453 = vrcp.pop %v4155
      %v4454 = vrcp.pop %v4158
      %v4455 = vrcp.pop %v4161
      %v4456 = vrcp.pop %v4164
      %v4457 = vrcp.pop %v4167
      %v4458 = vmul.f32 %v4347, %v4426
      %v4459 = vmul.f32 %v4349, %v4427
      %v4460 = vmul.f32 %v4352, %v4428
      %v4461 = vmul.f32 %v4354, %v4429
      %v4462 = vmul.f32 %v4357, %v4430
      %v4463 = vmul.f32 %v4359, %v4431
      %v4464 = vmul.f32 %v4362, %v4432
      %v4465 = vmul.f32 %v4364, %v4433
      %v4466 = vmul.f32 %v4367, %v4434
      %v4467 = vmul.f32 %v4369, %v4435
      %v4468 = vmul.f32 %v4372, %v4436
      %v4469 = vmul.f32 %v4374, %v4437
      %v4470 = vmul.f32 %v4377, %v4438
      %v4471 = vmul.f32 %v4379, %v4439
      %v4472 = vmul.f32 %v4382, %v4440
      %v4473 = vmul.f32 %v4384, %v4441
      %v4474 = vmul.f32 %v4387, %v4442
      %v4475 = vmul.f32 %v4389, %v4443
      %v4476 = vmul.f32 %v4392, %v4444
      %v4477 = vmul.f32 %v4394, %v4445
      %v4478 = vmul.f32 %v4397, %v4446
      %v4479 = vmul.f32 %v4399, %v4447
      %v4480 = vmul.f32 %v4402, %v4448
      %v4481 = vmul.f32 %v4404, %v4449
      %v4482 = vmul.f32 %v4407, %v4450
      %v4483 = vmul.f32 %v4409, %v4451
      %v4484 = vmul.f32 %v4412, %v4452
      %v4485 = vmul.f32 %v4414, %v4453
      %v4486 = vmul.f32 %v4417, %v4454
      %v4487 = vmul.f32 %v4419, %v4455
      %v4488 = vmul.f32 %v4422, %v4456
      %v4489 = vmul.f32 %v4424, %v4457
      %v4490 = vpack.c.bf16 %v4459, %v4458
      %v4491 = vpack.c.bf16 %v4461, %v4460
      %v4492 = vpack.c.bf16 %v4463, %v4462
      %v4493 = vpack.c.bf16 %v4465, %v4464
      %v4494 = vpack.c.bf16 %v4467, %v4466
      %v4495 = vpack.c.bf16 %v4469, %v4468
      %v4496 = vpack.c.bf16 %v4471, %v4470
      %v4497 = vpack.c.bf16 %v4473, %v4472
      %v4498 = vpack.c.bf16 %v4475, %v4474
      %v4499 = vpack.c.bf16 %v4477, %v4476
      %v4500 = vpack.c.bf16 %v4479, %v4478
      %v4501 = vpack.c.bf16 %v4481, %v4480
      %v4502 = vpack.c.bf16 %v4483, %v4482
      %v4503 = vpack.c.bf16 %v4485, %v4484
      %v4504 = vpack.c.bf16 %v4487, %v4486
      %v4505 = vpack.c.bf16 %v4489, %v4488
      %v4506 = vld [vmem:[%s3 + $0x20] sm:$0xf]
      %v4507 = vld [vmem:[%s3 + $0x24] sm:$0xf]
      %v4508 = vld [vmem:[%s3 + $0x28] sm:$0xf]
      %v4509 = vld [vmem:[%s3 + $0x2c] sm:$0xf]
      %v4514 = vunpack.c.l.b16 %v4506
      %v4515 = vunpack.c.l.b16 %v4507
      %v4516 = vunpack.c.l.b16 %v4508
      %v4517 = vunpack.c.l.b16 %v4509
      %v4518 = vpack.c.b16 %v4515, %v4514
      %v4519 = vpack.c.b16 %v4517, %v4516
      %v4523 = vsel %vm1019, %v4490, 0
      %v4526 = vsel %vm1019, %v4491, 0
      %v4529 = vsel %vm1019, %v4492, 0
      %v4532 = vsel %vm1019, %v4493, 0
      %v4535 = vsel %vm1019, %v4494, 0
      %v4538 = vsel %vm1019, %v4495, 0
      %v4541 = vsel %vm1019, %v4496, 0
      %v4544 = vsel %vm1019, %v4497, 0
      %v4547 = vsel %vm1019, %v4498, 0
      %v4550 = vsel %vm1019, %v4499, 0
      %v4553 = vsel %vm1019, %v4500, 0
      %v4556 = vsel %vm1019, %v4501, 0
      %v4559 = vsel %vm1019, %v4502, 0
      %v4562 = vsel %vm1019, %v4503, 0
      %v4565 = vsel %vm1019, %v4504, 0
      %v4568 = vsel %vm1019, %v4505, 0
      %4570 = vmatpush.bf16.msra.mxu0 0
      %4571 = vmatpush.bf16.msra.mxu0 0
      %4572 = vmatpush.bf16.msra.mxu0 0
      %4573 = vmatpush.bf16.msra.mxu0 0
      %4574 = vmatpush.bf16.msra.mxu0 0
      %4575 = vmatpush.bf16.msra.mxu0 0
      %4576 = vmatpush.bf16.msra.mxu0 %v4519
      %4577 = vmatpush.bf16.msra.mxu0 %v4518
      %4578 = vmatmul.bf16.gmra.mxu0 %v4523
      %v4579 = vpop.f32.mrf.mxu0
      %v4580 = vadd.f32 0.0, %v4579
      %v4581 = vpop.f32.mrf.mxu0
      %v4582 = vadd.f32 0.0, %v4581
      %4583 = vmatmul.bf16.gmra.mxu0 %v4526
      %v4584 = vpop.f32.mrf.mxu0
      %v4585 = vadd.f32 0.0, %v4584
      %v4586 = vpop.f32.mrf.mxu0
      %v4587 = vadd.f32 0.0, %v4586
      %4588 = vmatmul.bf16.gmra.mxu0 %v4529
      %v4589 = vpop.f32.mrf.mxu0
      %v4590 = vadd.f32 0.0, %v4589
      %v4591 = vpop.f32.mrf.mxu0
      %v4592 = vadd.f32 0.0, %v4591
      %4593 = vmatmul.bf16.gmra.mxu0 %v4532
      %v4594 = vpop.f32.mrf.mxu0
      %v4595 = vadd.f32 0.0, %v4594
      %v4596 = vpop.f32.mrf.mxu0
      %v4597 = vadd.f32 0.0, %v4596
      %4598 = vmatmul.bf16.gmra.mxu0 %v4535
      %v4599 = vpop.f32.mrf.mxu0
      %v4600 = vadd.f32 0.0, %v4599
      %v4601 = vpop.f32.mrf.mxu0
      %v4602 = vadd.f32 0.0, %v4601
      %4603 = vmatmul.bf16.gmra.mxu0 %v4538
      %v4604 = vpop.f32.mrf.mxu0
      %v4605 = vadd.f32 0.0, %v4604
      %v4606 = vpop.f32.mrf.mxu0
      %v4607 = vadd.f32 0.0, %v4606
      %4608 = vmatmul.bf16.gmra.mxu0 %v4541
      %v4609 = vpop.f32.mrf.mxu0
      %v4610 = vadd.f32 0.0, %v4609
      %v4611 = vpop.f32.mrf.mxu0
      %v4612 = vadd.f32 0.0, %v4611
      %4613 = vmatmul.bf16.gmra.mxu0 %v4544
      %v4614 = vpop.f32.mrf.mxu0
      %v4615 = vadd.f32 0.0, %v4614
      %v4616 = vpop.f32.mrf.mxu0
      %v4617 = vadd.f32 0.0, %v4616
      %4618 = vmatmul.bf16.gmra.mxu0 %v4547
      %v4619 = vpop.f32.mrf.mxu0
      %v4620 = vadd.f32 0.0, %v4619
      %v4621 = vpop.f32.mrf.mxu0
      %v4622 = vadd.f32 0.0, %v4621
      %4623 = vmatmul.bf16.gmra.mxu0 %v4550
      %v4624 = vpop.f32.mrf.mxu0
      %v4625 = vadd.f32 0.0, %v4624
      %v4626 = vpop.f32.mrf.mxu0
      %v4627 = vadd.f32 0.0, %v4626
      %4628 = vmatmul.bf16.gmra.mxu0 %v4553
      %v4629 = vpop.f32.mrf.mxu0
      %v4630 = vadd.f32 0.0, %v4629
      %v4631 = vpop.f32.mrf.mxu0
      %v4632 = vadd.f32 0.0, %v4631
      %4633 = vmatmul.bf16.gmra.mxu0 %v4556
      %v4634 = vpop.f32.mrf.mxu0
      %v4635 = vadd.f32 0.0, %v4634
      %v4636 = vpop.f32.mrf.mxu0
      %v4637 = vadd.f32 0.0, %v4636
      %4638 = vmatmul.bf16.gmra.mxu0 %v4559
      %v4639 = vpop.f32.mrf.mxu0
      %v4640 = vadd.f32 0.0, %v4639
      %v4641 = vpop.f32.mrf.mxu0
      %v4642 = vadd.f32 0.0, %v4641
      %4643 = vmatmul.bf16.gmra.mxu0 %v4562
      %v4644 = vpop.f32.mrf.mxu0
      %v4645 = vadd.f32 0.0, %v4644
      %v4646 = vpop.f32.mrf.mxu0
      %v4647 = vadd.f32 0.0, %v4646
      %4648 = vmatmul.bf16.gmra.mxu0 %v4565
      %v4649 = vpop.f32.mrf.mxu0
      %v4650 = vadd.f32 0.0, %v4649
      %v4651 = vpop.f32.mrf.mxu0
      %v4652 = vadd.f32 0.0, %v4651
      %4653 = vmatmul.bf16.gmra.mxu0 %v4568
      %v4654 = vpop.f32.mrf.mxu0
      %v4655 = vadd.f32 0.0, %v4654
      %v4656 = vpop.f32.mrf.mxu0
      %v4657 = vadd.f32 0.0, %v4656
      %4658 = vdwg.mxu0
      %v4659 = vadd.f32 %v3367, %v4580
      %v4660 = vadd.f32 %v3369, %v4582
      %v4661 = vadd.f32 %v3372, %v4585
      %v4662 = vadd.f32 %v3374, %v4587
      %v4663 = vadd.f32 %v3377, %v4590
      %v4664 = vadd.f32 %v3379, %v4592
      %v4665 = vadd.f32 %v3382, %v4595
      %v4666 = vadd.f32 %v3384, %v4597
      %v4667 = vadd.f32 %v3387, %v4600
      %v4668 = vadd.f32 %v3389, %v4602
      %v4669 = vadd.f32 %v3392, %v4605
      %v4670 = vadd.f32 %v3394, %v4607
      %v4671 = vadd.f32 %v3397, %v4610
      %v4672 = vadd.f32 %v3399, %v4612
      %v4673 = vadd.f32 %v3402, %v4615
      %v4674 = vadd.f32 %v3404, %v4617
      %v4675 = vadd.f32 %v3407, %v4620
      %v4676 = vadd.f32 %v3409, %v4622
      %v4677 = vadd.f32 %v3412, %v4625
      %v4678 = vadd.f32 %v3414, %v4627
      %v4679 = vadd.f32 %v3417, %v4630
      %v4680 = vadd.f32 %v3419, %v4632
      %v4681 = vadd.f32 %v3422, %v4635
      %v4682 = vadd.f32 %v3424, %v4637
      %v4683 = vadd.f32 %v3427, %v4640
      %v4684 = vadd.f32 %v3429, %v4642
      %v4685 = vadd.f32 %v3432, %v4645
      %v4686 = vadd.f32 %v3434, %v4647
      %v4687 = vadd.f32 %v3437, %v4650
      %v4688 = vadd.f32 %v3439, %v4652
      %v4689 = vadd.f32 %v3442, %v4655
      %v4690 = vadd.f32 %v3444, %v4657
      %4691 = vrot.lane.b32.xlu0 %v923, 32
      %v4692 = vpop.permute.xlu0 %4691
      %4693 = vrot.lane.b32.xlu0 %v924, 32
      %v4694 = vpop.permute.xlu0 %4693
      %4695 = vrot.lane.b32.xlu0 %v925, 32
      %v4696 = vpop.permute.xlu0 %4695
      %4697 = vrot.lane.b32.xlu0 %v926, 32
      %v4698 = vpop.permute.xlu0 %4697
      %4699 = vrot.lane.b32.xlu0 %v927, 32
      %v4700 = vpop.permute.xlu0 %4699
      %4701 = vrot.lane.b32.xlu0 %v928, 32
      %v4702 = vpop.permute.xlu0 %4701
      %4703 = vrot.lane.b32.xlu0 %v929, 32
      %v4704 = vpop.permute.xlu0 %4703
      %4705 = vrot.lane.b32.xlu0 %v930, 32
      %v4706 = vpop.permute.xlu0 %4705
      %4707 = vrot.lane.b32.xlu0 %v931, 32
      %v4708 = vpop.permute.xlu0 %4707
      %4709 = vrot.lane.b32.xlu0 %v932, 32
      %v4710 = vpop.permute.xlu0 %4709
      %4711 = vrot.lane.b32.xlu0 %v933, 32
      %v4712 = vpop.permute.xlu0 %4711
      %4713 = vrot.lane.b32.xlu0 %v934, 32
      %v4714 = vpop.permute.xlu0 %4713
      %4715 = vrot.lane.b32.xlu0 %v935, 32
      %v4716 = vpop.permute.xlu0 %4715
      %4717 = vrot.lane.b32.xlu0 %v936, 32
      %v4718 = vpop.permute.xlu0 %4717
      %4719 = vrot.lane.b32.xlu0 %v937, 32
      %v4720 = vpop.permute.xlu0 %4719
      %4721 = vrot.lane.b32.xlu0 %v938, 32
      %v4722 = vpop.permute.xlu0 %4721
      %4723 = vrot.lane.b32.xlu0 %v1003, 32
      %v4724 = vpop.permute.xlu0 %4723
      %4725 = vrot.lane.b32.xlu0 %v1004, 32
      %v4726 = vpop.permute.xlu0 %4725
      %4727 = vrot.lane.b32.xlu0 %v1005, 32
      %v4728 = vpop.permute.xlu0 %4727
      %4729 = vrot.lane.b32.xlu0 %v1006, 32
      %v4730 = vpop.permute.xlu0 %4729
      %4731 = vrot.lane.b32.xlu0 %v1007, 32
      %v4732 = vpop.permute.xlu0 %4731
      %4733 = vrot.lane.b32.xlu0 %v1008, 32
      %v4734 = vpop.permute.xlu0 %4733
      %4735 = vrot.lane.b32.xlu0 %v1009, 32
      %v4736 = vpop.permute.xlu0 %4735
      %4737 = vrot.lane.b32.xlu0 %v1010, 32
      %v4738 = vpop.permute.xlu0 %4737
      %4739 = vrot.lane.b32.xlu0 %v1011, 32
      %v4740 = vpop.permute.xlu0 %4739
      %4741 = vrot.lane.b32.xlu0 %v1012, 32
      %v4742 = vpop.permute.xlu0 %4741
      %4743 = vrot.lane.b32.xlu0 %v1013, 32
      %v4744 = vpop.permute.xlu0 %4743
      %4745 = vrot.lane.b32.xlu0 %v1014, 32
      %v4746 = vpop.permute.xlu0 %4745
      %4747 = vrot.lane.b32.xlu0 %v1015, 32
      %v4748 = vpop.permute.xlu0 %4747
      %4749 = vrot.lane.b32.xlu0 %v1016, 32
      %v4750 = vpop.permute.xlu0 %4749
      %4751 = vrot.lane.b32.xlu0 %v1017, 32
      %v4752 = vpop.permute.xlu0 %4751
      %4753 = vrot.lane.b32.xlu0 %v1018, 32
      %v4754 = vpop.permute.xlu0 %4753
      %v4756 = vsel %vm1019, %v4692, 0
      %v4759 = vsel %vm1019, %v4694, 0
      %v4762 = vsel %vm1019, %v4696, 0
      %v4765 = vsel %vm1019, %v4698, 0
      %v4768 = vsel %vm1019, %v4700, 0
      %v4771 = vsel %vm1019, %v4702, 0
      %v4774 = vsel %vm1019, %v4704, 0
      %v4777 = vsel %vm1019, %v4706, 0
      %v4780 = vsel %vm1019, %v4708, 0
      %v4783 = vsel %vm1019, %v4710, 0
      %v4786 = vsel %vm1019, %v4712, 0
      %v4789 = vsel %vm1019, %v4714, 0
      %v4792 = vsel %vm1019, %v4716, 0
      %v4795 = vsel %vm1019, %v4718, 0
      %v4798 = vsel %vm1019, %v4720, 0
      %v4801 = vsel %vm1019, %v4722, 0
      %v4804 = vsel %vm1019, %v4724, 0
      %v4807 = vsel %vm1019, %v4726, 0
      %v4810 = vsel %vm1019, %v4728, 0
      %v4813 = vsel %vm1019, %v4730, 0
      %v4816 = vsel %vm1019, %v4732, 0
      %v4819 = vsel %vm1019, %v4734, 0
      %v4822 = vsel %vm1019, %v4736, 0
      %v4825 = vsel %vm1019, %v4738, 0
      %v4828 = vsel %vm1019, %v4740, 0
      %v4831 = vsel %vm1019, %v4742, 0
      %v4834 = vsel %vm1019, %v4744, 0
      %v4837 = vsel %vm1019, %v4746, 0
      %v4840 = vsel %vm1019, %v4748, 0
      %v4843 = vsel %vm1019, %v4750, 0
      %v4846 = vsel %vm1019, %v4752, 0
      %v4849 = vsel %vm1019, %v4754, 0
      %4851 = vmatpush.bf16.xpose.msra.mxu0 %v4825
      %4852 = vmatpush.bf16.xpose.msra.mxu0 %v4822
      %4853 = vmatpush.bf16.xpose.msra.mxu0 %v4819
      %4854 = vmatpush.bf16.xpose.msra.mxu0 %v4816
      %4855 = vmatpush.bf16.xpose.msra.mxu0 %v4813
      %4856 = vmatpush.bf16.xpose.msra.mxu0 %v4810
      %4857 = vmatpush.bf16.xpose.msra.mxu0 %v4807
      %4858 = vmatpush.bf16.xpose.msra.mxu0 %v4804
      %4859 = vmatmul.bf16.gmra.mxu0 %v4756
      %v4860 = vpop.f32.mrf.mxu0
      %v4861 = vadd.f32 0.0, %v4860
      %v4862 = vpop.f32.mrf.mxu0
      %v4863 = vadd.f32 0.0, %v4862
      %4864 = vmatmul.bf16.gmra.mxu0 %v4759
      %v4865 = vpop.f32.mrf.mxu0
      %v4866 = vadd.f32 0.0, %v4865
      %v4867 = vpop.f32.mrf.mxu0
      %v4868 = vadd.f32 0.0, %v4867
      %4869 = vmatmul.bf16.gmra.mxu0 %v4762
      %v4870 = vpop.f32.mrf.mxu0
      %v4871 = vadd.f32 0.0, %v4870
      %v4872 = vpop.f32.mrf.mxu0
      %v4873 = vadd.f32 0.0, %v4872
      %4874 = vmatmul.bf16.gmra.mxu0 %v4765
      %v4875 = vpop.f32.mrf.mxu0
      %v4876 = vadd.f32 0.0, %v4875
      %v4877 = vpop.f32.mrf.mxu0
      %v4878 = vadd.f32 0.0, %v4877
      %4879 = vmatmul.bf16.gmra.mxu0 %v4768
      %v4880 = vpop.f32.mrf.mxu0
      %v4881 = vadd.f32 0.0, %v4880
      %v4882 = vpop.f32.mrf.mxu0
      %v4883 = vadd.f32 0.0, %v4882
      %4884 = vmatmul.bf16.gmra.mxu0 %v4771
      %v4885 = vpop.f32.mrf.mxu0
      %v4886 = vadd.f32 0.0, %v4885
      %v4887 = vpop.f32.mrf.mxu0
      %v4888 = vadd.f32 0.0, %v4887
      %4889 = vmatmul.bf16.gmra.mxu0 %v4774
      %v4890 = vpop.f32.mrf.mxu0
      %v4891 = vadd.f32 0.0, %v4890
      %v4892 = vpop.f32.mrf.mxu0
      %v4893 = vadd.f32 0.0, %v4892
      %4894 = vmatmul.bf16.gmra.mxu0 %v4777
      %v4895 = vpop.f32.mrf.mxu0
      %v4896 = vadd.f32 0.0, %v4895
      %v4897 = vpop.f32.mrf.mxu0
      %v4898 = vadd.f32 0.0, %v4897
      %4899 = vmatmul.bf16.gmra.mxu0 %v4780
      %v4900 = vpop.f32.mrf.mxu0
      %v4901 = vadd.f32 0.0, %v4900
      %v4902 = vpop.f32.mrf.mxu0
      %v4903 = vadd.f32 0.0, %v4902
      %4904 = vmatmul.bf16.gmra.mxu0 %v4783
      %v4905 = vpop.f32.mrf.mxu0
      %v4906 = vadd.f32 0.0, %v4905
      %v4907 = vpop.f32.mrf.mxu0
      %v4908 = vadd.f32 0.0, %v4907
      %4909 = vmatmul.bf16.gmra.mxu0 %v4786
      %v4910 = vpop.f32.mrf.mxu0
      %v4911 = vadd.f32 0.0, %v4910
      %v4912 = vpop.f32.mrf.mxu0
      %v4913 = vadd.f32 0.0, %v4912
      %4914 = vmatmul.bf16.gmra.mxu0 %v4789
      %v4915 = vpop.f32.mrf.mxu0
      %v4916 = vadd.f32 0.0, %v4915
      %v4917 = vpop.f32.mrf.mxu0
      %v4918 = vadd.f32 0.0, %v4917
      %4919 = vmatmul.bf16.gmra.mxu0 %v4792
      %v4920 = vpop.f32.mrf.mxu0
      %v4921 = vadd.f32 0.0, %v4920
      %v4922 = vpop.f32.mrf.mxu0
      %v4923 = vadd.f32 0.0, %v4922
      %4924 = vmatmul.bf16.gmra.mxu0 %v4795
      %v4925 = vpop.f32.mrf.mxu0
      %v4926 = vadd.f32 0.0, %v4925
      %v4927 = vpop.f32.mrf.mxu0
      %v4928 = vadd.f32 0.0, %v4927
      %4929 = vmatmul.bf16.gmra.mxu0 %v4798
      %v4930 = vpop.f32.mrf.mxu0
      %v4931 = vadd.f32 0.0, %v4930
      %v4932 = vpop.f32.mrf.mxu0
      %v4933 = vadd.f32 0.0, %v4932
      %4934 = vmatmul.bf16.gmra.mxu0 %v4801
      %v4935 = vpop.f32.mrf.mxu0
      %v4936 = vadd.f32 0.0, %v4935
      %v4937 = vpop.f32.mrf.mxu0
      %v4938 = vadd.f32 0.0, %v4937
      %4939 = vdwg.mxu0
      %4940 = vmatpush.bf16.xpose.msra.mxu0 %v4849
      %4941 = vmatpush.bf16.xpose.msra.mxu0 %v4846
      %4942 = vmatpush.bf16.xpose.msra.mxu0 %v4843
      %4943 = vmatpush.bf16.xpose.msra.mxu0 %v4840
      %4944 = vmatpush.bf16.xpose.msra.mxu0 %v4837
      %4945 = vmatpush.bf16.xpose.msra.mxu0 %v4834
      %4946 = vmatpush.bf16.xpose.msra.mxu0 %v4831
      %4947 = vmatpush.bf16.xpose.msra.mxu0 %v4828
      %4948 = vmatmul.bf16.gmra.mxu0 %v4756
      %v4949 = vpop.f32.mrf.mxu0
      %v4950 = vadd.f32 0.0, %v4949
      %v4951 = vpop.f32.mrf.mxu0
      %v4952 = vadd.f32 0.0, %v4951
      %4953 = vmatmul.bf16.gmra.mxu0 %v4759
      %v4954 = vpop.f32.mrf.mxu0
      %v4955 = vadd.f32 0.0, %v4954
      %v4956 = vpop.f32.mrf.mxu0
      %v4957 = vadd.f32 0.0, %v4956
      %4958 = vmatmul.bf16.gmra.mxu0 %v4762
      %v4959 = vpop.f32.mrf.mxu0
      %v4960 = vadd.f32 0.0, %v4959
      %v4961 = vpop.f32.mrf.mxu0
      %v4962 = vadd.f32 0.0, %v4961
      %4963 = vmatmul.bf16.gmra.mxu0 %v4765
      %v4964 = vpop.f32.mrf.mxu0
      %v4965 = vadd.f32 0.0, %v4964
      %v4966 = vpop.f32.mrf.mxu0
      %v4967 = vadd.f32 0.0, %v4966
      %4968 = vmatmul.bf16.gmra.mxu0 %v4768
      %v4969 = vpop.f32.mrf.mxu0
      %v4970 = vadd.f32 0.0, %v4969
      %v4971 = vpop.f32.mrf.mxu0
      %v4972 = vadd.f32 0.0, %v4971
      %4973 = vmatmul.bf16.gmra.mxu0 %v4771
      %v4974 = vpop.f32.mrf.mxu0
      %v4975 = vadd.f32 0.0, %v4974
      %v4976 = vpop.f32.mrf.mxu0
      %v4977 = vadd.f32 0.0, %v4976
      %4978 = vmatmul.bf16.gmra.mxu0 %v4774
      %v4979 = vpop.f32.mrf.mxu0
      %v4980 = vadd.f32 0.0, %v4979
      %v4981 = vpop.f32.mrf.mxu0
      %v4982 = vadd.f32 0.0, %v4981
      %4983 = vmatmul.bf16.gmra.mxu0 %v4777
      %v4984 = vpop.f32.mrf.mxu0
      %v4985 = vadd.f32 0.0, %v4984
      %v4986 = vpop.f32.mrf.mxu0
      %v4987 = vadd.f32 0.0, %v4986
      %4988 = vmatmul.bf16.gmra.mxu0 %v4780
      %v4989 = vpop.f32.mrf.mxu0
      %v4990 = vadd.f32 0.0, %v4989
      %v4991 = vpop.f32.mrf.mxu0
      %v4992 = vadd.f32 0.0, %v4991
      %4993 = vmatmul.bf16.gmra.mxu0 %v4783
      %v4994 = vpop.f32.mrf.mxu0
      %v4995 = vadd.f32 0.0, %v4994
      %v4996 = vpop.f32.mrf.mxu0
      %v4997 = vadd.f32 0.0, %v4996
      %4998 = vmatmul.bf16.gmra.mxu0 %v4786
      %v4999 = vpop.f32.mrf.mxu0
      %v5000 = vadd.f32 0.0, %v4999
      %v5001 = vpop.f32.mrf.mxu0
      %v5002 = vadd.f32 0.0, %v5001
      %5003 = vmatmul.bf16.gmra.mxu0 %v4789
      %v5004 = vpop.f32.mrf.mxu0
      %v5005 = vadd.f32 0.0, %v5004
      %v5006 = vpop.f32.mrf.mxu0
      %v5007 = vadd.f32 0.0, %v5006
      %5008 = vmatmul.bf16.gmra.mxu0 %v4792
      %v5009 = vpop.f32.mrf.mxu0
      %v5010 = vadd.f32 0.0, %v5009
      %v5011 = vpop.f32.mrf.mxu0
      %v5012 = vadd.f32 0.0, %v5011
      %5013 = vmatmul.bf16.gmra.mxu0 %v4795
      %v5014 = vpop.f32.mrf.mxu0
      %v5015 = vadd.f32 0.0, %v5014
      %v5016 = vpop.f32.mrf.mxu0
      %v5017 = vadd.f32 0.0, %v5016
      %5018 = vmatmul.bf16.gmra.mxu0 %v4798
      %v5019 = vpop.f32.mrf.mxu0
      %v5020 = vadd.f32 0.0, %v5019
      %v5021 = vpop.f32.mrf.mxu0
      %v5022 = vadd.f32 0.0, %v5021
      %5023 = vmatmul.bf16.gmra.mxu0 %v4801
      %v5024 = vpop.f32.mrf.mxu0
      %v5025 = vadd.f32 0.0, %v5024
      %v5026 = vpop.f32.mrf.mxu0
      %v5027 = vadd.f32 0.0, %v5026
      %5028 = vdwg.mxu0
      %v5029 = vmax.f32 %v4861, %v4950
      %5030 = vmax.xlane.f32.xlu0 %v5029
      %v5031 = vpop.xlane.xlu0 %5030
      %v5032 = vmax.f32 %v4863, %v4952
      %5033 = vmax.xlane.f32.xlu0 %v5032
      %v5034 = vpop.xlane.xlu0 %5033
      %v5035 = vmax.f32 %v4866, %v4955
      %5036 = vmax.xlane.f32.xlu0 %v5035
      %v5037 = vpop.xlane.xlu0 %5036
      %v5038 = vmax.f32 %v4868, %v4957
      %5039 = vmax.xlane.f32.xlu0 %v5038
      %v5040 = vpop.xlane.xlu0 %5039
      %v5041 = vmax.f32 %v4871, %v4960
      %5042 = vmax.xlane.f32.xlu0 %v5041
      %v5043 = vpop.xlane.xlu0 %5042
      %v5044 = vmax.f32 %v4873, %v4962
      %5045 = vmax.xlane.f32.xlu0 %v5044
      %v5046 = vpop.xlane.xlu0 %5045
      %v5047 = vmax.f32 %v4876, %v4965
      %5048 = vmax.xlane.f32.xlu0 %v5047
      %v5049 = vpop.xlane.xlu0 %5048
      %v5050 = vmax.f32 %v4878, %v4967
      %5051 = vmax.xlane.f32.xlu0 %v5050
      %v5052 = vpop.xlane.xlu0 %5051
      %v5053 = vmax.f32 %v4881, %v4970
      %5054 = vmax.xlane.f32.xlu0 %v5053
      %v5055 = vpop.xlane.xlu0 %5054
      %v5056 = vmax.f32 %v4883, %v4972
      %5057 = vmax.xlane.f32.xlu0 %v5056
      %v5058 = vpop.xlane.xlu0 %5057
      %v5059 = vmax.f32 %v4886, %v4975
      %5060 = vmax.xlane.f32.xlu0 %v5059
      %v5061 = vpop.xlane.xlu0 %5060
      %v5062 = vmax.f32 %v4888, %v4977
      %5063 = vmax.xlane.f32.xlu0 %v5062
      %v5064 = vpop.xlane.xlu0 %5063
      %v5065 = vmax.f32 %v4891, %v4980
      %5066 = vmax.xlane.f32.xlu0 %v5065
      %v5067 = vpop.xlane.xlu0 %5066
      %v5068 = vmax.f32 %v4893, %v4982
      %5069 = vmax.xlane.f32.xlu0 %v5068
      %v5070 = vpop.xlane.xlu0 %5069
      %v5071 = vmax.f32 %v4896, %v4985
      %5072 = vmax.xlane.f32.xlu0 %v5071
      %v5073 = vpop.xlane.xlu0 %5072
      %v5074 = vmax.f32 %v4898, %v4987
      %5075 = vmax.xlane.f32.xlu0 %v5074
      %v5076 = vpop.xlane.xlu0 %5075
      %v5077 = vmax.f32 %v4901, %v4990
      %5078 = vmax.xlane.f32.xlu0 %v5077
      %v5079 = vpop.xlane.xlu0 %5078
      %v5080 = vmax.f32 %v4903, %v4992
      %5081 = vmax.xlane.f32.xlu0 %v5080
      %v5082 = vpop.xlane.xlu0 %5081
      %v5083 = vmax.f32 %v4906, %v4995
      %5084 = vmax.xlane.f32.xlu0 %v5083
      %v5085 = vpop.xlane.xlu0 %5084
      %v5086 = vmax.f32 %v4908, %v4997
      %5087 = vmax.xlane.f32.xlu0 %v5086
      %v5088 = vpop.xlane.xlu0 %5087
      %v5089 = vmax.f32 %v4911, %v5000
      %5090 = vmax.xlane.f32.xlu0 %v5089
      %v5091 = vpop.xlane.xlu0 %5090
      %v5092 = vmax.f32 %v4913, %v5002
      %5093 = vmax.xlane.f32.xlu0 %v5092
      %v5094 = vpop.xlane.xlu0 %5093
      %v5095 = vmax.f32 %v4916, %v5005
      %5096 = vmax.xlane.f32.xlu0 %v5095
      %v5097 = vpop.xlane.xlu0 %5096
      %v5098 = vmax.f32 %v4918, %v5007
      %5099 = vmax.xlane.f32.xlu0 %v5098
      %v5100 = vpop.xlane.xlu0 %5099
      %v5101 = vmax.f32 %v4921, %v5010
      %5102 = vmax.xlane.f32.xlu0 %v5101
      %v5103 = vpop.xlane.xlu0 %5102
      %v5104 = vmax.f32 %v4923, %v5012
      %5105 = vmax.xlane.f32.xlu0 %v5104
      %v5106 = vpop.xlane.xlu0 %5105
      %v5107 = vmax.f32 %v4926, %v5015
      %5108 = vmax.xlane.f32.xlu0 %v5107
      %v5109 = vpop.xlane.xlu0 %5108
      %v5110 = vmax.f32 %v4928, %v5017
      %5111 = vmax.xlane.f32.xlu0 %v5110
      %v5112 = vpop.xlane.xlu0 %5111
      %v5113 = vmax.f32 %v4931, %v5020
      %5114 = vmax.xlane.f32.xlu0 %v5113
      %v5115 = vpop.xlane.xlu0 %5114
      %v5116 = vmax.f32 %v4933, %v5022
      %5117 = vmax.xlane.f32.xlu0 %v5116
      %v5118 = vpop.xlane.xlu0 %5117
      %v5119 = vmax.f32 %v4936, %v5025
      %5120 = vmax.xlane.f32.xlu0 %v5119
      %v5121 = vpop.xlane.xlu0 %5120
      %v5122 = vmax.f32 %v4938, %v5027
      %5123 = vmax.xlane.f32.xlu0 %v5122
      %v5124 = vpop.xlane.xlu0 %5123
      %v5125 = vsub.f32 %v4861, %v5031
      %v5126 = vsub.f32 %v4950, %v5031
      %v5127 = vsub.f32 %v4863, %v5034
      %v5128 = vsub.f32 %v4952, %v5034
      %v5129 = vsub.f32 %v4866, %v5037
      %v5130 = vsub.f32 %v4955, %v5037
      %v5131 = vsub.f32 %v4868, %v5040
      %v5132 = vsub.f32 %v4957, %v5040
      %v5133 = vsub.f32 %v4871, %v5043
      %v5134 = vsub.f32 %v4960, %v5043
      %v5135 = vsub.f32 %v4873, %v5046
      %v5136 = vsub.f32 %v4962, %v5046
      %v5137 = vsub.f32 %v4876, %v5049
      %v5138 = vsub.f32 %v4965, %v5049
      %v5139 = vsub.f32 %v4878, %v5052
      %v5140 = vsub.f32 %v4967, %v5052
      %v5141 = vsub.f32 %v4881, %v5055
      %v5142 = vsub.f32 %v4970, %v5055
      %v5143 = vsub.f32 %v4883, %v5058
      %v5144 = vsub.f32 %v4972, %v5058
      %v5145 = vsub.f32 %v4886, %v5061
      %v5146 = vsub.f32 %v4975, %v5061
      %v5147 = vsub.f32 %v4888, %v5064
      %v5148 = vsub.f32 %v4977, %v5064
      %v5149 = vsub.f32 %v4891, %v5067
      %v5150 = vsub.f32 %v4980, %v5067
      %v5151 = vsub.f32 %v4893, %v5070
      %v5152 = vsub.f32 %v4982, %v5070
      %v5153 = vsub.f32 %v4896, %v5073
      %v5154 = vsub.f32 %v4985, %v5073
      %v5155 = vsub.f32 %v4898, %v5076
      %v5156 = vsub.f32 %v4987, %v5076
      %v5157 = vsub.f32 %v4901, %v5079
      %v5158 = vsub.f32 %v4990, %v5079
      %v5159 = vsub.f32 %v4903, %v5082
      %v5160 = vsub.f32 %v4992, %v5082
      %v5161 = vsub.f32 %v4906, %v5085
      %v5162 = vsub.f32 %v4995, %v5085
      %v5163 = vsub.f32 %v4908, %v5088
      %v5164 = vsub.f32 %v4997, %v5088
      %v5165 = vsub.f32 %v4911, %v5091
      %v5166 = vsub.f32 %v5000, %v5091
      %v5167 = vsub.f32 %v4913, %v5094
      %v5168 = vsub.f32 %v5002, %v5094
      %v5169 = vsub.f32 %v4916, %v5097
      %v5170 = vsub.f32 %v5005, %v5097
      %v5171 = vsub.f32 %v4918, %v5100
      %v5172 = vsub.f32 %v5007, %v5100
      %v5173 = vsub.f32 %v4921, %v5103
      %v5174 = vsub.f32 %v5010, %v5103
      %v5175 = vsub.f32 %v4923, %v5106
      %v5176 = vsub.f32 %v5012, %v5106
      %v5177 = vsub.f32 %v4926, %v5109
      %v5178 = vsub.f32 %v5015, %v5109
      %v5179 = vsub.f32 %v4928, %v5112
      %v5180 = vsub.f32 %v5017, %v5112
      %v5181 = vsub.f32 %v4931, %v5115
      %v5182 = vsub.f32 %v5020, %v5115
      %v5183 = vsub.f32 %v4933, %v5118
      %v5184 = vsub.f32 %v5022, %v5118
      %v5185 = vsub.f32 %v4936, %v5121
      %v5186 = vsub.f32 %v5025, %v5121
      %v5187 = vsub.f32 %v4938, %v5124
      %v5188 = vsub.f32 %v5027, %v5124
      %v5189 = vmul.f32 %v5125, 1.442695
      %v5190 = vpow.pop %v5189
      %v5191 = vmul.f32 %v5126, 1.442695
      %v5192 = vpow.pop %v5191
      %v5193 = vmul.f32 %v5127, 1.442695
      %v5194 = vpow.pop %v5193
      %v5195 = vmul.f32 %v5128, 1.442695
      %v5196 = vpow.pop %v5195
      %v5197 = vmul.f32 %v5129, 1.442695
      %v5198 = vpow.pop %v5197
      %v5199 = vmul.f32 %v5130, 1.442695
      %v5200 = vpow.pop %v5199
      %v5201 = vmul.f32 %v5131, 1.442695
      %v5202 = vpow.pop %v5201
      %v5203 = vmul.f32 %v5132, 1.442695
      %v5204 = vpow.pop %v5203
      %v5205 = vmul.f32 %v5133, 1.442695
      %v5206 = vpow.pop %v5205
      %v5207 = vmul.f32 %v5134, 1.442695
      %v5208 = vpow.pop %v5207
      %v5209 = vmul.f32 %v5135, 1.442695
      %v5210 = vpow.pop %v5209
      %v5211 = vmul.f32 %v5136, 1.442695
      %v5212 = vpow.pop %v5211
      %v5213 = vmul.f32 %v5137, 1.442695
      %v5214 = vpow.pop %v5213
      %v5215 = vmul.f32 %v5138, 1.442695
      %v5216 = vpow.pop %v5215
      %v5217 = vmul.f32 %v5139, 1.442695
      %v5218 = vpow.pop %v5217
      %v5219 = vmul.f32 %v5140, 1.442695
      %v5220 = vpow.pop %v5219
      %v5221 = vmul.f32 %v5141, 1.442695
      %v5222 = vpow.pop %v5221
      %v5223 = vmul.f32 %v5142, 1.442695
      %v5224 = vpow.pop %v5223
      %v5225 = vmul.f32 %v5143, 1.442695
      %v5226 = vpow.pop %v5225
      %v5227 = vmul.f32 %v5144, 1.442695
      %v5228 = vpow.pop %v5227
      %v5229 = vmul.f32 %v5145, 1.442695
      %v5230 = vpow.pop %v5229
      %v5231 = vmul.f32 %v5146, 1.442695
      %v5232 = vpow.pop %v5231
      %v5233 = vmul.f32 %v5147, 1.442695
      %v5234 = vpow.pop %v5233
      %v5235 = vmul.f32 %v5148, 1.442695
      %v5236 = vpow.pop %v5235
      %v5237 = vmul.f32 %v5149, 1.442695
      %v5238 = vpow.pop %v5237
      %v5239 = vmul.f32 %v5150, 1.442695
      %v5240 = vpow.pop %v5239
      %v5241 = vmul.f32 %v5151, 1.442695
      %v5242 = vpow.pop %v5241
      %v5243 = vmul.f32 %v5152, 1.442695
      %v5244 = vpow.pop %v5243
      %v5245 = vmul.f32 %v5153, 1.442695
      %v5246 = vpow.pop %v5245
      %v5247 = vmul.f32 %v5154, 1.442695
      %v5248 = vpow.pop %v5247
      %v5249 = vmul.f32 %v5155, 1.442695
      %v5250 = vpow.pop %v5249
      %v5251 = vmul.f32 %v5156, 1.442695
      %v5252 = vpow.pop %v5251
      %v5253 = vmul.f32 %v5157, 1.442695
      %v5254 = vpow.pop %v5253
      %v5255 = vmul.f32 %v5158, 1.442695
      %v5256 = vpow.pop %v5255
      %v5257 = vmul.f32 %v5159, 1.442695
      %v5258 = vpow.pop %v5257
      %v5259 = vmul.f32 %v5160, 1.442695
      %v5260 = vpow.pop %v5259
      %v5261 = vmul.f32 %v5161, 1.442695
      %v5262 = vpow.pop %v5261
      %v5263 = vmul.f32 %v5162, 1.442695
      %v5264 = vpow.pop %v5263
      %v5265 = vmul.f32 %v5163, 1.442695
      %v5266 = vpow.pop %v5265
      %v5267 = vmul.f32 %v5164, 1.442695
      %v5268 = vpow.pop %v5267
      %v5269 = vmul.f32 %v5165, 1.442695
      %v5270 = vpow.pop %v5269
      %v5271 = vmul.f32 %v5166, 1.442695
      %v5272 = vpow.pop %v5271
      %v5273 = vmul.f32 %v5167, 1.442695
      %v5274 = vpow.pop %v5273
      %v5275 = vmul.f32 %v5168, 1.442695
      %v5276 = vpow.pop %v5275
      %v5277 = vmul.f32 %v5169, 1.442695
      %v5278 = vpow.pop %v5277
      %v5279 = vmul.f32 %v5170, 1.442695
      %v5280 = vpow.pop %v5279
      %v5281 = vmul.f32 %v5171, 1.442695
      %v5282 = vpow.pop %v5281
      %v5283 = vmul.f32 %v5172, 1.442695
      %v5284 = vpow.pop %v5283
      %v5285 = vmul.f32 %v5173, 1.442695
      %v5286 = vpow.pop %v5285
      %v5287 = vmul.f32 %v5174, 1.442695
      %v5288 = vpow.pop %v5287
      %v5289 = vmul.f32 %v5175, 1.442695
      %v5290 = vpow.pop %v5289
      %v5291 = vmul.f32 %v5176, 1.442695
      %v5292 = vpow.pop %v5291
      %v5293 = vmul.f32 %v5177, 1.442695
      %v5294 = vpow.pop %v5293
      %v5295 = vmul.f32 %v5178, 1.442695
      %v5296 = vpow.pop %v5295
      %v5297 = vmul.f32 %v5179, 1.442695
      %v5298 = vpow.pop %v5297
      %v5299 = vmul.f32 %v5180, 1.442695
      %v5300 = vpow.pop %v5299
      %v5301 = vmul.f32 %v5181, 1.442695
      %v5302 = vpow.pop %v5301
      %v5303 = vmul.f32 %v5182, 1.442695
      %v5304 = vpow.pop %v5303
      %v5305 = vmul.f32 %v5183, 1.442695
      %v5306 = vpow.pop %v5305
      %v5307 = vmul.f32 %v5184, 1.442695
      %v5308 = vpow.pop %v5307
      %v5309 = vmul.f32 %v5185, 1.442695
      %v5310 = vpow.pop %v5309
      %v5311 = vmul.f32 %v5186, 1.442695
      %v5312 = vpow.pop %v5311
      %v5313 = vmul.f32 %v5187, 1.442695
      %v5314 = vpow.pop %v5313
      %v5315 = vmul.f32 %v5188, 1.442695
      %v5316 = vpow.pop %v5315
      %v5317 = vadd.f32 %v5190, %v5192
      %5318 = vadd.xlane.f32.xlu0 %v5317
      %v5319 = vpop.xlane.xlu0 %5318
      %v5320 = vadd.f32 %v5194, %v5196
      %5321 = vadd.xlane.f32.xlu0 %v5320
      %v5322 = vpop.xlane.xlu0 %5321
      %v5323 = vadd.f32 %v5198, %v5200
      %5324 = vadd.xlane.f32.xlu0 %v5323
      %v5325 = vpop.xlane.xlu0 %5324
      %v5326 = vadd.f32 %v5202, %v5204
      %5327 = vadd.xlane.f32.xlu0 %v5326
      %v5328 = vpop.xlane.xlu0 %5327
      %v5329 = vadd.f32 %v5206, %v5208
      %5330 = vadd.xlane.f32.xlu0 %v5329
      %v5331 = vpop.xlane.xlu0 %5330
      %v5332 = vadd.f32 %v5210, %v5212
      %5333 = vadd.xlane.f32.xlu0 %v5332
      %v5334 = vpop.xlane.xlu0 %5333
      %v5335 = vadd.f32 %v5214, %v5216
      %5336 = vadd.xlane.f32.xlu0 %v5335
      %v5337 = vpop.xlane.xlu0 %5336
      %v5338 = vadd.f32 %v5218, %v5220
      %5339 = vadd.xlane.f32.xlu0 %v5338
      %v5340 = vpop.xlane.xlu0 %5339
      %v5341 = vadd.f32 %v5222, %v5224
      %5342 = vadd.xlane.f32.xlu0 %v5341
      %v5343 = vpop.xlane.xlu0 %5342
      %v5344 = vadd.f32 %v5226, %v5228
      %5345 = vadd.xlane.f32.xlu0 %v5344
      %v5346 = vpop.xlane.xlu0 %5345
      %v5347 = vadd.f32 %v5230, %v5232
      %5348 = vadd.xlane.f32.xlu0 %v5347
      %v5349 = vpop.xlane.xlu0 %5348
      %v5350 = vadd.f32 %v5234, %v5236
      %5351 = vadd.xlane.f32.xlu0 %v5350
      %v5352 = vpop.xlane.xlu0 %5351
      %v5353 = vadd.f32 %v5238, %v5240
      %5354 = vadd.xlane.f32.xlu0 %v5353
      %v5355 = vpop.xlane.xlu0 %5354
      %v5356 = vadd.f32 %v5242, %v5244
      %5357 = vadd.xlane.f32.xlu0 %v5356
      %v5358 = vpop.xlane.xlu0 %5357
      %v5359 = vadd.f32 %v5246, %v5248
      %5360 = vadd.xlane.f32.xlu0 %v5359
      %v5361 = vpop.xlane.xlu0 %5360
      %v5362 = vadd.f32 %v5250, %v5252
      %5363 = vadd.xlane.f32.xlu0 %v5362
      %v5364 = vpop.xlane.xlu0 %5363
      %v5365 = vadd.f32 %v5254, %v5256
      %5366 = vadd.xlane.f32.xlu0 %v5365
      %v5367 = vpop.xlane.xlu0 %5366
      %v5368 = vadd.f32 %v5258, %v5260
      %5369 = vadd.xlane.f32.xlu0 %v5368
      %v5370 = vpop.xlane.xlu0 %5369
      %v5371 = vadd.f32 %v5262, %v5264
      %5372 = vadd.xlane.f32.xlu0 %v5371
      %v5373 = vpop.xlane.xlu0 %5372
      %v5374 = vadd.f32 %v5266, %v5268
      %5375 = vadd.xlane.f32.xlu0 %v5374
      %v5376 = vpop.xlane.xlu0 %5375
      %v5377 = vadd.f32 %v5270, %v5272
      %5378 = vadd.xlane.f32.xlu0 %v5377
      %v5379 = vpop.xlane.xlu0 %5378
      %v5380 = vadd.f32 %v5274, %v5276
      %5381 = vadd.xlane.f32.xlu0 %v5380
      %v5382 = vpop.xlane.xlu0 %5381
      %v5383 = vadd.f32 %v5278, %v5280
      %5384 = vadd.xlane.f32.xlu0 %v5383
      %v5385 = vpop.xlane.xlu0 %5384
      %v5386 = vadd.f32 %v5282, %v5284
      %5387 = vadd.xlane.f32.xlu0 %v5386
      %v5388 = vpop.xlane.xlu0 %5387
      %v5389 = vadd.f32 %v5286, %v5288
      %5390 = vadd.xlane.f32.xlu0 %v5389
      %v5391 = vpop.xlane.xlu0 %5390
      %v5392 = vadd.f32 %v5290, %v5292
      %5393 = vadd.xlane.f32.xlu0 %v5392
      %v5394 = vpop.xlane.xlu0 %5393
      %v5395 = vadd.f32 %v5294, %v5296
      %5396 = vadd.xlane.f32.xlu0 %v5395
      %v5397 = vpop.xlane.xlu0 %5396
      %v5398 = vadd.f32 %v5298, %v5300
      %5399 = vadd.xlane.f32.xlu0 %v5398
      %v5400 = vpop.xlane.xlu0 %5399
      %v5401 = vadd.f32 %v5302, %v5304
      %5402 = vadd.xlane.f32.xlu0 %v5401
      %v5403 = vpop.xlane.xlu0 %5402
      %v5404 = vadd.f32 %v5306, %v5308
      %5405 = vadd.xlane.f32.xlu0 %v5404
      %v5406 = vpop.xlane.xlu0 %5405
      %v5407 = vadd.f32 %v5310, %v5312
      %5408 = vadd.xlane.f32.xlu0 %v5407
      %v5409 = vpop.xlane.xlu0 %5408
      %v5410 = vadd.f32 %v5314, %v5316
      %5411 = vadd.xlane.f32.xlu0 %v5410
      %v5412 = vpop.xlane.xlu0 %5411
      %v5413 = vpack.c.bf16 %v5194, %v5190
      %v5414 = vpack.c.bf16 %v5196, %v5192
      %v5415 = vpack.c.bf16 %v5202, %v5198
      %v5416 = vpack.c.bf16 %v5204, %v5200
      %v5417 = vpack.c.bf16 %v5210, %v5206
      %v5418 = vpack.c.bf16 %v5212, %v5208
      %v5419 = vpack.c.bf16 %v5218, %v5214
      %v5420 = vpack.c.bf16 %v5220, %v5216
      %v5421 = vpack.c.bf16 %v5226, %v5222
      %v5422 = vpack.c.bf16 %v5228, %v5224
      %v5423 = vpack.c.bf16 %v5234, %v5230
      %v5424 = vpack.c.bf16 %v5236, %v5232
      %v5425 = vpack.c.bf16 %v5242, %v5238
      %v5426 = vpack.c.bf16 %v5244, %v5240
      %v5427 = vpack.c.bf16 %v5250, %v5246
      %v5428 = vpack.c.bf16 %v5252, %v5248
      %v5429 = vpack.c.bf16 %v5258, %v5254
      %v5430 = vpack.c.bf16 %v5260, %v5256
      %v5431 = vpack.c.bf16 %v5266, %v5262
      %v5432 = vpack.c.bf16 %v5268, %v5264
      %v5433 = vpack.c.bf16 %v5274, %v5270
      %v5434 = vpack.c.bf16 %v5276, %v5272
      %v5435 = vpack.c.bf16 %v5282, %v5278
      %v5436 = vpack.c.bf16 %v5284, %v5280
      %v5437 = vpack.c.bf16 %v5290, %v5286
      %v5438 = vpack.c.bf16 %v5292, %v5288
      %v5439 = vpack.c.bf16 %v5298, %v5294
      %v5440 = vpack.c.bf16 %v5300, %v5296
      %v5441 = vpack.c.bf16 %v5306, %v5302
      %v5442 = vpack.c.bf16 %v5308, %v5304
      %v5443 = vpack.c.bf16 %v5314, %v5310
      %v5444 = vpack.c.bf16 %v5316, %v5312
      %5445 = vrot.lane.b32.xlu0 %v1774, 32
      %v5446 = vpop.permute.xlu0 %5445
      %5447 = vrot.lane.b32.xlu0 %v1775, 32
      %v5448 = vpop.permute.xlu0 %5447
      %5449 = vrot.lane.b32.xlu0 %v1776, 32
      %v5450 = vpop.permute.xlu0 %5449
      %5451 = vrot.lane.b32.xlu0 %v1777, 32
      %v5452 = vpop.permute.xlu0 %5451
      %5453 = vrot.lane.b32.xlu0 %v1778, 32
      %v5454 = vpop.permute.xlu0 %5453
      %5455 = vrot.lane.b32.xlu0 %v1779, 32
      %v5456 = vpop.permute.xlu0 %5455
      %5457 = vrot.lane.b32.xlu0 %v1780, 32
      %v5458 = vpop.permute.xlu0 %5457
      %5459 = vrot.lane.b32.xlu0 %v1781, 32
      %v5460 = vpop.permute.xlu0 %5459
      %5461 = vrot.lane.b32.xlu0 %v1782, 32
      %v5462 = vpop.permute.xlu0 %5461
      %5463 = vrot.lane.b32.xlu0 %v1783, 32
      %v5464 = vpop.permute.xlu0 %5463
      %5465 = vrot.lane.b32.xlu0 %v1784, 32
      %v5466 = vpop.permute.xlu0 %5465
      %5467 = vrot.lane.b32.xlu0 %v1785, 32
      %v5468 = vpop.permute.xlu0 %5467
      %5469 = vrot.lane.b32.xlu0 %v1786, 32
      %v5470 = vpop.permute.xlu0 %5469
      %5471 = vrot.lane.b32.xlu0 %v1787, 32
      %v5472 = vpop.permute.xlu0 %5471
      %5473 = vrot.lane.b32.xlu0 %v1788, 32
      %v5474 = vpop.permute.xlu0 %5473
      %5475 = vrot.lane.b32.xlu0 %v1789, 32
      %v5476 = vpop.permute.xlu0 %5475
      %5493 = vmatpush.bf16.msra.mxu0 %v5460
      %5494 = vmatpush.bf16.msra.mxu0 %v5458
      %5495 = vmatpush.bf16.msra.mxu0 %v5456
      %5496 = vmatpush.bf16.msra.mxu0 %v5454
      %5497 = vmatpush.bf16.msra.mxu0 %v5452
      %5498 = vmatpush.bf16.msra.mxu0 %v5450
      %5499 = vmatpush.bf16.msra.mxu0 %v5448
      %5500 = vmatpush.bf16.msra.mxu0 %v5446
      %5501 = vmatmul.bf16.gmra.mxu0 %v5413
      %v5502 = vpop.f32.mrf.mxu0
      %v5503 = vadd.f32 0.0, %v5502
      %v5504 = vpop.f32.mrf.mxu0
      %v5505 = vadd.f32 0.0, %v5504
      %5506 = vmatmul.bf16.gmra.mxu0 %v5415
      %v5507 = vpop.f32.mrf.mxu0
      %v5508 = vadd.f32 0.0, %v5507
      %v5509 = vpop.f32.mrf.mxu0
      %v5510 = vadd.f32 0.0, %v5509
      %5511 = vmatmul.bf16.gmra.mxu0 %v5417
      %v5512 = vpop.f32.mrf.mxu0
      %v5513 = vadd.f32 0.0, %v5512
      %v5514 = vpop.f32.mrf.mxu0
      %v5515 = vadd.f32 0.0, %v5514
      %5516 = vmatmul.bf16.gmra.mxu0 %v5419
      %v5517 = vpop.f32.mrf.mxu0
      %v5518 = vadd.f32 0.0, %v5517
      %v5519 = vpop.f32.mrf.mxu0
      %v5520 = vadd.f32 0.0, %v5519
      %5521 = vmatmul.bf16.gmra.mxu0 %v5421
      %v5522 = vpop.f32.mrf.mxu0
      %v5523 = vadd.f32 0.0, %v5522
      %v5524 = vpop.f32.mrf.mxu0
      %v5525 = vadd.f32 0.0, %v5524
      %5526 = vmatmul.bf16.gmra.mxu0 %v5423
      %v5527 = vpop.f32.mrf.mxu0
      %v5528 = vadd.f32 0.0, %v5527
      %v5529 = vpop.f32.mrf.mxu0
      %v5530 = vadd.f32 0.0, %v5529
      %5531 = vmatmul.bf16.gmra.mxu0 %v5425
      %v5532 = vpop.f32.mrf.mxu0
      %v5533 = vadd.f32 0.0, %v5532
      %v5534 = vpop.f32.mrf.mxu0
      %v5535 = vadd.f32 0.0, %v5534
      %5536 = vmatmul.bf16.gmra.mxu0 %v5427
      %v5537 = vpop.f32.mrf.mxu0
      %v5538 = vadd.f32 0.0, %v5537
      %v5539 = vpop.f32.mrf.mxu0
      %v5540 = vadd.f32 0.0, %v5539
      %5541 = vmatmul.bf16.gmra.mxu0 %v5429
      %v5542 = vpop.f32.mrf.mxu0
      %v5543 = vadd.f32 0.0, %v5542
      %v5544 = vpop.f32.mrf.mxu0
      %v5545 = vadd.f32 0.0, %v5544
      %5546 = vmatmul.bf16.gmra.mxu0 %v5431
      %v5547 = vpop.f32.mrf.mxu0
      %v5548 = vadd.f32 0.0, %v5547
      %v5549 = vpop.f32.mrf.mxu0
      %v5550 = vadd.f32 0.0, %v5549
      %5551 = vmatmul.bf16.gmra.mxu0 %v5433
      %v5552 = vpop.f32.mrf.mxu0
      %v5553 = vadd.f32 0.0, %v5552
      %v5554 = vpop.f32.mrf.mxu0
      %v5555 = vadd.f32 0.0, %v5554
      %5556 = vmatmul.bf16.gmra.mxu0 %v5435
      %v5557 = vpop.f32.mrf.mxu0
      %v5558 = vadd.f32 0.0, %v5557
      %v5559 = vpop.f32.mrf.mxu0
      %v5560 = vadd.f32 0.0, %v5559
      %5561 = vmatmul.bf16.gmra.mxu0 %v5437
      %v5562 = vpop.f32.mrf.mxu0
      %v5563 = vadd.f32 0.0, %v5562
      %v5564 = vpop.f32.mrf.mxu0
      %v5565 = vadd.f32 0.0, %v5564
      %5566 = vmatmul.bf16.gmra.mxu0 %v5439
      %v5567 = vpop.f32.mrf.mxu0
      %v5568 = vadd.f32 0.0, %v5567
      %v5569 = vpop.f32.mrf.mxu0
      %v5570 = vadd.f32 0.0, %v5569
      %5571 = vmatmul.bf16.gmra.mxu0 %v5441
      %v5572 = vpop.f32.mrf.mxu0
      %v5573 = vadd.f32 0.0, %v5572
      %v5574 = vpop.f32.mrf.mxu0
      %v5575 = vadd.f32 0.0, %v5574
      %5576 = vmatmul.bf16.gmra.mxu0 %v5443
      %v5577 = vpop.f32.mrf.mxu0
      %v5578 = vadd.f32 0.0, %v5577
      %v5579 = vpop.f32.mrf.mxu0
      %v5580 = vadd.f32 0.0, %v5579
      %5581 = vdwg.mxu0
      %5582 = vmatpush.bf16.msra.mxu0 %v5476
      %5583 = vmatpush.bf16.msra.mxu0 %v5474
      %5584 = vmatpush.bf16.msra.mxu0 %v5472
      %5585 = vmatpush.bf16.msra.mxu0 %v5470
      %5586 = vmatpush.bf16.msra.mxu0 %v5468
      %5587 = vmatpush.bf16.msra.mxu0 %v5466
      %5588 = vmatpush.bf16.msra.mxu0 %v5464
      %5589 = vmatpush.bf16.msra.mxu0 %v5462
      %5590 = vmatmul.bf16.gmra.mxu0 %v5414
      %v5591 = vpop.f32.mrf.mxu0
      %v5592 = vadd.f32 %v5503, %v5591
      %v5593 = vpop.f32.mrf.mxu0
      %v5594 = vadd.f32 %v5505, %v5593
      %5595 = vmatmul.bf16.gmra.mxu0 %v5416
      %v5596 = vpop.f32.mrf.mxu0
      %v5597 = vadd.f32 %v5508, %v5596
      %v5598 = vpop.f32.mrf.mxu0
      %v5599 = vadd.f32 %v5510, %v5598
      %5600 = vmatmul.bf16.gmra.mxu0 %v5418
      %v5601 = vpop.f32.mrf.mxu0
      %v5602 = vadd.f32 %v5513, %v5601
      %v5603 = vpop.f32.mrf.mxu0
      %v5604 = vadd.f32 %v5515, %v5603
      %5605 = vmatmul.bf16.gmra.mxu0 %v5420
      %v5606 = vpop.f32.mrf.mxu0
      %v5607 = vadd.f32 %v5518, %v5606
      %v5608 = vpop.f32.mrf.mxu0
      %v5609 = vadd.f32 %v5520, %v5608
      %5610 = vmatmul.bf16.gmra.mxu0 %v5422
      %v5611 = vpop.f32.mrf.mxu0
      %v5612 = vadd.f32 %v5523, %v5611
      %v5613 = vpop.f32.mrf.mxu0
      %v5614 = vadd.f32 %v5525, %v5613
      %5615 = vmatmul.bf16.gmra.mxu0 %v5424
      %v5616 = vpop.f32.mrf.mxu0
      %v5617 = vadd.f32 %v5528, %v5616
      %v5618 = vpop.f32.mrf.mxu0
      %v5619 = vadd.f32 %v5530, %v5618
      %5620 = vmatmul.bf16.gmra.mxu0 %v5426
      %v5621 = vpop.f32.mrf.mxu0
      %v5622 = vadd.f32 %v5533, %v5621
      %v5623 = vpop.f32.mrf.mxu0
      %v5624 = vadd.f32 %v5535, %v5623
      %5625 = vmatmul.bf16.gmra.mxu0 %v5428
      %v5626 = vpop.f32.mrf.mxu0
      %v5627 = vadd.f32 %v5538, %v5626
      %v5628 = vpop.f32.mrf.mxu0
      %v5629 = vadd.f32 %v5540, %v5628
      %5630 = vmatmul.bf16.gmra.mxu0 %v5430
      %v5631 = vpop.f32.mrf.mxu0
      %v5632 = vadd.f32 %v5543, %v5631
      %v5633 = vpop.f32.mrf.mxu0
      %v5634 = vadd.f32 %v5545, %v5633
      %5635 = vmatmul.bf16.gmra.mxu0 %v5432
      %v5636 = vpop.f32.mrf.mxu0
      %v5637 = vadd.f32 %v5548, %v5636
      %v5638 = vpop.f32.mrf.mxu0
      %v5639 = vadd.f32 %v5550, %v5638
      %5640 = vmatmul.bf16.gmra.mxu0 %v5434
      %v5641 = vpop.f32.mrf.mxu0
      %v5642 = vadd.f32 %v5553, %v5641
      %v5643 = vpop.f32.mrf.mxu0
      %v5644 = vadd.f32 %v5555, %v5643
      %5645 = vmatmul.bf16.gmra.mxu0 %v5436
      %v5646 = vpop.f32.mrf.mxu0
      %v5647 = vadd.f32 %v5558, %v5646
      %v5648 = vpop.f32.mrf.mxu0
      %v5649 = vadd.f32 %v5560, %v5648
      %5650 = vmatmul.bf16.gmra.mxu0 %v5438
      %v5651 = vpop.f32.mrf.mxu0
      %v5652 = vadd.f32 %v5563, %v5651
      %v5653 = vpop.f32.mrf.mxu0
      %v5654 = vadd.f32 %v5565, %v5653
      %5655 = vmatmul.bf16.gmra.mxu0 %v5440
      %v5656 = vpop.f32.mrf.mxu0
      %v5657 = vadd.f32 %v5568, %v5656
      %v5658 = vpop.f32.mrf.mxu0
      %v5659 = vadd.f32 %v5570, %v5658
      %5660 = vmatmul.bf16.gmra.mxu0 %v5442
      %v5661 = vpop.f32.mrf.mxu0
      %v5662 = vadd.f32 %v5573, %v5661
      %v5663 = vpop.f32.mrf.mxu0
      %v5664 = vadd.f32 %v5575, %v5663
      %5665 = vmatmul.bf16.gmra.mxu0 %v5444
      %v5666 = vpop.f32.mrf.mxu0
      %v5667 = vadd.f32 %v5578, %v5666
      %v5668 = vpop.f32.mrf.mxu0
      %v5669 = vadd.f32 %v5580, %v5668
      %5670 = vdwg.mxu0
      %v5671 = vrcp.pop %v5319
      %v5672 = vrcp.pop %v5322
      %v5673 = vrcp.pop %v5325
      %v5674 = vrcp.pop %v5328
      %v5675 = vrcp.pop %v5331
      %v5676 = vrcp.pop %v5334
      %v5677 = vrcp.pop %v5337
      %v5678 = vrcp.pop %v5340
      %v5679 = vrcp.pop %v5343
      %v5680 = vrcp.pop %v5346
      %v5681 = vrcp.pop %v5349
      %v5682 = vrcp.pop %v5352
      %v5683 = vrcp.pop %v5355
      %v5684 = vrcp.pop %v5358
      %v5685 = vrcp.pop %v5361
      %v5686 = vrcp.pop %v5364
      %v5687 = vrcp.pop %v5367
      %v5688 = vrcp.pop %v5370
      %v5689 = vrcp.pop %v5373
      %v5690 = vrcp.pop %v5376
      %v5691 = vrcp.pop %v5379
      %v5692 = vrcp.pop %v5382
      %v5693 = vrcp.pop %v5385
      %v5694 = vrcp.pop %v5388
      %v5695 = vrcp.pop %v5391
      %v5696 = vrcp.pop %v5394
      %v5697 = vrcp.pop %v5397
      %v5698 = vrcp.pop %v5400
      %v5699 = vrcp.pop %v5403
      %v5700 = vrcp.pop %v5406
      %v5701 = vrcp.pop %v5409
      %v5702 = vrcp.pop %v5412
      %v5703 = vmul.f32 %v5592, %v5671
      %v5704 = vmul.f32 %v5594, %v5672
      %v5705 = vmul.f32 %v5597, %v5673
      %v5706 = vmul.f32 %v5599, %v5674
      %v5707 = vmul.f32 %v5602, %v5675
      %v5708 = vmul.f32 %v5604, %v5676
      %v5709 = vmul.f32 %v5607, %v5677
      %v5710 = vmul.f32 %v5609, %v5678
      %v5711 = vmul.f32 %v5612, %v5679
      %v5712 = vmul.f32 %v5614, %v5680
      %v5713 = vmul.f32 %v5617, %v5681
      %v5714 = vmul.f32 %v5619, %v5682
      %v5715 = vmul.f32 %v5622, %v5683
      %v5716 = vmul.f32 %v5624, %v5684
      %v5717 = vmul.f32 %v5627, %v5685
      %v5718 = vmul.f32 %v5629, %v5686
      %v5719 = vmul.f32 %v5632, %v5687
      %v5720 = vmul.f32 %v5634, %v5688
      %v5721 = vmul.f32 %v5637, %v5689
      %v5722 = vmul.f32 %v5639, %v5690
      %v5723 = vmul.f32 %v5642, %v5691
      %v5724 = vmul.f32 %v5644, %v5692
      %v5725 = vmul.f32 %v5647, %v5693
      %v5726 = vmul.f32 %v5649, %v5694
      %v5727 = vmul.f32 %v5652, %v5695
      %v5728 = vmul.f32 %v5654, %v5696
      %v5729 = vmul.f32 %v5657, %v5697
      %v5730 = vmul.f32 %v5659, %v5698
      %v5731 = vmul.f32 %v5662, %v5699
      %v5732 = vmul.f32 %v5664, %v5700
      %v5733 = vmul.f32 %v5667, %v5701
      %v5734 = vmul.f32 %v5669, %v5702
      %v5735 = vpack.c.bf16 %v5704, %v5703
      %v5736 = vpack.c.bf16 %v5706, %v5705
      %v5737 = vpack.c.bf16 %v5708, %v5707
      %v5738 = vpack.c.bf16 %v5710, %v5709
      %v5739 = vpack.c.bf16 %v5712, %v5711
      %v5740 = vpack.c.bf16 %v5714, %v5713
      %v5741 = vpack.c.bf16 %v5716, %v5715
      %v5742 = vpack.c.bf16 %v5718, %v5717
      %v5743 = vpack.c.bf16 %v5720, %v5719
      %v5744 = vpack.c.bf16 %v5722, %v5721
      %v5745 = vpack.c.bf16 %v5724, %v5723
      %v5746 = vpack.c.bf16 %v5726, %v5725
      %v5747 = vpack.c.bf16 %v5728, %v5727
      %v5748 = vpack.c.bf16 %v5730, %v5729
      %v5749 = vpack.c.bf16 %v5732, %v5731
      %v5750 = vpack.c.bf16 %v5734, %v5733
      %v5751 = vld [vmem:[%s3 + $0x30] sm:$0xf]
      %v5752 = vld [vmem:[%s3 + $0x34] sm:$0xf]
      %v5753 = vld [vmem:[%s3 + $0x38] sm:$0xf]
      %v5754 = vld [vmem:[%s3 + $0x3c] sm:$0xf]
      %v5759 = vunpack.c.l.b16 %v5751
      %v5760 = vunpack.c.l.b16 %v5752
      %v5761 = vunpack.c.l.b16 %v5753
      %v5762 = vunpack.c.l.b16 %v5754
      %v5763 = vpack.c.b16 %v5760, %v5759
      %v5764 = vpack.c.b16 %v5762, %v5761
      %v5768 = vsel %vm1019, %v5735, 0
      %v5771 = vsel %vm1019, %v5736, 0
      %v5774 = vsel %vm1019, %v5737, 0
      %v5777 = vsel %vm1019, %v5738, 0
      %v5780 = vsel %vm1019, %v5739, 0
      %v5783 = vsel %vm1019, %v5740, 0
      %v5786 = vsel %vm1019, %v5741, 0
      %v5789 = vsel %vm1019, %v5742, 0
      %v5792 = vsel %vm1019, %v5743, 0
      %v5795 = vsel %vm1019, %v5744, 0
      %v5798 = vsel %vm1019, %v5745, 0
      %v5801 = vsel %vm1019, %v5746, 0
      %v5804 = vsel %vm1019, %v5747, 0
      %v5807 = vsel %vm1019, %v5748, 0
      %v5810 = vsel %vm1019, %v5749, 0
      %v5813 = vsel %vm1019, %v5750, 0
      %5815 = vmatpush.bf16.msra.mxu0 0
      %5816 = vmatpush.bf16.msra.mxu0 0
      %5817 = vmatpush.bf16.msra.mxu0 0
      %5818 = vmatpush.bf16.msra.mxu0 0
      %5819 = vmatpush.bf16.msra.mxu0 0
      %5820 = vmatpush.bf16.msra.mxu0 0
      %5821 = vmatpush.bf16.msra.mxu0 %v5764
      %5822 = vmatpush.bf16.msra.mxu0 %v5763
      %5823 = vmatmul.bf16.gmra.mxu0 %v5768
      %v5824 = vpop.f32.mrf.mxu0
      %v5825 = vadd.f32 0.0, %v5824
      %v5826 = vpop.f32.mrf.mxu0
      %v5827 = vadd.f32 0.0, %v5826
      %5828 = vmatmul.bf16.gmra.mxu0 %v5771
      %v5829 = vpop.f32.mrf.mxu0
      %v5830 = vadd.f32 0.0, %v5829
      %v5831 = vpop.f32.mrf.mxu0
      %v5832 = vadd.f32 0.0, %v5831
      %5833 = vmatmul.bf16.gmra.mxu0 %v5774
      %v5834 = vpop.f32.mrf.mxu0
      %v5835 = vadd.f32 0.0, %v5834
      %v5836 = vpop.f32.mrf.mxu0
      %v5837 = vadd.f32 0.0, %v5836
      %5838 = vmatmul.bf16.gmra.mxu0 %v5777
      %v5839 = vpop.f32.mrf.mxu0
      %v5840 = vadd.f32 0.0, %v5839
      %v5841 = vpop.f32.mrf.mxu0
      %v5842 = vadd.f32 0.0, %v5841
      %5843 = vmatmul.bf16.gmra.mxu0 %v5780
      %v5844 = vpop.f32.mrf.mxu0
      %v5845 = vadd.f32 0.0, %v5844
      %v5846 = vpop.f32.mrf.mxu0
      %v5847 = vadd.f32 0.0, %v5846
      %5848 = vmatmul.bf16.gmra.mxu0 %v5783
      %v5849 = vpop.f32.mrf.mxu0
      %v5850 = vadd.f32 0.0, %v5849
      %v5851 = vpop.f32.mrf.mxu0
      %v5852 = vadd.f32 0.0, %v5851
      %5853 = vmatmul.bf16.gmra.mxu0 %v5786
      %v5854 = vpop.f32.mrf.mxu0
      %v5855 = vadd.f32 0.0, %v5854
      %v5856 = vpop.f32.mrf.mxu0
      %v5857 = vadd.f32 0.0, %v5856
      %5858 = vmatmul.bf16.gmra.mxu0 %v5789
      %v5859 = vpop.f32.mrf.mxu0
      %v5860 = vadd.f32 0.0, %v5859
      %v5861 = vpop.f32.mrf.mxu0
      %v5862 = vadd.f32 0.0, %v5861
      %5863 = vmatmul.bf16.gmra.mxu0 %v5792
      %v5864 = vpop.f32.mrf.mxu0
      %v5865 = vadd.f32 0.0, %v5864
      %v5866 = vpop.f32.mrf.mxu0
      %v5867 = vadd.f32 0.0, %v5866
      %5868 = vmatmul.bf16.gmra.mxu0 %v5795
      %v5869 = vpop.f32.mrf.mxu0
      %v5870 = vadd.f32 0.0, %v5869
      %v5871 = vpop.f32.mrf.mxu0
      %v5872 = vadd.f32 0.0, %v5871
      %5873 = vmatmul.bf16.gmra.mxu0 %v5798
      %v5874 = vpop.f32.mrf.mxu0
      %v5875 = vadd.f32 0.0, %v5874
      %v5876 = vpop.f32.mrf.mxu0
      %v5877 = vadd.f32 0.0, %v5876
      %5878 = vmatmul.bf16.gmra.mxu0 %v5801
      %v5879 = vpop.f32.mrf.mxu0
      %v5880 = vadd.f32 0.0, %v5879
      %v5881 = vpop.f32.mrf.mxu0
      %v5882 = vadd.f32 0.0, %v5881
      %5883 = vmatmul.bf16.gmra.mxu0 %v5804
      %v5884 = vpop.f32.mrf.mxu0
      %v5885 = vadd.f32 0.0, %v5884
      %v5886 = vpop.f32.mrf.mxu0
      %v5887 = vadd.f32 0.0, %v5886
      %5888 = vmatmul.bf16.gmra.mxu0 %v5807
      %v5889 = vpop.f32.mrf.mxu0
      %v5890 = vadd.f32 0.0, %v5889
      %v5891 = vpop.f32.mrf.mxu0
      %v5892 = vadd.f32 0.0, %v5891
      %5893 = vmatmul.bf16.gmra.mxu0 %v5810
      %v5894 = vpop.f32.mrf.mxu0
      %v5895 = vadd.f32 0.0, %v5894
      %v5896 = vpop.f32.mrf.mxu0
      %v5897 = vadd.f32 0.0, %v5896
      %5898 = vmatmul.bf16.gmra.mxu0 %v5813
      %v5899 = vpop.f32.mrf.mxu0
      %v5900 = vadd.f32 0.0, %v5899
      %v5901 = vpop.f32.mrf.mxu0
      %v5902 = vadd.f32 0.0, %v5901
      %5903 = vdwg.mxu0
      %v5904 = vadd.f32 %v4659, %v5825
      %v5905 = vadd.f32 %v4660, %v5827
      %v5906 = vadd.f32 %v4661, %v5830
      %v5907 = vadd.f32 %v4662, %v5832
      %v5908 = vadd.f32 %v4663, %v5835
      %v5909 = vadd.f32 %v4664, %v5837
      %v5910 = vadd.f32 %v4665, %v5840
      %v5911 = vadd.f32 %v4666, %v5842
      %v5912 = vadd.f32 %v4667, %v5845
      %v5913 = vadd.f32 %v4668, %v5847
      %v5914 = vadd.f32 %v4669, %v5850
      %v5915 = vadd.f32 %v4670, %v5852
      %v5916 = vadd.f32 %v4671, %v5855
      %v5917 = vadd.f32 %v4672, %v5857
      %v5918 = vadd.f32 %v4673, %v5860
      %v5919 = vadd.f32 %v4674, %v5862
      %v5920 = vadd.f32 %v4675, %v5865
      %v5921 = vadd.f32 %v4676, %v5867
      %v5922 = vadd.f32 %v4677, %v5870
      %v5923 = vadd.f32 %v4678, %v5872
      %v5924 = vadd.f32 %v4679, %v5875
      %v5925 = vadd.f32 %v4680, %v5877
      %v5926 = vadd.f32 %v4681, %v5880
      %v5927 = vadd.f32 %v4682, %v5882
      %v5928 = vadd.f32 %v4683, %v5885
      %v5929 = vadd.f32 %v4684, %v5887
      %v5930 = vadd.f32 %v4685, %v5890
      %v5931 = vadd.f32 %v4686, %v5892
      %v5932 = vadd.f32 %v4687, %v5895
      %v5933 = vadd.f32 %v4688, %v5897
      %v5934 = vadd.f32 %v4689, %v5900
      %v5935 = vadd.f32 %v4690, %v5902
      %v5936 = vld [vmem:[%s4] sm:$0x1]
      %v5938 = vperm.slane %v5936, 0
      %v5940 = vadd.f32 %v5904, %v5938
      %v5941 = vadd.f32 %v5905, %v5938
      %v5942 = vadd.f32 %v5906, %v5938
      %v5943 = vadd.f32 %v5907, %v5938
      %v5944 = vadd.f32 %v5908, %v5938
      %v5945 = vadd.f32 %v5909, %v5938
      %v5946 = vadd.f32 %v5910, %v5938
      %v5947 = vadd.f32 %v5911, %v5938
      %v5948 = vadd.f32 %v5912, %v5938
      %v5949 = vadd.f32 %v5913, %v5938
      %v5950 = vadd.f32 %v5914, %v5938
      %v5951 = vadd.f32 %v5915, %v5938
      %v5952 = vadd.f32 %v5916, %v5938
      %v5953 = vadd.f32 %v5917, %v5938
      %v5954 = vadd.f32 %v5918, %v5938
      %v5955 = vadd.f32 %v5919, %v5938
      %v5956 = vadd.f32 %v5920, %v5938
      %v5957 = vadd.f32 %v5921, %v5938
      %v5958 = vadd.f32 %v5922, %v5938
      %v5959 = vadd.f32 %v5923, %v5938
      %v5960 = vadd.f32 %v5924, %v5938
      %v5961 = vadd.f32 %v5925, %v5938
      %v5962 = vadd.f32 %v5926, %v5938
      %v5963 = vadd.f32 %v5927, %v5938
      %v5964 = vadd.f32 %v5928, %v5938
      %v5965 = vadd.f32 %v5929, %v5938
      %v5966 = vadd.f32 %v5930, %v5938
      %v5967 = vadd.f32 %v5931, %v5938
      %v5968 = vadd.f32 %v5932, %v5938
      %v5969 = vadd.f32 %v5933, %v5938
      %v5970 = vadd.f32 %v5934, %v5938
      %v5971 = vadd.f32 %v5935, %v5938
      %5972 = vadd.xlane.f32.xlu0 %v5940
      %v5973 = vpop.xlane.xlu0 %5972
      %5974 = vadd.xlane.f32.xlu0 %v5941
      %v5975 = vpop.xlane.xlu0 %5974
      %5976 = vadd.xlane.f32.xlu0 %v5942
      %v5977 = vpop.xlane.xlu0 %5976
      %5978 = vadd.xlane.f32.xlu0 %v5943
      %v5979 = vpop.xlane.xlu0 %5978
      %5980 = vadd.xlane.f32.xlu0 %v5944
      %v5981 = vpop.xlane.xlu0 %5980
      %5982 = vadd.xlane.f32.xlu0 %v5945
      %v5983 = vpop.xlane.xlu0 %5982
      %5984 = vadd.xlane.f32.xlu0 %v5946
      %v5985 = vpop.xlane.xlu0 %5984
      %5986 = vadd.xlane.f32.xlu0 %v5947
      %v5987 = vpop.xlane.xlu0 %5986
      %5988 = vadd.xlane.f32.xlu0 %v5948
      %v5989 = vpop.xlane.xlu0 %5988
      %5990 = vadd.xlane.f32.xlu0 %v5949
      %v5991 = vpop.xlane.xlu0 %5990
      %5992 = vadd.xlane.f32.xlu0 %v5950
      %v5993 = vpop.xlane.xlu0 %5992
      %5994 = vadd.xlane.f32.xlu0 %v5951
      %v5995 = vpop.xlane.xlu0 %5994
      %5996 = vadd.xlane.f32.xlu0 %v5952
      %v5997 = vpop.xlane.xlu0 %5996
      %5998 = vadd.xlane.f32.xlu0 %v5953
      %v5999 = vpop.xlane.xlu0 %5998
      %6000 = vadd.xlane.f32.xlu0 %v5954
      %v6001 = vpop.xlane.xlu0 %6000
      %6002 = vadd.xlane.f32.xlu0 %v5955
      %v6003 = vpop.xlane.xlu0 %6002
      %6004 = vadd.xlane.f32.xlu0 %v5956
      %v6005 = vpop.xlane.xlu0 %6004
      %6006 = vadd.xlane.f32.xlu0 %v5957
      %v6007 = vpop.xlane.xlu0 %6006
      %6008 = vadd.xlane.f32.xlu0 %v5958
      %v6009 = vpop.xlane.xlu0 %6008
      %6010 = vadd.xlane.f32.xlu0 %v5959
      %v6011 = vpop.xlane.xlu0 %6010
      %6012 = vadd.xlane.f32.xlu0 %v5960
      %v6013 = vpop.xlane.xlu0 %6012
      %6014 = vadd.xlane.f32.xlu0 %v5961
      %v6015 = vpop.xlane.xlu0 %6014
      %6016 = vadd.xlane.f32.xlu0 %v5962
      %v6017 = vpop.xlane.xlu0 %6016
      %6018 = vadd.xlane.f32.xlu0 %v5963
      %v6019 = vpop.xlane.xlu0 %6018
      %6020 = vadd.xlane.f32.xlu0 %v5964
      %v6021 = vpop.xlane.xlu0 %6020
      %6022 = vadd.xlane.f32.xlu0 %v5965
      %v6023 = vpop.xlane.xlu0 %6022
      %6024 = vadd.xlane.f32.xlu0 %v5966
      %v6025 = vpop.xlane.xlu0 %6024
      %6026 = vadd.xlane.f32.xlu0 %v5967
      %v6027 = vpop.xlane.xlu0 %6026
      %6028 = vadd.xlane.f32.xlu0 %v5968
      %v6029 = vpop.xlane.xlu0 %6028
      %6030 = vadd.xlane.f32.xlu0 %v5969
      %v6031 = vpop.xlane.xlu0 %6030
      %6032 = vadd.xlane.f32.xlu0 %v5970
      %v6033 = vpop.xlane.xlu0 %6032
      %6034 = vadd.xlane.f32.xlu0 %v5971
      %v6035 = vpop.xlane.xlu0 %6034
      %v6036 = vrcp.pop 128.0
      %v6037 = vmul.f32 128.0, %v6036
      %v6038 = vsub.f32 1.0, %v6037
      %v6039 = vmul.f32 %v6036, %v6038
      %v6040 = vadd.f32 %v6036, %v6039
      %vm6041 = vweird.f32 %v6036
      %v6042 = vsel %vm6041, %v6036, %v6040
      %v6043 = vmul.f32 %v5973, %v6042
      %v6044 = vmul.f32 %v5975, %v6042
      %v6045 = vmul.f32 %v5977, %v6042
      %v6046 = vmul.f32 %v5979, %v6042
      %v6047 = vmul.f32 %v5981, %v6042
      %v6048 = vmul.f32 %v5983, %v6042
      %v6049 = vmul.f32 %v5985, %v6042
      %v6050 = vmul.f32 %v5987, %v6042
      %v6051 = vmul.f32 %v5989, %v6042
      %v6052 = vmul.f32 %v5991, %v6042
      %v6053 = vmul.f32 %v5993, %v6042
      %v6054 = vmul.f32 %v5995, %v6042
      %v6055 = vmul.f32 %v5997, %v6042
      %v6056 = vmul.f32 %v5999, %v6042
      %v6057 = vmul.f32 %v6001, %v6042
      %v6058 = vmul.f32 %v6003, %v6042
      %v6059 = vmul.f32 %v6005, %v6042
      %v6060 = vmul.f32 %v6007, %v6042
      %v6061 = vmul.f32 %v6009, %v6042
      %v6062 = vmul.f32 %v6011, %v6042
      %v6063 = vmul.f32 %v6013, %v6042
      %v6064 = vmul.f32 %v6015, %v6042
      %v6065 = vmul.f32 %v6017, %v6042
      %v6066 = vmul.f32 %v6019, %v6042
      %v6067 = vmul.f32 %v6021, %v6042
      %v6068 = vmul.f32 %v6023, %v6042
      %v6069 = vmul.f32 %v6025, %v6042
      %v6070 = vmul.f32 %v6027, %v6042
      %v6071 = vmul.f32 %v6029, %v6042
      %v6072 = vmul.f32 %v6031, %v6042
      %v6073 = vmul.f32 %v6033, %v6042
      %v6074 = vmul.f32 %v6035, %v6042
      %v6075 = vsub.f32 %v5940, %v6043
      %v6076 = vsub.f32 %v5941, %v6044
      %v6077 = vsub.f32 %v5942, %v6045
      %v6078 = vsub.f32 %v5943, %v6046
      %v6079 = vsub.f32 %v5944, %v6047
      %v6080 = vsub.f32 %v5945, %v6048
      %v6081 = vsub.f32 %v5946, %v6049
      %v6082 = vsub.f32 %v5947, %v6050
      %v6083 = vsub.f32 %v5948, %v6051
      %v6084 = vsub.f32 %v5949, %v6052
      %v6085 = vsub.f32 %v5950, %v6053
      %v6086 = vsub.f32 %v5951, %v6054
      %v6087 = vsub.f32 %v5952, %v6055
      %v6088 = vsub.f32 %v5953, %v6056
      %v6089 = vsub.f32 %v5954, %v6057
      %v6090 = vsub.f32 %v5955, %v6058
      %v6091 = vsub.f32 %v5956, %v6059
      %v6092 = vsub.f32 %v5957, %v6060
      %v6093 = vsub.f32 %v5958, %v6061
      %v6094 = vsub.f32 %v5959, %v6062
      %v6095 = vsub.f32 %v5960, %v6063
      %v6096 = vsub.f32 %v5961, %v6064
      %v6097 = vsub.f32 %v5962, %v6065
      %v6098 = vsub.f32 %v5963, %v6066
      %v6099 = vsub.f32 %v5964, %v6067
      %v6100 = vsub.f32 %v5965, %v6068
      %v6101 = vsub.f32 %v5966, %v6069
      %v6102 = vsub.f32 %v5967, %v6070
      %v6103 = vsub.f32 %v5968, %v6071
      %v6104 = vsub.f32 %v5969, %v6072
      %v6105 = vsub.f32 %v5970, %v6073
      %v6106 = vsub.f32 %v5971, %v6074
      %v6107 = vmul.f32 %v6075, %v6075
      %v6108 = vmul.f32 %v6076, %v6076
      %v6109 = vmul.f32 %v6077, %v6077
      %v6110 = vmul.f32 %v6078, %v6078
      %v6111 = vmul.f32 %v6079, %v6079
      %v6112 = vmul.f32 %v6080, %v6080
      %v6113 = vmul.f32 %v6081, %v6081
      %v6114 = vmul.f32 %v6082, %v6082
      %v6115 = vmul.f32 %v6083, %v6083
      %v6116 = vmul.f32 %v6084, %v6084
      %v6117 = vmul.f32 %v6085, %v6085
      %v6118 = vmul.f32 %v6086, %v6086
      %v6119 = vmul.f32 %v6087, %v6087
      %v6120 = vmul.f32 %v6088, %v6088
      %v6121 = vmul.f32 %v6089, %v6089
      %v6122 = vmul.f32 %v6090, %v6090
      %v6123 = vmul.f32 %v6091, %v6091
      %v6124 = vmul.f32 %v6092, %v6092
      %v6125 = vmul.f32 %v6093, %v6093
      %v6126 = vmul.f32 %v6094, %v6094
      %v6127 = vmul.f32 %v6095, %v6095
      %v6128 = vmul.f32 %v6096, %v6096
      %v6129 = vmul.f32 %v6097, %v6097
      %v6130 = vmul.f32 %v6098, %v6098
      %v6131 = vmul.f32 %v6099, %v6099
      %v6132 = vmul.f32 %v6100, %v6100
      %v6133 = vmul.f32 %v6101, %v6101
      %v6134 = vmul.f32 %v6102, %v6102
      %v6135 = vmul.f32 %v6103, %v6103
      %v6136 = vmul.f32 %v6104, %v6104
      %v6137 = vmul.f32 %v6105, %v6105
      %v6138 = vmul.f32 %v6106, %v6106
      %6139 = vadd.xlane.f32.xlu0 %v6107
      %v6140 = vpop.xlane.xlu0 %6139
      %6141 = vadd.xlane.f32.xlu0 %v6108
      %v6142 = vpop.xlane.xlu0 %6141
      %6143 = vadd.xlane.f32.xlu0 %v6109
      %v6144 = vpop.xlane.xlu0 %6143
      %6145 = vadd.xlane.f32.xlu0 %v6110
      %v6146 = vpop.xlane.xlu0 %6145
      %6147 = vadd.xlane.f32.xlu0 %v6111
      %v6148 = vpop.xlane.xlu0 %6147
      %6149 = vadd.xlane.f32.xlu0 %v6112
      %v6150 = vpop.xlane.xlu0 %6149
      %6151 = vadd.xlane.f32.xlu0 %v6113
      %v6152 = vpop.xlane.xlu0 %6151
      %6153 = vadd.xlane.f32.xlu0 %v6114
      %v6154 = vpop.xlane.xlu0 %6153
      %6155 = vadd.xlane.f32.xlu0 %v6115
      %v6156 = vpop.xlane.xlu0 %6155
      %6157 = vadd.xlane.f32.xlu0 %v6116
      %v6158 = vpop.xlane.xlu0 %6157
      %6159 = vadd.xlane.f32.xlu0 %v6117
      %v6160 = vpop.xlane.xlu0 %6159
      %6161 = vadd.xlane.f32.xlu0 %v6118
      %v6162 = vpop.xlane.xlu0 %6161
      %6163 = vadd.xlane.f32.xlu0 %v6119
      %v6164 = vpop.xlane.xlu0 %6163
      %6165 = vadd.xlane.f32.xlu0 %v6120
      %v6166 = vpop.xlane.xlu0 %6165
      %6167 = vadd.xlane.f32.xlu0 %v6121
      %v6168 = vpop.xlane.xlu0 %6167
      %6169 = vadd.xlane.f32.xlu0 %v6122
      %v6170 = vpop.xlane.xlu0 %6169
      %6171 = vadd.xlane.f32.xlu0 %v6123
      %v6172 = vpop.xlane.xlu0 %6171
      %6173 = vadd.xlane.f32.xlu0 %v6124
      %v6174 = vpop.xlane.xlu0 %6173
      %6175 = vadd.xlane.f32.xlu0 %v6125
      %v6176 = vpop.xlane.xlu0 %6175
      %6177 = vadd.xlane.f32.xlu0 %v6126
      %v6178 = vpop.xlane.xlu0 %6177
      %6179 = vadd.xlane.f32.xlu0 %v6127
      %v6180 = vpop.xlane.xlu0 %6179
      %6181 = vadd.xlane.f32.xlu0 %v6128
      %v6182 = vpop.xlane.xlu0 %6181
      %6183 = vadd.xlane.f32.xlu0 %v6129
      %v6184 = vpop.xlane.xlu0 %6183
      %6185 = vadd.xlane.f32.xlu0 %v6130
      %v6186 = vpop.xlane.xlu0 %6185
      %6187 = vadd.xlane.f32.xlu0 %v6131
      %v6188 = vpop.xlane.xlu0 %6187
      %6189 = vadd.xlane.f32.xlu0 %v6132
      %v6190 = vpop.xlane.xlu0 %6189
      %6191 = vadd.xlane.f32.xlu0 %v6133
      %v6192 = vpop.xlane.xlu0 %6191
      %6193 = vadd.xlane.f32.xlu0 %v6134
      %v6194 = vpop.xlane.xlu0 %6193
      %6195 = vadd.xlane.f32.xlu0 %v6135
      %v6196 = vpop.xlane.xlu0 %6195
      %6197 = vadd.xlane.f32.xlu0 %v6136
      %v6198 = vpop.xlane.xlu0 %6197
      %6199 = vadd.xlane.f32.xlu0 %v6137
      %v6200 = vpop.xlane.xlu0 %6199
      %6201 = vadd.xlane.f32.xlu0 %v6138
      %v6202 = vpop.xlane.xlu0 %6201
      %v6203 = vmul.f32 %v6140, %v6042
      %v6204 = vmul.f32 %v6142, %v6042
      %v6205 = vmul.f32 %v6144, %v6042
      %v6206 = vmul.f32 %v6146, %v6042
      %v6207 = vmul.f32 %v6148, %v6042
      %v6208 = vmul.f32 %v6150, %v6042
      %v6209 = vmul.f32 %v6152, %v6042
      %v6210 = vmul.f32 %v6154, %v6042
      %v6211 = vmul.f32 %v6156, %v6042
      %v6212 = vmul.f32 %v6158, %v6042
      %v6213 = vmul.f32 %v6160, %v6042
      %v6214 = vmul.f32 %v6162, %v6042
      %v6215 = vmul.f32 %v6164, %v6042
      %v6216 = vmul.f32 %v6166, %v6042
      %v6217 = vmul.f32 %v6168, %v6042
      %v6218 = vmul.f32 %v6170, %v6042
      %v6219 = vmul.f32 %v6172, %v6042
      %v6220 = vmul.f32 %v6174, %v6042
      %v6221 = vmul.f32 %v6176, %v6042
      %v6222 = vmul.f32 %v6178, %v6042
      %v6223 = vmul.f32 %v6180, %v6042
      %v6224 = vmul.f32 %v6182, %v6042
      %v6225 = vmul.f32 %v6184, %v6042
      %v6226 = vmul.f32 %v6186, %v6042
      %v6227 = vmul.f32 %v6188, %v6042
      %v6228 = vmul.f32 %v6190, %v6042
      %v6229 = vmul.f32 %v6192, %v6042
      %v6230 = vmul.f32 %v6194, %v6042
      %v6231 = vmul.f32 %v6196, %v6042
      %v6232 = vmul.f32 %v6198, %v6042
      %v6233 = vmul.f32 %v6200, %v6042
      %v6234 = vmul.f32 %v6202, %v6042
      %v6235 = vadd.f32 %v6203, 1e-05
      %v6236 = vadd.f32 %v6204, 1e-05
      %v6237 = vadd.f32 %v6205, 1e-05
      %v6238 = vadd.f32 %v6206, 1e-05
      %v6239 = vadd.f32 %v6207, 1e-05
      %v6240 = vadd.f32 %v6208, 1e-05
      %v6241 = vadd.f32 %v6209, 1e-05
      %v6242 = vadd.f32 %v6210, 1e-05
      %v6243 = vadd.f32 %v6211, 1e-05
      %v6244 = vadd.f32 %v6212, 1e-05
      %v6245 = vadd.f32 %v6213, 1e-05
      %v6246 = vadd.f32 %v6214, 1e-05
      %v6247 = vadd.f32 %v6215, 1e-05
      %v6248 = vadd.f32 %v6216, 1e-05
      %v6249 = vadd.f32 %v6217, 1e-05
      %v6250 = vadd.f32 %v6218, 1e-05
      %v6251 = vadd.f32 %v6219, 1e-05
      %v6252 = vadd.f32 %v6220, 1e-05
      %v6253 = vadd.f32 %v6221, 1e-05
      %v6254 = vadd.f32 %v6222, 1e-05
      %v6255 = vadd.f32 %v6223, 1e-05
      %v6256 = vadd.f32 %v6224, 1e-05
      %v6257 = vadd.f32 %v6225, 1e-05
      %v6258 = vadd.f32 %v6226, 1e-05
      %v6259 = vadd.f32 %v6227, 1e-05
      %v6260 = vadd.f32 %v6228, 1e-05
      %v6261 = vadd.f32 %v6229, 1e-05
      %v6262 = vadd.f32 %v6230, 1e-05
      %v6263 = vadd.f32 %v6231, 1e-05
      %v6264 = vadd.f32 %v6232, 1e-05
      %v6265 = vadd.f32 %v6233, 1e-05
      %v6266 = vadd.f32 %v6234, 1e-05
      %v6267 = vrsqrt.pop %v6235
      %v6268 = vmul.f32 %v6267, %v6235
      %v6269 = vmul.f32 %v6268, %v6267
      %v6270 = vmul.f32 0.5, %v6269
      %v6271 = vsub.f32 1.5, %v6270
      %v6272 = vmul.f32 %v6267, %v6271
      %vm6273 = vweird.f32 %v6235
      %vm6274 = vweird.f32 %v6267
      %vm6275 = vmor %vm6273, %vm6274
      %v6276 = vsel %vm6275, %v6267, %v6272
      %v6277 = vrsqrt.pop %v6236
      %v6278 = vmul.f32 %v6277, %v6236
      %v6279 = vmul.f32 %v6278, %v6277
      %v6280 = vmul.f32 0.5, %v6279
      %v6281 = vsub.f32 1.5, %v6280
      %v6282 = vmul.f32 %v6277, %v6281
      %vm6283 = vweird.f32 %v6236
      %vm6284 = vweird.f32 %v6277
      %vm6285 = vmor %vm6283, %vm6284
      %v6286 = vsel %vm6285, %v6277, %v6282
      %v6287 = vrsqrt.pop %v6237
      %v6288 = vmul.f32 %v6287, %v6237
      %v6289 = vmul.f32 %v6288, %v6287
      %v6290 = vmul.f32 0.5, %v6289
      %v6291 = vsub.f32 1.5, %v6290
      %v6292 = vmul.f32 %v6287, %v6291
      %vm6293 = vweird.f32 %v6237
      %vm6294 = vweird.f32 %v6287
      %vm6295 = vmor %vm6293, %vm6294
      %v6296 = vsel %vm6295, %v6287, %v6292
      %v6297 = vrsqrt.pop %v6238
      %v6298 = vmul.f32 %v6297, %v6238
      %v6299 = vmul.f32 %v6298, %v6297
      %v6300 = vmul.f32 0.5, %v6299
      %v6301 = vsub.f32 1.5, %v6300
      %v6302 = vmul.f32 %v6297, %v6301
      %vm6303 = vweird.f32 %v6238
      %vm6304 = vweird.f32 %v6297
      %vm6305 = vmor %vm6303, %vm6304
      %v6306 = vsel %vm6305, %v6297, %v6302
      %v6307 = vrsqrt.pop %v6239
      %v6308 = vmul.f32 %v6307, %v6239
      %v6309 = vmul.f32 %v6308, %v6307
      %v6310 = vmul.f32 0.5, %v6309
      %v6311 = vsub.f32 1.5, %v6310
      %v6312 = vmul.f32 %v6307, %v6311
      %vm6313 = vweird.f32 %v6239
      %vm6314 = vweird.f32 %v6307
      %vm6315 = vmor %vm6313, %vm6314
      %v6316 = vsel %vm6315, %v6307, %v6312
      %v6317 = vrsqrt.pop %v6240
      %v6318 = vmul.f32 %v6317, %v6240
      %v6319 = vmul.f32 %v6318, %v6317
      %v6320 = vmul.f32 0.5, %v6319
      %v6321 = vsub.f32 1.5, %v6320
      %v6322 = vmul.f32 %v6317, %v6321
      %vm6323 = vweird.f32 %v6240
      %vm6324 = vweird.f32 %v6317
      %vm6325 = vmor %vm6323, %vm6324
      %v6326 = vsel %vm6325, %v6317, %v6322
      %v6327 = vrsqrt.pop %v6241
      %v6328 = vmul.f32 %v6327, %v6241
      %v6329 = vmul.f32 %v6328, %v6327
      %v6330 = vmul.f32 0.5, %v6329
      %v6331 = vsub.f32 1.5, %v6330
      %v6332 = vmul.f32 %v6327, %v6331
      %vm6333 = vweird.f32 %v6241
      %vm6334 = vweird.f32 %v6327
      %vm6335 = vmor %vm6333, %vm6334
      %v6336 = vsel %vm6335, %v6327, %v6332
      %v6337 = vrsqrt.pop %v6242
      %v6338 = vmul.f32 %v6337, %v6242
      %v6339 = vmul.f32 %v6338, %v6337
      %v6340 = vmul.f32 0.5, %v6339
      %v6341 = vsub.f32 1.5, %v6340
      %v6342 = vmul.f32 %v6337, %v6341
      %vm6343 = vweird.f32 %v6242
      %vm6344 = vweird.f32 %v6337
      %vm6345 = vmor %vm6343, %vm6344
      %v6346 = vsel %vm6345, %v6337, %v6342
      %v6347 = vrsqrt.pop %v6243
      %v6348 = vmul.f32 %v6347, %v6243
      %v6349 = vmul.f32 %v6348, %v6347
      %v6350 = vmul.f32 0.5, %v6349
      %v6351 = vsub.f32 1.5, %v6350
      %v6352 = vmul.f32 %v6347, %v6351
      %vm6353 = vweird.f32 %v6243
      %vm6354 = vweird.f32 %v6347
      %vm6355 = vmor %vm6353, %vm6354
      %v6356 = vsel %vm6355, %v6347, %v6352
      %v6357 = vrsqrt.pop %v6244
      %v6358 = vmul.f32 %v6357, %v6244
      %v6359 = vmul.f32 %v6358, %v6357
      %v6360 = vmul.f32 0.5, %v6359
      %v6361 = vsub.f32 1.5, %v6360
      %v6362 = vmul.f32 %v6357, %v6361
      %vm6363 = vweird.f32 %v6244
      %vm6364 = vweird.f32 %v6357
      %vm6365 = vmor %vm6363, %vm6364
      %v6366 = vsel %vm6365, %v6357, %v6362
      %v6367 = vrsqrt.pop %v6245
      %v6368 = vmul.f32 %v6367, %v6245
      %v6369 = vmul.f32 %v6368, %v6367
      %v6370 = vmul.f32 0.5, %v6369
      %v6371 = vsub.f32 1.5, %v6370
      %v6372 = vmul.f32 %v6367, %v6371
      %vm6373 = vweird.f32 %v6245
      %vm6374 = vweird.f32 %v6367
      %vm6375 = vmor %vm6373, %vm6374
      %v6376 = vsel %vm6375, %v6367, %v6372
      %v6377 = vrsqrt.pop %v6246
      %v6378 = vmul.f32 %v6377, %v6246
      %v6379 = vmul.f32 %v6378, %v6377
      %v6380 = vmul.f32 0.5, %v6379
      %v6381 = vsub.f32 1.5, %v6380
      %v6382 = vmul.f32 %v6377, %v6381
      %vm6383 = vweird.f32 %v6246
      %vm6384 = vweird.f32 %v6377
      %vm6385 = vmor %vm6383, %vm6384
      %v6386 = vsel %vm6385, %v6377, %v6382
      %v6387 = vrsqrt.pop %v6247
      %v6388 = vmul.f32 %v6387, %v6247
      %v6389 = vmul.f32 %v6388, %v6387
      %v6390 = vmul.f32 0.5, %v6389
      %v6391 = vsub.f32 1.5, %v6390
      %v6392 = vmul.f32 %v6387, %v6391
      %vm6393 = vweird.f32 %v6247
      %vm6394 = vweird.f32 %v6387
      %vm6395 = vmor %vm6393, %vm6394
      %v6396 = vsel %vm6395, %v6387, %v6392
      %v6397 = vrsqrt.pop %v6248
      %v6398 = vmul.f32 %v6397, %v6248
      %v6399 = vmul.f32 %v6398, %v6397
      %v6400 = vmul.f32 0.5, %v6399
      %v6401 = vsub.f32 1.5, %v6400
      %v6402 = vmul.f32 %v6397, %v6401
      %vm6403 = vweird.f32 %v6248
      %vm6404 = vweird.f32 %v6397
      %vm6405 = vmor %vm6403, %vm6404
      %v6406 = vsel %vm6405, %v6397, %v6402
      %v6407 = vrsqrt.pop %v6249
      %v6408 = vmul.f32 %v6407, %v6249
      %v6409 = vmul.f32 %v6408, %v6407
      %v6410 = vmul.f32 0.5, %v6409
      %v6411 = vsub.f32 1.5, %v6410
      %v6412 = vmul.f32 %v6407, %v6411
      %vm6413 = vweird.f32 %v6249
      %vm6414 = vweird.f32 %v6407
      %vm6415 = vmor %vm6413, %vm6414
      %v6416 = vsel %vm6415, %v6407, %v6412
      %v6417 = vrsqrt.pop %v6250
      %v6418 = vmul.f32 %v6417, %v6250
      %v6419 = vmul.f32 %v6418, %v6417
      %v6420 = vmul.f32 0.5, %v6419
      %v6421 = vsub.f32 1.5, %v6420
      %v6422 = vmul.f32 %v6417, %v6421
      %vm6423 = vweird.f32 %v6250
      %vm6424 = vweird.f32 %v6417
      %vm6425 = vmor %vm6423, %vm6424
      %v6426 = vsel %vm6425, %v6417, %v6422
      %v6427 = vrsqrt.pop %v6251
      %v6428 = vmul.f32 %v6427, %v6251
      %v6429 = vmul.f32 %v6428, %v6427
      %v6430 = vmul.f32 0.5, %v6429
      %v6431 = vsub.f32 1.5, %v6430
      %v6432 = vmul.f32 %v6427, %v6431
      %vm6433 = vweird.f32 %v6251
      %vm6434 = vweird.f32 %v6427
      %vm6435 = vmor %vm6433, %vm6434
      %v6436 = vsel %vm6435, %v6427, %v6432
      %v6437 = vrsqrt.pop %v6252
      %v6438 = vmul.f32 %v6437, %v6252
      %v6439 = vmul.f32 %v6438, %v6437
      %v6440 = vmul.f32 0.5, %v6439
      %v6441 = vsub.f32 1.5, %v6440
      %v6442 = vmul.f32 %v6437, %v6441
      %vm6443 = vweird.f32 %v6252
      %vm6444 = vweird.f32 %v6437
      %vm6445 = vmor %vm6443, %vm6444
      %v6446 = vsel %vm6445, %v6437, %v6442
      %v6447 = vrsqrt.pop %v6253
      %v6448 = vmul.f32 %v6447, %v6253
      %v6449 = vmul.f32 %v6448, %v6447
      %v6450 = vmul.f32 0.5, %v6449
      %v6451 = vsub.f32 1.5, %v6450
      %v6452 = vmul.f32 %v6447, %v6451
      %vm6453 = vweird.f32 %v6253
      %vm6454 = vweird.f32 %v6447
      %vm6455 = vmor %vm6453, %vm6454
      %v6456 = vsel %vm6455, %v6447, %v6452
      %v6457 = vrsqrt.pop %v6254
      %v6458 = vmul.f32 %v6457, %v6254
      %v6459 = vmul.f32 %v6458, %v6457
      %v6460 = vmul.f32 0.5, %v6459
      %v6461 = vsub.f32 1.5, %v6460
      %v6462 = vmul.f32 %v6457, %v6461
      %vm6463 = vweird.f32 %v6254
      %vm6464 = vweird.f32 %v6457
      %vm6465 = vmor %vm6463, %vm6464
      %v6466 = vsel %vm6465, %v6457, %v6462
      %v6467 = vrsqrt.pop %v6255
      %v6468 = vmul.f32 %v6467, %v6255
      %v6469 = vmul.f32 %v6468, %v6467
      %v6470 = vmul.f32 0.5, %v6469
      %v6471 = vsub.f32 1.5, %v6470
      %v6472 = vmul.f32 %v6467, %v6471
      %vm6473 = vweird.f32 %v6255
      %vm6474 = vweird.f32 %v6467
      %vm6475 = vmor %vm6473, %vm6474
      %v6476 = vsel %vm6475, %v6467, %v6472
      %v6477 = vrsqrt.pop %v6256
      %v6478 = vmul.f32 %v6477, %v6256
      %v6479 = vmul.f32 %v6478, %v6477
      %v6480 = vmul.f32 0.5, %v6479
      %v6481 = vsub.f32 1.5, %v6480
      %v6482 = vmul.f32 %v6477, %v6481
      %vm6483 = vweird.f32 %v6256
      %vm6484 = vweird.f32 %v6477
      %vm6485 = vmor %vm6483, %vm6484
      %v6486 = vsel %vm6485, %v6477, %v6482
      %v6487 = vrsqrt.pop %v6257
      %v6488 = vmul.f32 %v6487, %v6257
      %v6489 = vmul.f32 %v6488, %v6487
      %v6490 = vmul.f32 0.5, %v6489
      %v6491 = vsub.f32 1.5, %v6490
      %v6492 = vmul.f32 %v6487, %v6491
      %vm6493 = vweird.f32 %v6257
      %vm6494 = vweird.f32 %v6487
      %vm6495 = vmor %vm6493, %vm6494
      %v6496 = vsel %vm6495, %v6487, %v6492
      %v6497 = vrsqrt.pop %v6258
      %v6498 = vmul.f32 %v6497, %v6258
      %v6499 = vmul.f32 %v6498, %v6497
      %v6500 = vmul.f32 0.5, %v6499
      %v6501 = vsub.f32 1.5, %v6500
      %v6502 = vmul.f32 %v6497, %v6501
      %vm6503 = vweird.f32 %v6258
      %vm6504 = vweird.f32 %v6497
      %vm6505 = vmor %vm6503, %vm6504
      %v6506 = vsel %vm6505, %v6497, %v6502
      %v6507 = vrsqrt.pop %v6259
      %v6508 = vmul.f32 %v6507, %v6259
      %v6509 = vmul.f32 %v6508, %v6507
      %v6510 = vmul.f32 0.5, %v6509
      %v6511 = vsub.f32 1.5, %v6510
      %v6512 = vmul.f32 %v6507, %v6511
      %vm6513 = vweird.f32 %v6259
      %vm6514 = vweird.f32 %v6507
      %vm6515 = vmor %vm6513, %vm6514
      %v6516 = vsel %vm6515, %v6507, %v6512
      %v6517 = vrsqrt.pop %v6260
      %v6518 = vmul.f32 %v6517, %v6260
      %v6519 = vmul.f32 %v6518, %v6517
      %v6520 = vmul.f32 0.5, %v6519
      %v6521 = vsub.f32 1.5, %v6520
      %v6522 = vmul.f32 %v6517, %v6521
      %vm6523 = vweird.f32 %v6260
      %vm6524 = vweird.f32 %v6517
      %vm6525 = vmor %vm6523, %vm6524
      %v6526 = vsel %vm6525, %v6517, %v6522
      %v6527 = vrsqrt.pop %v6261
      %v6528 = vmul.f32 %v6527, %v6261
      %v6529 = vmul.f32 %v6528, %v6527
      %v6530 = vmul.f32 0.5, %v6529
      %v6531 = vsub.f32 1.5, %v6530
      %v6532 = vmul.f32 %v6527, %v6531
      %vm6533 = vweird.f32 %v6261
      %vm6534 = vweird.f32 %v6527
      %vm6535 = vmor %vm6533, %vm6534
      %v6536 = vsel %vm6535, %v6527, %v6532
      %v6537 = vrsqrt.pop %v6262
      %v6538 = vmul.f32 %v6537, %v6262
      %v6539 = vmul.f32 %v6538, %v6537
      %v6540 = vmul.f32 0.5, %v6539
      %v6541 = vsub.f32 1.5, %v6540
      %v6542 = vmul.f32 %v6537, %v6541
      %vm6543 = vweird.f32 %v6262
      %vm6544 = vweird.f32 %v6537
      %vm6545 = vmor %vm6543, %vm6544
      %v6546 = vsel %vm6545, %v6537, %v6542
      %v6547 = vrsqrt.pop %v6263
      %v6548 = vmul.f32 %v6547, %v6263
      %v6549 = vmul.f32 %v6548, %v6547
      %v6550 = vmul.f32 0.5, %v6549
      %v6551 = vsub.f32 1.5, %v6550
      %v6552 = vmul.f32 %v6547, %v6551
      %vm6553 = vweird.f32 %v6263
      %vm6554 = vweird.f32 %v6547
      %vm6555 = vmor %vm6553, %vm6554
      %v6556 = vsel %vm6555, %v6547, %v6552
      %v6557 = vrsqrt.pop %v6264
      %v6558 = vmul.f32 %v6557, %v6264
      %v6559 = vmul.f32 %v6558, %v6557
      %v6560 = vmul.f32 0.5, %v6559
      %v6561 = vsub.f32 1.5, %v6560
      %v6562 = vmul.f32 %v6557, %v6561
      %vm6563 = vweird.f32 %v6264
      %vm6564 = vweird.f32 %v6557
      %vm6565 = vmor %vm6563, %vm6564
      %v6566 = vsel %vm6565, %v6557, %v6562
      %v6567 = vrsqrt.pop %v6265
      %v6568 = vmul.f32 %v6567, %v6265
      %v6569 = vmul.f32 %v6568, %v6567
      %v6570 = vmul.f32 0.5, %v6569
      %v6571 = vsub.f32 1.5, %v6570
      %v6572 = vmul.f32 %v6567, %v6571
      %vm6573 = vweird.f32 %v6265
      %vm6574 = vweird.f32 %v6567
      %vm6575 = vmor %vm6573, %vm6574
      %v6576 = vsel %vm6575, %v6567, %v6572
      %v6577 = vrsqrt.pop %v6266
      %v6578 = vmul.f32 %v6577, %v6266
      %v6579 = vmul.f32 %v6578, %v6577
      %v6580 = vmul.f32 0.5, %v6579
      %v6581 = vsub.f32 1.5, %v6580
      %v6582 = vmul.f32 %v6577, %v6581
      %vm6583 = vweird.f32 %v6266
      %vm6584 = vweird.f32 %v6577
      %vm6585 = vmor %vm6583, %vm6584
      %v6586 = vsel %vm6585, %v6577, %v6582
      %v6587 = vmul.f32 %v6075, %v6276
      %v6588 = vmul.f32 %v6076, %v6286
      %v6589 = vmul.f32 %v6077, %v6296
      %v6590 = vmul.f32 %v6078, %v6306
      %v6591 = vmul.f32 %v6079, %v6316
      %v6592 = vmul.f32 %v6080, %v6326
      %v6593 = vmul.f32 %v6081, %v6336
      %v6594 = vmul.f32 %v6082, %v6346
      %v6595 = vmul.f32 %v6083, %v6356
      %v6596 = vmul.f32 %v6084, %v6366
      %v6597 = vmul.f32 %v6085, %v6376
      %v6598 = vmul.f32 %v6086, %v6386
      %v6599 = vmul.f32 %v6087, %v6396
      %v6600 = vmul.f32 %v6088, %v6406
      %v6601 = vmul.f32 %v6089, %v6416
      %v6602 = vmul.f32 %v6090, %v6426
      %v6603 = vmul.f32 %v6091, %v6436
      %v6604 = vmul.f32 %v6092, %v6446
      %v6605 = vmul.f32 %v6093, %v6456
      %v6606 = vmul.f32 %v6094, %v6466
      %v6607 = vmul.f32 %v6095, %v6476
      %v6608 = vmul.f32 %v6096, %v6486
      %v6609 = vmul.f32 %v6097, %v6496
      %v6610 = vmul.f32 %v6098, %v6506
      %v6611 = vmul.f32 %v6099, %v6516
      %v6612 = vmul.f32 %v6100, %v6526
      %v6613 = vmul.f32 %v6101, %v6536
      %v6614 = vmul.f32 %v6102, %v6546
      %v6615 = vmul.f32 %v6103, %v6556
      %v6616 = vmul.f32 %v6104, %v6566
      %v6617 = vmul.f32 %v6105, %v6576
      %v6618 = vmul.f32 %v6106, %v6586
      %v6619 = vld [vmem:[%s5] sm:$0x1]
      %v6621 = vperm.slane %v6619, 0
      %v6623 = vmul.f32 %v6587, %v6621
      %v6624 = vmul.f32 %v6588, %v6621
      %v6625 = vmul.f32 %v6589, %v6621
      %v6626 = vmul.f32 %v6590, %v6621
      %v6627 = vmul.f32 %v6591, %v6621
      %v6628 = vmul.f32 %v6592, %v6621
      %v6629 = vmul.f32 %v6593, %v6621
      %v6630 = vmul.f32 %v6594, %v6621
      %v6631 = vmul.f32 %v6595, %v6621
      %v6632 = vmul.f32 %v6596, %v6621
      %v6633 = vmul.f32 %v6597, %v6621
      %v6634 = vmul.f32 %v6598, %v6621
      %v6635 = vmul.f32 %v6599, %v6621
      %v6636 = vmul.f32 %v6600, %v6621
      %v6637 = vmul.f32 %v6601, %v6621
      %v6638 = vmul.f32 %v6602, %v6621
      %v6639 = vmul.f32 %v6603, %v6621
      %v6640 = vmul.f32 %v6604, %v6621
      %v6641 = vmul.f32 %v6605, %v6621
      %v6642 = vmul.f32 %v6606, %v6621
      %v6643 = vmul.f32 %v6607, %v6621
      %v6644 = vmul.f32 %v6608, %v6621
      %v6645 = vmul.f32 %v6609, %v6621
      %v6646 = vmul.f32 %v6610, %v6621
      %v6647 = vmul.f32 %v6611, %v6621
      %v6648 = vmul.f32 %v6612, %v6621
      %v6649 = vmul.f32 %v6613, %v6621
      %v6650 = vmul.f32 %v6614, %v6621
      %v6651 = vmul.f32 %v6615, %v6621
      %v6652 = vmul.f32 %v6616, %v6621
      %v6653 = vmul.f32 %v6617, %v6621
      %v6654 = vmul.f32 %v6618, %v6621
      %v6655 = vld [vmem:[%s6] sm:$0x1]
      %v6657 = vperm.slane %v6655, 0
      %v6659 = vadd.f32 %v6623, %v6657
      %v6660 = vadd.f32 %v6624, %v6657
      %v6661 = vadd.f32 %v6625, %v6657
      %v6662 = vadd.f32 %v6626, %v6657
      %v6663 = vadd.f32 %v6627, %v6657
      %v6664 = vadd.f32 %v6628, %v6657
      %v6665 = vadd.f32 %v6629, %v6657
      %v6666 = vadd.f32 %v6630, %v6657
      %v6667 = vadd.f32 %v6631, %v6657
      %v6668 = vadd.f32 %v6632, %v6657
      %v6669 = vadd.f32 %v6633, %v6657
      %v6670 = vadd.f32 %v6634, %v6657
      %v6671 = vadd.f32 %v6635, %v6657
      %v6672 = vadd.f32 %v6636, %v6657
      %v6673 = vadd.f32 %v6637, %v6657
      %v6674 = vadd.f32 %v6638, %v6657
      %v6675 = vadd.f32 %v6639, %v6657
      %v6676 = vadd.f32 %v6640, %v6657
      %v6677 = vadd.f32 %v6641, %v6657
      %v6678 = vadd.f32 %v6642, %v6657
      %v6679 = vadd.f32 %v6643, %v6657
      %v6680 = vadd.f32 %v6644, %v6657
      %v6681 = vadd.f32 %v6645, %v6657
      %v6682 = vadd.f32 %v6646, %v6657
      %v6683 = vadd.f32 %v6647, %v6657
      %v6684 = vadd.f32 %v6648, %v6657
      %v6685 = vadd.f32 %v6649, %v6657
      %v6686 = vadd.f32 %v6650, %v6657
      %v6687 = vadd.f32 %v6651, %v6657
      %v6688 = vadd.f32 %v6652, %v6657
      %v6689 = vadd.f32 %v6653, %v6657
      %v6690 = vadd.f32 %v6654, %v6657
      %6691 = vxpose.xlu0.b32.start [1/16] %v6659, 128
      %6692 = vxpose.xlu0.b32.cont [2/16] %v6660, 128
      %6693 = vxpose.xlu0.b32.cont [3/16] %v6661, 128
      %6694 = vxpose.xlu0.b32.cont [4/16] %v6662, 128
      %6695 = vxpose.xlu0.b32.cont [5/16] %v6663, 128
      %6696 = vxpose.xlu0.b32.cont [6/16] %v6664, 128
      %6697 = vxpose.xlu0.b32.cont [7/16] %v6665, 128
      %6698 = vxpose.xlu0.b32.cont [8/16] %v6666, 128
      %6699 = vxpose.xlu0.b32.cont [9/16] %v6667, 128
      %6700 = vxpose.xlu0.b32.cont [10/16] %v6668, 128
      %6701 = vxpose.xlu0.b32.cont [11/16] %v6669, 128
      %6702 = vxpose.xlu0.b32.cont [12/16] %v6670, 128
      %6703 = vxpose.xlu0.b32.cont [13/16] %v6671, 128
      %6704 = vxpose.xlu0.b32.cont [14/16] %v6672, 128
      %6705 = vxpose.xlu0.b32.cont [15/16] %v6673, 128
      %6706 = vxpose.xlu0.b32.end [16/16] %v6674, 128
      %v6707 = vpop.trf.xlu0
      %v6708 = vpop.trf.xlu0
      %v6709 = vpop.trf.xlu0
      %v6710 = vpop.trf.xlu0
      %v6711 = vpop.trf.xlu0
      %v6712 = vpop.trf.xlu0
      %v6713 = vpop.trf.xlu0
      %v6714 = vpop.trf.xlu0
      %v6715 = vpop.trf.xlu0
      %v6716 = vpop.trf.xlu0
      %v6717 = vpop.trf.xlu0
      %v6718 = vpop.trf.xlu0
      %v6719 = vpop.trf.xlu0
      %v6720 = vpop.trf.xlu0
      %v6721 = vpop.trf.xlu0
      %v6722 = vpop.trf.xlu0
      %6723 = vxpose.xlu0.b32.start [1/16] %v6675, 128
      %6724 = vxpose.xlu0.b32.cont [2/16] %v6676, 128
      %6725 = vxpose.xlu0.b32.cont [3/16] %v6677, 128
      %6726 = vxpose.xlu0.b32.cont [4/16] %v6678, 128
      %6727 = vxpose.xlu0.b32.cont [5/16] %v6679, 128
      %6728 = vxpose.xlu0.b32.cont [6/16] %v6680, 128
      %6729 = vxpose.xlu0.b32.cont [7/16] %v6681, 128
      %6730 = vxpose.xlu0.b32.cont [8/16] %v6682, 128
      %6731 = vxpose.xlu0.b32.cont [9/16] %v6683, 128
      %6732 = vxpose.xlu0.b32.cont [10/16] %v6684, 128
      %6733 = vxpose.xlu0.b32.cont [11/16] %v6685, 128
      %6734 = vxpose.xlu0.b32.cont [12/16] %v6686, 128
      %6735 = vxpose.xlu0.b32.cont [13/16] %v6687, 128
      %6736 = vxpose.xlu0.b32.cont [14/16] %v6688, 128
      %6737 = vxpose.xlu0.b32.cont [15/16] %v6689, 128
      %6738 = vxpose.xlu0.b32.end [16/16] %v6690, 128
      %v6739 = vpop.trf.xlu0
      %v6740 = vpop.trf.xlu0
      %v6741 = vpop.trf.xlu0
      %v6742 = vpop.trf.xlu0
      %v6743 = vpop.trf.xlu0
      %v6744 = vpop.trf.xlu0
      %v6745 = vpop.trf.xlu0
      %v6746 = vpop.trf.xlu0
      %v6747 = vpop.trf.xlu0
      %v6748 = vpop.trf.xlu0
      %v6749 = vpop.trf.xlu0
      %v6750 = vpop.trf.xlu0
      %v6751 = vpop.trf.xlu0
      %v6752 = vpop.trf.xlu0
      %v6753 = vpop.trf.xlu0
      %v6754 = vpop.trf.xlu0
      %6755 = vst [vmem:[%s278] sm:$0xff] %v6707
      %6756 = vst [vmem:[%s278 + $0x8] sm:$0xff] %v6739
      %6757 = vst [vmem:[%s278 + $0x10] sm:$0xff] %v6708
      %6758 = vst [vmem:[%s278 + $0x18] sm:$0xff] %v6740
      %6759 = vst [vmem:[%s278 + $0x20] sm:$0xff] %v6709
      %6760 = vst [vmem:[%s278 + $0x28] sm:$0xff] %v6741
      %6761 = vst [vmem:[%s278 + $0x30] sm:$0xff] %v6710
      %6762 = vst [vmem:[%s278 + $0x38] sm:$0xff] %v6742
      %6763 = vst [vmem:[%s278 + $0x40] sm:$0xff] %v6711
      %6764 = vst [vmem:[%s278 + $0x48] sm:$0xff] %v6743
      %6765 = vst [vmem:[%s278 + $0x50] sm:$0xff] %v6712
      %6766 = vst [vmem:[%s278 + $0x58] sm:$0xff] %v6744
      %6767 = vst [vmem:[%s278 + $0x60] sm:$0xff] %v6713
      %6768 = vst [vmem:[%s278 + $0x68] sm:$0xff] %v6745
      %6769 = vst [vmem:[%s278 + $0x70] sm:$0xff] %v6714
      %6770 = vst [vmem:[%s278 + $0x78] sm:$0xff] %v6746
      %6771 = vst [vmem:[%s278 + $0x80] sm:$0xff] %v6715
      %6772 = vst [vmem:[%s278 + $0x88] sm:$0xff] %v6747
      %6773 = vst [vmem:[%s278 + $0x90] sm:$0xff] %v6716
      %6774 = vst [vmem:[%s278 + $0x98] sm:$0xff] %v6748
      %6775 = vst [vmem:[%s278 + $0xa0] sm:$0xff] %v6717
      %6776 = vst [vmem:[%s278 + $0xa8] sm:$0xff] %v6749
      %6777 = vst [vmem:[%s278 + $0xb0] sm:$0xff] %v6718
      %6778 = vst [vmem:[%s278 + $0xb8] sm:$0xff] %v6750
      %6779 = vst [vmem:[%s278 + $0xc0] sm:$0xff] %v6719
      %6780 = vst [vmem:[%s278 + $0xc8] sm:$0xff] %v6751
      %6781 = vst [vmem:[%s278 + $0xd0] sm:$0xff] %v6720
      %6782 = vst [vmem:[%s278 + $0xd8] sm:$0xff] %v6752
      %6783 = vst [vmem:[%s278 + $0xe0] sm:$0xff] %v6721
      %6784 = vst [vmem:[%s278 + $0xe8] sm:$0xff] %v6753
      %6785 = vst [vmem:[%s278 + $0xf0] sm:$0xff] %v6722
      %6786 = vst [vmem:[%s278 + $0xf8] sm:$0xff] %v6754
      %p6787 = scmp.lt.s32.totalorder %s18, 1
      %s6788 = scalar_select %p6787, %s18, 1
      %s6789 = smul.addr %s6788, 32
      %s6790 = smul.addr %s6789, 8
      %s6791 = scalar_lea.vmem %s7, %s6790
      // Predicated region
      $region49: #{batchformer_forward.1} parent=47 // pred_check
        %p6792 = pneg %p188
      $region50: #{batchformer_forward.1} parent=47 // pred_check_branch
        %6794 = sbr.rel (%p6792) target = $region52
      $region51: #{batchformer_forward.1} parent=47 // pred_region
        _
      $region52: #{batchformer_forward.1} parent=47 // pred_fallthru
        _
    $region48: #{batchformer_forward.1} parent=5 // pred_fallthru
      _
    %p6795 = scmp.le.s32.totalorder 2, %s13
    // Predicated region
    $region53: #{batchformer_forward.1} parent=5 // pred_check
      %p6796 = pneg %p6795
    $region54: #{batchformer_forward.1} parent=5 // pred_check_branch
      %6798 = sbr.rel (%p6796) target = $region56
    $region55: #{batchformer_forward.1} parent=5 // pred_region
      %s6799 = ssub.s32 %s13, 2
      // Predicated region
      $region57: #{batchformer_forward.1} parent=55 // pred_check
        %p6800 = pneg %p194
      $region58: #{batchformer_forward.1} parent=55 // pred_check_branch
        %6802 = sbr.rel (%p6800) target = $region60
      $region59: #{batchformer_forward.1} parent=55 // pred_region
        %p6803 = scmp.lt.s32.totalorder %s19, 1
        %s6804 = scalar_select %p6803, %s19, 1
        %s6805 = smul.addr %s6804, 32
        %s6806 = smul.addr %s6805, 8
        %s6807 = scalar_lea.vmem %s7, %s6806
      $region60: #{batchformer_forward.1} parent=55 // pred_fallthru
        _
    $region56: #{batchformer_forward.1} parent=5 // pred_fallthru
      _
  $region6: #{batchformer_forward.1} parent=0 // loop_footer
    %s17 = sadd.s32 1, %s13
  $region7: #{batchformer_forward.1} parent=0 // loop_footer_branch
    %12 = sbr.rel target = $region3
  $region8: #{batchformer_forward.1} parent=0 // loop_exit
    _

</llo_original>
